<compile_context>
chip_gen: v7x
topology: tpu7x:2x2x1
jax: 0.10.0
libtpu: 0.0.40
codegen_flags: <defaults>
</compile_context>

<pallas_src>
import numpy as np
import jax
import jax.numpy as jnp
from jax import lax
from jax.experimental import pallas as pl
from jax.experimental.pallas import tpu as pltpu


def _round_up(x, m):
    return (x + m - 1) // m * m


def _pad_last(a, target):
    pad = target - a.shape[-1]
    if pad <= 0:
        return a
    return jnp.pad(a, [(0, 0)] * (a.ndim - 1) + [(0, pad)])


# ----------------------------- fused Pallas kernel -----------------------------

def _make_decoder_kernel(src_ch, tile_h, W, Cp, n_tiles_h):
    n_src = len(src_ch)
    Csum = sum(src_ch)
    K1 = 3 * Csum          # stage-1 matmul K (per dy tap, over the virtual concat)
    K2 = 3 * Cp            # stage-2 matmul K (per dy tap)
    R1 = tile_h + 2        # stage-1 output rows (+-1 halo row for conv2)

    def write_dx_taps(p_ref, val, row0, n_rows, C, col0):
        """Write the 3 column (dx) taps of a 3x3/pad=1 conv for `val`
        (shape (n_rows, W, C)) into p_ref[row0:row0+n_rows, :, col0:col0+3C].
        Column layout inside the block is dx-major: [dx=0 | dx=1 | dx=2]."""
        zc = jnp.zeros((n_rows, 1, C), val.dtype)
        r1 = row0 + n_rows
        # dx = 0: output col w reads input col w-1 (zero at w == 0)
        p_ref[row0:r1, 0:1, col0:col0 + C] = zc
        p_ref[row0:r1, 1:W, col0:col0 + C] = val[:, 0:W - 1, :]
        # dx = 1: aligned copy
        p_ref[row0:r1, 0:W, col0 + C:col0 + 2 * C] = val
        # dx = 2: output col w reads input col w+1 (zero at w == W-1)
        p_ref[row0:r1, 0:W - 1, col0 + 2 * C:col0 + 3 * C] = val[:, 1:W, :]
        p_ref[row0:r1, W - 1:W, col0 + 2 * C:col0 + 3 * C] = zc

    def dy_accumulated_matmul(p_ref, n_out_rows, w_ref, K):
        """3x3 conv as 3 accumulated MXU matmuls (one per kernel row dy)."""
        acc = None
        for dy in range(3):
            patch = p_ref[dy:dy + n_out_rows, :, :].reshape(n_out_rows * W, K)
            part = jnp.dot(patch, w_ref[dy], preferred_element_type=jnp.float32)
            acc = part if acc is None else acc + part
        return acc

    def kernel(*args):
        src_refs = args[:3 * n_src]                     # (main, top, bot) per source
        w1_ref, b1_ref, w2_ref, b2_ref, o_ref = args[3 * n_src:3 * n_src + 5]
        p1_ref, p2_ref = args[3 * n_src + 5:]

        i = pl.program_id(0)
        t = i % n_tiles_h                               # tile index within the image
        is_top = t == 0
        is_bot = t == n_tiles_h - 1

        # ---- stage-1 dx row-patch over tile_h + 4 input rows (the channel
        #      "concat" of the sources happens along K) -------------------------
        col0 = 0
        for s in range(n_src):
            main_ref, top_ref, bot_ref = src_refs[3 * s:3 * s + 3]
            C = src_ch[s]
            top = top_ref[...]
            top = jnp.where(is_top, jnp.zeros_like(top), top)   # zero pad above image
            bot = bot_ref[...]
            bot = jnp.where(is_bot, jnp.zeros_like(bot), bot)   # zero pad below image
            write_dx_taps(p1_ref, top, 0, 2, C, col0)
            write_dx_taps(p1_ref, main_ref[...], 2, tile_h, C, col0)
            write_dx_taps(p1_ref, bot, tile_h + 2, 2, C, col0)
            col0 += 3 * C

        # ---- stage 1: conv1 + folded BN1 + ReLU over tile_h + 2 rows ----------
        acc1 = dy_accumulated_matmul(p1_ref, R1, w1_ref, K1)
        y1 = jnp.maximum(acc1 + b1_ref[...], 0.0).reshape(R1, W, Cp)
        # stage-1 activation goes straight into conv2's dx=1 column block:
        # it lives only in VMEM (bf16) and never round-trips HBM.
        p2_ref[:, :, Cp:2 * Cp] = y1.astype(p2_ref.dtype)

        # rows outside the image must be exact zeros for conv2's zero padding
        @pl.when(is_top)
        def _():
            p2_ref[0:1, :, Cp:2 * Cp] = jnp.zeros((1, W, Cp), p2_ref.dtype)

        @pl.when(is_bot)
        def _():
            p2_ref[R1 - 1:R1, :, Cp:2 * Cp] = jnp.zeros((1, W, Cp), p2_ref.dtype)

        # remaining dx taps of the stage-2 row patch, built from the dx=1 block
        y1v = p2_ref[:, :, Cp:2 * Cp]                   # (R1, W, Cp), halo rows zeroed
        zc = jnp.zeros((R1, 1, Cp), p2_ref.dtype)
        p2_ref[:, 0:1, 0:Cp] = zc
        p2_ref[:, 1:W, 0:Cp] = y1v[:, 0:W - 1, :]
        p2_ref[:, 0:W - 1, 2 * Cp:3 * Cp] = y1v[:, 1:W, :]
        p2_ref[:, W - 1:W, 2 * Cp:3 * Cp] = zc

        # ---- stage 2: conv2 + folded BN2 + ReLU, lane-dense bf16 store --------
        acc2 = dy_accumulated_matmul(p2_ref, tile_h, w2_ref, K2)
        out = jnp.maximum(acc2 + b2_ref[...], 0.0)
        o_ref[...] = out.reshape(tile_h, W, Cp).astype(o_ref.dtype)

    return kernel


# ------------------------- VMEM budget / tiling choice ---------------------------

def _vmem_limit_bytes():
    """Generation-aware scoped-VMEM limit (v5e/v6e: 128 MiB, v7x: 64 MiB)."""
    try:
        cap = int(pltpu.get_tpu_info().vmem_capacity_bytes)
    except Exception:
        cap = 64 * 1024 * 1024
    return int(min(cap * 3 // 4, 100 * 1024 * 1024))


def _pick_tile_h(H, W, src_ch, Cp, vmem_budget):
    """Largest even tile_h dividing H whose working set fits the VMEM budget."""
    Csum = sum(src_ch)

    def est_bytes(th):
        bf = 2
        inputs = sum(2 * (th + 4) * W * c * bf for c in src_ch)   # double-buffered blocks
        output = 2 * th * W * Cp * bf                             # double-buffered out block
        weights = (3 * 3 * Csum * Cp + 3 * 3 * Cp * Cp) * bf + 2 * Cp * 4
        p1 = (th + 4) * W * 3 * Csum * bf                         # stage-1 dx patch
        p2 = (th + 2) * W * 3 * Cp * bf                           # stage-2 dx patch
        accs = ((th + 2) + th) * W * Cp * 4                       # f32 matmul accumulators
        return inputs + output + weights + p1 + p2 + accs

    cands = [t for t in range(min(H, 64), 1, -1) if H % t == 0 and t % 2 == 0]
    for t in cands:
        if est_bytes(t) <= vmem_budget * 8 // 10:
            return t
    return cands[-1] if cands else H


# ------------------------------- pallas_call wrapper -----------------------------

def fused_double_conv3x3_bn_relu(srcs_nhwc, w1mat, b1, w2mat, b2, *, tile_h=None):
    """Fused (conv3x3+BN+ReLU) x 2 over the channel-concat of `srcs_nhwc`.

    srcs_nhwc: list of NHWC bf16 arrays sharing (N, H, W); their channel concat
               is conv1's input (the concat itself is never materialized).
    w1mat:     (3, 3*sum(Cin_s), Cp) bf16  BN1-folded conv1 weights (per-dy layout)
    w2mat:     (3, 3*Cp, Cp) bf16          BN2-folded conv2 weights (per-dy layout)
    b1, b2:    (1, Cp) f32                 folded biases
    Returns (N, H, W, Cp) bfloat16.
    """
    N, H, W, _ = srcs_nhwc[0].shape
    Cp = w2mat.shape[-1]
    src_ch = tuple(int(s.shape[-1]) for s in srcs_nhwc)
    Csum = sum(src_ch)
    assert W % 8 == 0, "W must be a multiple of 8 (keeps in-kernel reshapes free)"
    assert H % 2 == 0, "H must be even"

    vmem_limit = _vmem_limit_bytes()
    if tile_h is None:
        tile_h = _pick_tile_h(H, W, src_ch, Cp, vmem_limit)
    tile_h = min(tile_h, H)
    assert H % tile_h == 0 and tile_h % 2 == 0, "tile_h must be even and divide H"
    n_tiles_h = H // tile_h
    th2 = tile_h // 2
    NH = N * H
    last_halo_blk = NH // 2 - 1

    flat = [s.reshape(NH, W, s.shape[-1]) for s in srcs_nhwc]
    kernel = _make_decoder_kernel(src_ch, tile_h, W, Cp, n_tiles_h)

    # Auto-pipelined (double-buffered) fetch of the row tile plus its 2-row halos.
    # Halo indices are clamped at the array edges; the kernel zeroes halo content
    # at image top/bottom, so clamped (wrong-image) rows are never used.
    def main_map(i):
        return (i, 0, 0)

    def top_map(i):
        return (jnp.maximum(i * th2 - 1, 0), 0, 0)

    def bot_map(i):
        return (jnp.minimum((i + 1) * th2, last_halo_blk), 0, 0)

    in_specs, call_args = [], []
    for s, c in zip(flat, src_ch):
        in_specs += [pl.BlockSpec((tile_h, W, c), main_map),
                     pl.BlockSpec((2, W, c), top_map),
                     pl.BlockSpec((2, W, c), bot_map)]
        call_args += [s, s, s]
    # Constant operands: whole-array, single-buffered VMEM residents.
    vmem_full = pl.BlockSpec(memory_space=pltpu.MemorySpace.VMEM)
    in_specs += [vmem_full, vmem_full, vmem_full, vmem_full]
    call_args += [w1mat, b1, w2mat, b2]

    scratch_shapes = [
        pltpu.VMEM((tile_h + 4, W, 3 * Csum), jnp.bfloat16),   # stage-1 dx row-patch
        pltpu.VMEM((tile_h + 2, W, 3 * Cp), jnp.bfloat16),     # stage-2 dx row-patch
    ]

    out = pl.pallas_call(
        kernel,
        out_shape=jax.ShapeDtypeStruct((NH, W, Cp), jnp.bfloat16),
        grid=(N * n_tiles_h,),
        in_specs=in_specs,
        out_specs=pl.BlockSpec((tile_h, W, Cp), lambda i: (i, 0, 0)),
        scratch_shapes=scratch_shapes,
        compiler_params=pltpu.CompilerParams(
            dimension_semantics=("parallel",),
            vmem_limit_bytes=vmem_limit,
        ),
    )(*call_args)
    return out.reshape(N, H, W, Cp)


# ------------------------------ wrapper / glue ----------------------------------

def _bilinear_matrix(out_size, in_size):
    """1-D bilinear resize matrix, align_corners=True (matches the spec)."""
    A = np.zeros((out_size, in_size), np.float32)
    if out_size == 1:
        A[0, 0] = 1.0
        return A
    scale = (in_size - 1) / (out_size - 1)
    for i in range(out_size):
        src = i * scale
        i0 = min(int(np.floor(src)), in_size - 1)
        i1 = min(i0 + 1, in_size - 1)
        w1 = src - i0
        A[i, i0] += 1.0 - w1
        A[i, i1] += w1
    return A


def _fold_bn(w_hwio, conv_b, gamma, beta, mean, var, eps=1e-5):
    scale = gamma / jnp.sqrt(var + eps)                  # (Cout,)
    return w_hwio * scale, beta + scale * (conv_b - mean)


def decoder_block_forward(x_nchw, skip_nchw, params, *, tile_h=None):
    """Matches DecoderBlock.forward (BatchNorm in inference mode). NCHW in/out."""
    out_channels = params["w1"].shape[-1]
    Cp = _round_up(out_channels, 128)                    # lane-dense output channels

    x_nhwc = jnp.transpose(x_nchw, (0, 2, 3, 1))
    if skip_nchw is not None:
        skip_nhwc = jnp.transpose(skip_nchw, (0, 2, 3, 1))
        Ah = jnp.asarray(_bilinear_matrix(skip_nhwc.shape[1], x_nhwc.shape[1]),
                         jnp.bfloat16)
        Aw = jnp.asarray(_bilinear_matrix(skip_nhwc.shape[2], x_nhwc.shape[2]),
                         jnp.bfloat16)
        # bilinear upsample (align_corners=True) == two small interpolation matmuls;
        # x_up is materialized in bf16 so the kernel-side HBM reads are half width.
        # TODO(synk): for the common 2x upsample, fold the interpolation into the
        # kernel's input fetch so x_up never round-trips HBM at all.
        x_up = jnp.einsum("Hh,nhwc,Ww->nHWc", Ah, x_nhwc.astype(jnp.bfloat16), Aw,
                          preferred_element_type=jnp.float32).astype(jnp.bfloat16)
        srcs = [x_up, skip_nhwc.astype(jnp.bfloat16)]    # conv1 channel order: [x_up | skip]
    else:
        srcs = [x_nhwc.astype(jnp.bfloat16)]

    # Fold BN1 into conv1 and lay the weights out per-dy (K = 3*Cin per tap),
    # matching the kernel's dx row-patch + dy-accumulated matmuls; the K axis is
    # split over the (virtual) channel concat of the sources.
    w1f, b1f = _fold_bn(params["w1"], params["b1"], params["g1"], params["be1"],
                        params["m1"], params["v1"])
    blocks, c0 = [], 0
    for s in srcs:
        c = s.shape[-1]
        blk = _pad_last(w1f[:, :, c0:c0 + c, :], Cp)            # (3, 3, c, Cp)
        blocks.append(blk.reshape(3, 3 * c, Cp))
        c0 += c
    w1mat = jnp.concatenate(blocks, axis=1).astype(jnp.bfloat16)   # (3, 3*Csum, Cp)
    b1p = _pad_last(b1f, Cp).reshape(1, Cp).astype(jnp.float32)

    w2f, b2f = _fold_bn(params["w2"], params["b2"], params["g2"], params["be2"],
                        params["m2"], params["v2"])
    w2p = _pad_last(w2f, Cp)                                           # pad Cout
    w2p = jnp.pad(w2p, ((0, 0), (0, 0), (0, Cp - w2p.shape[2]), (0, 0)))  # pad Cin
    w2mat = w2p.reshape(3, 3 * Cp, Cp).astype(jnp.bfloat16)            # (3, 3*Cp, Cp)
    b2p = _pad_last(b2f, Cp).reshape(1, Cp).astype(jnp.float32)

    y = fused_double_conv3x3_bn_relu(srcs, w1mat, b1p, w2mat, b2p, tile_h=tile_h)
    # drop lane padding + NHWC->NCHW + widen to f32 in one fused XLA copy
    return jnp.transpose(y[..., :out_channels], (0, 3, 1, 2)).astype(jnp.float32)


# --------------------------- params / pure-JAX reference -------------------------

def init_decoder_block_params(key, in_channels, skip_channels, out_channels):
    c1_in = in_channels + skip_channels
    ks = jax.random.split(key, 10)
    p = {}
    p["w1"] = 0.1 * jax.random.normal(ks[0], (3, 3, c1_in, out_channels), jnp.float32)
    p["b1"] = 0.1 * jax.random.normal(ks[1], (out_channels,), jnp.float32)
    p["g1"] = 1.0 + 0.1 * jax.random.normal(ks[2], (out_channels,), jnp.float32)
    p["be1"] = 0.1 * jax.random.normal(ks[3], (out_channels,), jnp.float32)
    p["m1"] = 0.1 * jax.random.normal(ks[4], (out_channels,), jnp.float32)
    p["v1"] = 1.0 + 0.1 * jnp.abs(jax.random.normal(ks[5], (out_channels,), jnp.float32))
    p["w2"] = 0.1 * jax.random.normal(ks[6], (3, 3, out_channels, out_channels), jnp.float32)
    p["b2"] = 0.1 * jax.random.normal(ks[7], (out_channels,), jnp.float32)
    p["g2"] = 1.0 + 0.1 * jax.random.normal(ks[8], (out_channels,), jnp.float32)
    p["be2"] = 0.1 * jax.random.normal(ks[9], (out_channels,), jnp.float32)
    p["m2"] = jnp.zeros((out_channels,), jnp.float32)
    p["v2"] = jnp.ones((out_channels,), jnp.float32)
    return p


def _reference_forward(x_nchw, skip_nchw, params, eps=1e-5):
    x_nhwc = jnp.transpose(x_nchw, (0, 2, 3, 1))
    if skip_nchw is not None:
        skip_nhwc = jnp.transpose(skip_nchw, (0, 2, 3, 1))
        Ah = jnp.asarray(_bilinear_matrix(skip_nhwc.shape[1], x_nhwc.shape[1]))
        Aw = jnp.asarray(_bilinear_matrix(skip_nhwc.shape[2], x_nhwc.shape[2]))
        x_up = jnp.einsum("Hh,nhwc,Ww->nHWc", Ah, x_nhwc, Aw)
        x_nhwc = jnp.concatenate([x_up, skip_nhwc], axis=-1)

    def conv_bn_relu(x, w, cb, g, be, m, v):
        y = lax.conv_general_dilated(x, w, (1, 1), "SAME",
                                     dimension_numbers=("NHWC", "HWIO", "NHWC"))
        y = y + cb
        y = g * (y - m) / jnp.sqrt(v + eps) + be
        return jnp.maximum(y, 0.0)

    y = conv_bn_relu(x_nhwc, params["w1"], params["b1"], params["g1"],
                     params["be1"], params["m1"], params["v1"])
    y = conv_bn_relu(y, params["w2"], params["b2"], params["g2"],
                     params["be2"], params["m2"], params["v2"])
    return jnp.transpose(y, (0, 3, 1, 2))


# ---------------------------------- main -----------------------------------------

if __name__ == "__main__":
    key = jax.random.PRNGKey(0)
    k_x, k_skip, k_p = jax.random.split(key, 3)

    in_channels, skip_channels, out_channels = 4, 4, 8
    N, h_lo, w_lo = 2, 8, 8      # low-res input
    H, W = 16, 16                # skip spatial size (upsample target)

    x = jax.random.normal(k_x, (N, in_channels, h_lo, w_lo), jnp.float32)        # NCHW
    skip = jax.random.normal(k_skip, (N, skip_channels, H, W), jnp.float32)      # NCHW
    params = init_decoder_block_params(k_p, in_channels, skip_channels, out_channels)

    out = decoder_block_forward(x, skip, params)        # tile_h chosen from VMEM budget
    out = jax.block_until_ready(out)
    assert out.shape == (N, out_channels, H, W)

    ref = jax.block_until_ready(_reference_forward(x, skip, params))
    # Kernel uses bf16 operands/output (f32 MXU accumulation); compare against the
    # f32 reference with a tolerance covering bf16 rounding.
    np.testing.assert_allclose(np.asarray(out), np.asarray(ref), rtol=5e-2, atol=5e-2)

    print("KERNEL_OK")
</pallas_src>

<mosaic_0001>
module attributes {stable_mosaic.version = 11 : i64} {
  func.func @kernel(%arg0: i32, %arg1: memref<16x16x4xbf16, #tpu.memory_space<vmem>>, %arg2: memref<2x16x4xbf16, #tpu.memory_space<vmem>>, %arg3: memref<2x16x4xbf16, #tpu.memory_space<vmem>>, %arg4: memref<16x16x4xbf16, #tpu.memory_space<vmem>>, %arg5: memref<2x16x4xbf16, #tpu.memory_space<vmem>>, %arg6: memref<2x16x4xbf16, #tpu.memory_space<vmem>>, %arg7: memref<3x24x128xbf16, #tpu.memory_space<vmem>>, %arg8: memref<1x128xf32, #tpu.memory_space<vmem>>, %arg9: memref<3x384x128xbf16, #tpu.memory_space<vmem>>, %arg10: memref<1x128xf32, #tpu.memory_space<vmem>>, %arg11: memref<16x16x128xbf16, #tpu.memory_space<vmem>>, %arg12: memref<20x16x24xbf16, #tpu.memory_space<vmem>>, %arg13: memref<18x16x384xbf16, #tpu.memory_space<vmem>>) attributes {dimension_semantics = [#tpu.dimension_semantics<parallel>], iteration_bounds = array<i64: 2>, scalar_prefetch = 0 : i64, scratch_operands = 2 : i64, tpu.core_type = #tpu.core_type<tc>, window_params = [{transform_indices = @transform_0, window_bounds = array<i64: 16, 16, 4>}, {transform_indices = @transform_1, window_bounds = array<i64: 2, 16, 4>}, {transform_indices = @transform_2, window_bounds = array<i64: 2, 16, 4>}, {transform_indices = @transform_3, window_bounds = array<i64: 16, 16, 4>}, {transform_indices = @transform_4, window_bounds = array<i64: 2, 16, 4>}, {transform_indices = @transform_5, window_bounds = array<i64: 2, 16, 4>}, {pipeline_mode = #tpu.pipeline_mode<synchronous>, transform_indices = @transform_6, window_bounds = array<i64: 3, 24, 128>}, {pipeline_mode = #tpu.pipeline_mode<synchronous>, transform_indices = @transform_7, window_bounds = array<i64: 1, 128>}, {pipeline_mode = #tpu.pipeline_mode<synchronous>, transform_indices = @transform_8, window_bounds = array<i64: 3, 384, 128>}, {pipeline_mode = #tpu.pipeline_mode<synchronous>, transform_indices = @transform_9, window_bounds = array<i64: 1, 128>}, {transform_indices = @transform_10, window_bounds = array<i64: 16, 16, 128>}]} {
    %c1_i32 = arith.constant 1 : i32
    %c0_i32 = arith.constant 0 : i32
    %0 = arith.cmpi eq, %c1_i32, %c0_i32 : i32
    %c1_i32_0 = arith.constant 1 : i32
    %1 = arith.select %0, %c1_i32_0, %c1_i32 : i32
    %2 = arith.remsi %arg0, %1 : i32
    %c0_i32_1 = arith.constant 0 : i32
    %3 = arith.cmpi ne, %2, %c0_i32_1 : i32
    %c0_i32_2 = arith.constant 0 : i32
    %4 = arith.cmpi slt, %2, %c0_i32_2 : i32
    %c0_i32_3 = arith.constant 0 : i32
    %5 = arith.cmpi slt, %1, %c0_i32_3 : i32
    %6 = arith.xori %4, %5 : i1
    %7 = arith.andi %6, %3 : i1
    %8 = arith.addi %2, %1 : i32
    %9 = arith.select %7, %8, %2 : i32
    %c0_i32_4 = arith.constant 0 : i32
    %10 = arith.cmpi eq, %9, %c0_i32_4 : i32
    %c0_i32_5 = arith.constant 0 : i32
    %11 = arith.cmpi eq, %9, %c0_i32_5 : i32
    %c0 = arith.constant 0 : index
    %c0_6 = arith.constant 0 : index
    %c0_7 = arith.constant 0 : index
    %12 = vector.load %arg2[%c0, %c0_6, %c0_7] : memref<2x16x4xbf16, #tpu.memory_space<vmem>>, vector<2x16x4xbf16>
    %cst = arith.constant 0.000000e+00 : bf16
    %13 = vector.broadcast %cst : bf16 to vector<2x16x4xbf16>
    %14 = arith.select %10, %13, %12 : vector<2x16x4xbf16>
    %c0_8 = arith.constant 0 : index
    %c0_9 = arith.constant 0 : index
    %c0_10 = arith.constant 0 : index
    %15 = vector.load %arg3[%c0_8, %c0_9, %c0_10] : memref<2x16x4xbf16, #tpu.memory_space<vmem>>, vector<2x16x4xbf16>
    %cst_11 = arith.constant 0.000000e+00 : bf16
    %16 = vector.broadcast %cst_11 : bf16 to vector<2x16x4xbf16>
    %17 = arith.select %11, %16, %15 : vector<2x16x4xbf16>
    %cst_12 = arith.constant 0.000000e+00 : bf16
    %18 = vector.broadcast %cst_12 : bf16 to vector<2x1x4xbf16>
    %c0_13 = arith.constant 0 : index
    %c0_14 = arith.constant 0 : index
    %c0_15 = arith.constant 0 : index
    %19 = vector.load %arg12[%c0_13, %c0_14, %c0_15] : memref<20x16x24xbf16, #tpu.memory_space<vmem>>, vector<2x1x4xbf16>
    tpu.vector_store %arg12[%c0_13, %c0_14, %c0_15], %18 {strides = array<i32>} : memref<20x16x24xbf16, #tpu.memory_space<vmem>>, vector<2x1x4xbf16>,
    %20 = vector.extract_strided_slice %14 {offsets = [0, 0, 0], sizes = [2, 15, 4], strides = [1, 1, 1]} : vector<2x16x4xbf16> to vector<2x15x4xbf16>
    %c0_16 = arith.constant 0 : index
    %c1 = arith.constant 1 : index
    %c0_17 = arith.constant 0 : index
    %21 = vector.load %arg12[%c0_16, %c1, %c0_17] : memref<20x16x24xbf16, #tpu.memory_space<vmem>>, vector<2x15x4xbf16>
    tpu.vector_store %arg12[%c0_16, %c1, %c0_17], %20 {strides = array<i32>} : memref<20x16x24xbf16, #tpu.memory_space<vmem>>, vector<2x15x4xbf16>,
    %c0_18 = arith.constant 0 : index
    %c0_19 = arith.constant 0 : index
    %c4 = arith.constant 4 : index
    %22 = vector.load %arg12[%c0_18, %c0_19, %c4] : memref<20x16x24xbf16, #tpu.memory_space<vmem>>, vector<2x16x4xbf16>
    tpu.vector_store %arg12[%c0_18, %c0_19, %c4], %14 {strides = array<i32>} : memref<20x16x24xbf16, #tpu.memory_space<vmem>>, vector<2x16x4xbf16>,
    %23 = vector.extract_strided_slice %14 {offsets = [0, 1, 0], sizes = [2, 15, 4], strides = [1, 1, 1]} : vector<2x16x4xbf16> to vector<2x15x4xbf16>
    %c0_20 = arith.constant 0 : index
    %c0_21 = arith.constant 0 : index
    %c8 = arith.constant 8 : index
    %24 = vector.load %arg12[%c0_20, %c0_21, %c8] : memref<20x16x24xbf16, #tpu.memory_space<vmem>>, vector<2x15x4xbf16>
    tpu.vector_store %arg12[%c0_20, %c0_21, %c8], %23 {strides = array<i32>} : memref<20x16x24xbf16, #tpu.memory_space<vmem>>, vector<2x15x4xbf16>,
    %c0_22 = arith.constant 0 : index
    %c15 = arith.constant 15 : index
    %c8_23 = arith.constant 8 : index
    %25 = vector.load %arg12[%c0_22, %c15, %c8_23] : memref<20x16x24xbf16, #tpu.memory_space<vmem>>, vector<2x1x4xbf16>
    tpu.vector_store %arg12[%c0_22, %c15, %c8_23], %18 {strides = array<i32>} : memref<20x16x24xbf16, #tpu.memory_space<vmem>>, vector<2x1x4xbf16>,
    %c0_24 = arith.constant 0 : index
    %c0_25 = arith.constant 0 : index
    %c0_26 = arith.constant 0 : index
    %26 = vector.load %arg1[%c0_24, %c0_25, %c0_26] : memref<16x16x4xbf16, #tpu.memory_space<vmem>>, vector<16x16x4xbf16>
    %cst_27 = arith.constant 0.000000e+00 : bf16
    %27 = vector.broadcast %cst_27 : bf16 to vector<16x1x4xbf16>
    %c2 = arith.constant 2 : index
    %c0_28 = arith.constant 0 : index
    %c0_29 = arith.constant 0 : index
    %28 = vector.load %arg12[%c2, %c0_28, %c0_29] : memref<20x16x24xbf16, #tpu.memory_space<vmem>>, vector<16x1x4xbf16>
    tpu.vector_store %arg12[%c2, %c0_28, %c0_29], %27 {strides = array<i32>} : memref<20x16x24xbf16, #tpu.memory_space<vmem>>, vector<16x1x4xbf16>,
    %29 = vector.extract_strided_slice %26 {offsets = [0, 0, 0], sizes = [16, 15, 4], strides = [1, 1, 1]} : vector<16x16x4xbf16> to vector<16x15x4xbf16>
    %c2_30 = arith.constant 2 : index
    %c1_31 = arith.constant 1 : index
    %c0_32 = arith.constant 0 : index
    %30 = vector.load %arg12[%c2_30, %c1_31, %c0_32] : memref<20x16x24xbf16, #tpu.memory_space<vmem>>, vector<16x15x4xbf16>
    tpu.vector_store %arg12[%c2_30, %c1_31, %c0_32], %29 {strides = array<i32>} : memref<20x16x24xbf16, #tpu.memory_space<vmem>>, vector<16x15x4xbf16>,
    %c2_33 = arith.constant 2 : index
    %c0_34 = arith.constant 0 : index
    %c4_35 = arith.constant 4 : index
    %31 = vector.load %arg12[%c2_33, %c0_34, %c4_35] : memref<20x16x24xbf16, #tpu.memory_space<vmem>>, vector<16x16x4xbf16>
    tpu.vector_store %arg12[%c2_33, %c0_34, %c4_35], %26 {strides = array<i32>} : memref<20x16x24xbf16, #tpu.memory_space<vmem>>, vector<16x16x4xbf16>,
    %32 = vector.extract_strided_slice %26 {offsets = [0, 1, 0], sizes = [16, 15, 4], strides = [1, 1, 1]} : vector<16x16x4xbf16> to vector<16x15x4xbf16>
    %c2_36 = arith.constant 2 : index
    %c0_37 = arith.constant 0 : index
    %c8_38 = arith.constant 8 : index
    %33 = vector.load %arg12[%c2_36, %c0_37, %c8_38] : memref<20x16x24xbf16, #tpu.memory_space<vmem>>, vector<16x15x4xbf16>
    tpu.vector_store %arg12[%c2_36, %c0_37, %c8_38], %32 {strides = array<i32>} : memref<20x16x24xbf16, #tpu.memory_space<vmem>>, vector<16x15x4xbf16>,
    %c2_39 = arith.constant 2 : index
    %c15_40 = arith.constant 15 : index
    %c8_41 = arith.constant 8 : index
    %34 = vector.load %arg12[%c2_39, %c15_40, %c8_41] : memref<20x16x24xbf16, #tpu.memory_space<vmem>>, vector<16x1x4xbf16>
    tpu.vector_store %arg12[%c2_39, %c15_40, %c8_41], %27 {strides = array<i32>} : memref<20x16x24xbf16, #tpu.memory_space<vmem>>, vector<16x1x4xbf16>,
    %cst_42 = arith.constant 0.000000e+00 : bf16
    %35 = vector.broadcast %cst_42 : bf16 to vector<2x1x4xbf16>
    %c18 = arith.constant 18 : index
    %c0_43 = arith.constant 0 : index
    %c0_44 = arith.constant 0 : index
    %36 = vector.load %arg12[%c18, %c0_43, %c0_44] : memref<20x16x24xbf16, #tpu.memory_space<vmem>>, vector<2x1x4xbf16>
    tpu.vector_store %arg12[%c18, %c0_43, %c0_44], %35 {strides = array<i32>} : memref<20x16x24xbf16, #tpu.memory_space<vmem>>, vector<2x1x4xbf16>,
    %37 = vector.extract_strided_slice %17 {offsets = [0, 0, 0], sizes = [2, 15, 4], strides = [1, 1, 1]} : vector<2x16x4xbf16> to vector<2x15x4xbf16>
    %c18_45 = arith.constant 18 : index
    %c1_46 = arith.constant 1 : index
    %c0_47 = arith.constant 0 : index
    %38 = vector.load %arg12[%c18_45, %c1_46, %c0_47] : memref<20x16x24xbf16, #tpu.memory_space<vmem>>, vector<2x15x4xbf16>
    tpu.vector_store %arg12[%c18_45, %c1_46, %c0_47], %37 {strides = array<i32>} : memref<20x16x24xbf16, #tpu.memory_space<vmem>>, vector<2x15x4xbf16>,
    %c18_48 = arith.constant 18 : index
    %c0_49 = arith.constant 0 : index
    %c4_50 = arith.constant 4 : index
    %39 = vector.load %arg12[%c18_48, %c0_49, %c4_50] : memref<20x16x24xbf16, #tpu.memory_space<vmem>>, vector<2x16x4xbf16>
    tpu.vector_store %arg12[%c18_48, %c0_49, %c4_50], %17 {strides = array<i32>} : memref<20x16x24xbf16, #tpu.memory_space<vmem>>, vector<2x16x4xbf16>,
    %40 = vector.extract_strided_slice %17 {offsets = [0, 1, 0], sizes = [2, 15, 4], strides = [1, 1, 1]} : vector<2x16x4xbf16> to vector<2x15x4xbf16>
    %c18_51 = arith.constant 18 : index
    %c0_52 = arith.constant 0 : index
    %c8_53 = arith.constant 8 : index
    %41 = vector.load %arg12[%c18_51, %c0_52, %c8_53] : memref<20x16x24xbf16, #tpu.memory_space<vmem>>, vector<2x15x4xbf16>
    tpu.vector_store %arg12[%c18_51, %c0_52, %c8_53], %40 {strides = array<i32>} : memref<20x16x24xbf16, #tpu.memory_space<vmem>>, vector<2x15x4xbf16>,
    %c18_54 = arith.constant 18 : index
    %c15_55 = arith.constant 15 : index
    %c8_56 = arith.constant 8 : index
    %42 = vector.load %arg12[%c18_54, %c15_55, %c8_56] : memref<20x16x24xbf16, #tpu.memory_space<vmem>>, vector<2x1x4xbf16>
    tpu.vector_store %arg12[%c18_54, %c15_55, %c8_56], %35 {strides = array<i32>} : memref<20x16x24xbf16, #tpu.memory_space<vmem>>, vector<2x1x4xbf16>,
    %c0_57 = arith.constant 0 : index
    %c0_58 = arith.constant 0 : index
    %c0_59 = arith.constant 0 : index
    %43 = vector.load %arg5[%c0_57, %c0_58, %c0_59] : memref<2x16x4xbf16, #tpu.memory_space<vmem>>, vector<2x16x4xbf16>
    %cst_60 = arith.constant 0.000000e+00 : bf16
    %44 = vector.broadcast %cst_60 : bf16 to vector<2x16x4xbf16>
    %45 = arith.select %10, %44, %43 : vector<2x16x4xbf16>
    %c0_61 = arith.constant 0 : index
    %c0_62 = arith.constant 0 : index
    %c0_63 = arith.constant 0 : index
    %46 = vector.load %arg6[%c0_61, %c0_62, %c0_63] : memref<2x16x4xbf16, #tpu.memory_space<vmem>>, vector<2x16x4xbf16>
    %cst_64 = arith.constant 0.000000e+00 : bf16
    %47 = vector.broadcast %cst_64 : bf16 to vector<2x16x4xbf16>
    %48 = arith.select %11, %47, %46 : vector<2x16x4xbf16>
    %cst_65 = arith.constant 0.000000e+00 : bf16
    %49 = vector.broadcast %cst_65 : bf16 to vector<2x1x4xbf16>
    %c0_66 = arith.constant 0 : index
    %c0_67 = arith.constant 0 : index
    %c12 = arith.constant 12 : index
    %50 = vector.load %arg12[%c0_66, %c0_67, %c12] : memref<20x16x24xbf16, #tpu.memory_space<vmem>>, vector<2x1x4xbf16>
    tpu.vector_store %arg12[%c0_66, %c0_67, %c12], %49 {strides = array<i32>} : memref<20x16x24xbf16, #tpu.memory_space<vmem>>, vector<2x1x4xbf16>,
    %51 = vector.extract_strided_slice %45 {offsets = [0, 0, 0], sizes = [2, 15, 4], strides = [1, 1, 1]} : vector<2x16x4xbf16> to vector<2x15x4xbf16>
    %c0_68 = arith.constant 0 : index
    %c1_69 = arith.constant 1 : index
    %c12_70 = arith.constant 12 : index
    %52 = vector.load %arg12[%c0_68, %c1_69, %c12_70] : memref<20x16x24xbf16, #tpu.memory_space<vmem>>, vector<2x15x4xbf16>
    tpu.vector_store %arg12[%c0_68, %c1_69, %c12_70], %51 {strides = array<i32>} : memref<20x16x24xbf16, #tpu.memory_space<vmem>>, vector<2x15x4xbf16>,
    %c0_71 = arith.constant 0 : index
    %c0_72 = arith.constant 0 : index
    %c16 = arith.constant 16 : index
    %53 = vector.load %arg12[%c0_71, %c0_72, %c16] : memref<20x16x24xbf16, #tpu.memory_space<vmem>>, vector<2x16x4xbf16>
    tpu.vector_store %arg12[%c0_71, %c0_72, %c16], %45 {strides = array<i32>} : memref<20x16x24xbf16, #tpu.memory_space<vmem>>, vector<2x16x4xbf16>,
    %54 = vector.extract_strided_slice %45 {offsets = [0, 1, 0], sizes = [2, 15, 4], strides = [1, 1, 1]} : vector<2x16x4xbf16> to vector<2x15x4xbf16>
    %c0_73 = arith.constant 0 : index
    %c0_74 = arith.constant 0 : index
    %c20 = arith.constant 20 : index
    %55 = vector.load %arg12[%c0_73, %c0_74, %c20] : memref<20x16x24xbf16, #tpu.memory_space<vmem>>, vector<2x15x4xbf16>
    tpu.vector_store %arg12[%c0_73, %c0_74, %c20], %54 {strides = array<i32>} : memref<20x16x24xbf16, #tpu.memory_space<vmem>>, vector<2x15x4xbf16>,
    %c0_75 = arith.constant 0 : index
    %c15_76 = arith.constant 15 : index
    %c20_77 = arith.constant 20 : index
    %56 = vector.load %arg12[%c0_75, %c15_76, %c20_77] : memref<20x16x24xbf16, #tpu.memory_space<vmem>>, vector<2x1x4xbf16>
    tpu.vector_store %arg12[%c0_75, %c15_76, %c20_77], %49 {strides = array<i32>} : memref<20x16x24xbf16, #tpu.memory_space<vmem>>, vector<2x1x4xbf16>,
    %c0_78 = arith.constant 0 : index
    %c0_79 = arith.constant 0 : index
    %c0_80 = arith.constant 0 : index
    %57 = vector.load %arg4[%c0_78, %c0_79, %c0_80] : memref<16x16x4xbf16, #tpu.memory_space<vmem>>, vector<16x16x4xbf16>
    %cst_81 = arith.constant 0.000000e+00 : bf16
    %58 = vector.broadcast %cst_81 : bf16 to vector<16x1x4xbf16>
    %c2_82 = arith.constant 2 : index
    %c0_83 = arith.constant 0 : index
    %c12_84 = arith.constant 12 : index
    %59 = vector.load %arg12[%c2_82, %c0_83, %c12_84] : memref<20x16x24xbf16, #tpu.memory_space<vmem>>, vector<16x1x4xbf16>
    tpu.vector_store %arg12[%c2_82, %c0_83, %c12_84], %58 {strides = array<i32>} : memref<20x16x24xbf16, #tpu.memory_space<vmem>>, vector<16x1x4xbf16>,
    %60 = vector.extract_strided_slice %57 {offsets = [0, 0, 0], sizes = [16, 15, 4], strides = [1, 1, 1]} : vector<16x16x4xbf16> to vector<16x15x4xbf16>
    %c2_85 = arith.constant 2 : index
    %c1_86 = arith.constant 1 : index
    %c12_87 = arith.constant 12 : index
    %61 = vector.load %arg12[%c2_85, %c1_86, %c12_87] : memref<20x16x24xbf16, #tpu.memory_space<vmem>>, vector<16x15x4xbf16>
    tpu.vector_store %arg12[%c2_85, %c1_86, %c12_87], %60 {strides = array<i32>} : memref<20x16x24xbf16, #tpu.memory_space<vmem>>, vector<16x15x4xbf16>,
    %c2_88 = arith.constant 2 : index
    %c0_89 = arith.constant 0 : index
    %c16_90 = arith.constant 16 : index
    %62 = vector.load %arg12[%c2_88, %c0_89, %c16_90] : memref<20x16x24xbf16, #tpu.memory_space<vmem>>, vector<16x16x4xbf16>
    tpu.vector_store %arg12[%c2_88, %c0_89, %c16_90], %57 {strides = array<i32>} : memref<20x16x24xbf16, #tpu.memory_space<vmem>>, vector<16x16x4xbf16>,
    %63 = vector.extract_strided_slice %57 {offsets = [0, 1, 0], sizes = [16, 15, 4], strides = [1, 1, 1]} : vector<16x16x4xbf16> to vector<16x15x4xbf16>
    %c2_91 = arith.constant 2 : index
    %c0_92 = arith.constant 0 : index
    %c20_93 = arith.constant 20 : index
    %64 = vector.load %arg12[%c2_91, %c0_92, %c20_93] : memref<20x16x24xbf16, #tpu.memory_space<vmem>>, vector<16x15x4xbf16>
    tpu.vector_store %arg12[%c2_91, %c0_92, %c20_93], %63 {strides = array<i32>} : memref<20x16x24xbf16, #tpu.memory_space<vmem>>, vector<16x15x4xbf16>,
    %c2_94 = arith.constant 2 : index
    %c15_95 = arith.constant 15 : index
    %c20_96 = arith.constant 20 : index
    %65 = vector.load %arg12[%c2_94, %c15_95, %c20_96] : memref<20x16x24xbf16, #tpu.memory_space<vmem>>, vector<16x1x4xbf16>
    tpu.vector_store %arg12[%c2_94, %c15_95, %c20_96], %58 {strides = array<i32>} : memref<20x16x24xbf16, #tpu.memory_space<vmem>>, vector<16x1x4xbf16>,
    %cst_97 = arith.constant 0.000000e+00 : bf16
    %66 = vector.broadcast %cst_97 : bf16 to vector<2x1x4xbf16>
    %c18_98 = arith.constant 18 : index
    %c0_99 = arith.constant 0 : index
    %c12_100 = arith.constant 12 : index
    %67 = vector.load %arg12[%c18_98, %c0_99, %c12_100] : memref<20x16x24xbf16, #tpu.memory_space<vmem>>, vector<2x1x4xbf16>
    tpu.vector_store %arg12[%c18_98, %c0_99, %c12_100], %66 {strides = array<i32>} : memref<20x16x24xbf16, #tpu.memory_space<vmem>>, vector<2x1x4xbf16>,
    %68 = vector.extract_strided_slice %48 {offsets = [0, 0, 0], sizes = [2, 15, 4], strides = [1, 1, 1]} : vector<2x16x4xbf16> to vector<2x15x4xbf16>
    %c18_101 = arith.constant 18 : index
    %c1_102 = arith.constant 1 : index
    %c12_103 = arith.constant 12 : index
    %69 = vector.load %arg12[%c18_101, %c1_102, %c12_103] : memref<20x16x24xbf16, #tpu.memory_space<vmem>>, vector<2x15x4xbf16>
    tpu.vector_store %arg12[%c18_101, %c1_102, %c12_103], %68 {strides = array<i32>} : memref<20x16x24xbf16, #tpu.memory_space<vmem>>, vector<2x15x4xbf16>,
    %c18_104 = arith.constant 18 : index
    %c0_105 = arith.constant 0 : index
    %c16_106 = arith.constant 16 : index
    %70 = vector.load %arg12[%c18_104, %c0_105, %c16_106] : memref<20x16x24xbf16, #tpu.memory_space<vmem>>, vector<2x16x4xbf16>
    tpu.vector_store %arg12[%c18_104, %c0_105, %c16_106], %48 {strides = array<i32>} : memref<20x16x24xbf16, #tpu.memory_space<vmem>>, vector<2x16x4xbf16>,
    %71 = vector.extract_strided_slice %48 {offsets = [0, 1, 0], sizes = [2, 15, 4], strides = [1, 1, 1]} : vector<2x16x4xbf16> to vector<2x15x4xbf16>
    %c18_107 = arith.constant 18 : index
    %c0_108 = arith.constant 0 : index
    %c20_109 = arith.constant 20 : index
    %72 = vector.load %arg12[%c18_107, %c0_108, %c20_109] : memref<20x16x24xbf16, #tpu.memory_space<vmem>>, vector<2x15x4xbf16>
    tpu.vector_store %arg12[%c18_107, %c0_108, %c20_109], %71 {strides = array<i32>} : memref<20x16x24xbf16, #tpu.memory_space<vmem>>, vector<2x15x4xbf16>,
    %c18_110 = arith.constant 18 : index
    %c15_111 = arith.constant 15 : index
    %c20_112 = arith.constant 20 : index
    %73 = vector.load %arg12[%c18_110, %c15_111, %c20_112] : memref<20x16x24xbf16, #tpu.memory_space<vmem>>, vector<2x1x4xbf16>
    tpu.vector_store %arg12[%c18_110, %c15_111, %c20_112], %66 {strides = array<i32>} : memref<20x16x24xbf16, #tpu.memory_space<vmem>>, vector<2x1x4xbf16>,
    %c0_113 = arith.constant 0 : index
    %c0_114 = arith.constant 0 : index
    %c0_115 = arith.constant 0 : index
    %74 = vector.load %arg12[%c0_113, %c0_114, %c0_115] : memref<20x16x24xbf16, #tpu.memory_space<vmem>>, vector<18x16x24xbf16>
    %75 = vector.shape_cast %74 : vector<18x16x24xbf16> to vector<288x24xbf16>
    %c0_116 = arith.constant 0 : index
    %c0_117 = arith.constant 0 : index
    %c0_118 = arith.constant 0 : index
    %76 = vector.load %arg7[%c0_116, %c0_117, %c0_118] : memref<3x24x128xbf16, #tpu.memory_space<vmem>>, vector<1x24x128xbf16>
    %77 = vector.shape_cast %76 : vector<1x24x128xbf16> to vector<24x128xbf16>
    %cst_119 = arith.constant dense<0.000000e+00> : vector<288x128xf32>
    %78 = tpu.matmul %75, %77, %cst_119 {dimension_numbers = #tpu.dot_dimension_numbers<[1], [0], [0], [1], [0, 0, 1, 1], [], []>} : vector<288x24xbf16>, vector<24x128xbf16>, vector<288x128xf32> -> vector<288x128xf32>
    %c1_120 = arith.constant 1 : index
    %c0_121 = arith.constant 0 : index
    %c0_122 = arith.constant 0 : index
    %79 = vector.load %arg12[%c1_120, %c0_121, %c0_122] : memref<20x16x24xbf16, #tpu.memory_space<vmem>>, vector<18x16x24xbf16>
    %80 = vector.shape_cast %79 : vector<18x16x24xbf16> to vector<288x24xbf16>
    %c1_123 = arith.constant 1 : index
    %c0_124 = arith.constant 0 : index
    %c0_125 = arith.constant 0 : index
    %81 = vector.load %arg7[%c1_123, %c0_124, %c0_125] : memref<3x24x128xbf16, #tpu.memory_space<vmem>>, vector<1x24x128xbf16>
    %82 = vector.shape_cast %81 : vector<1x24x128xbf16> to vector<24x128xbf16>
    %cst_126 = arith.constant dense<0.000000e+00> : vector<288x128xf32>
    %83 = tpu.matmul %80, %82, %cst_126 {dimension_numbers = #tpu.dot_dimension_numbers<[1], [0], [0], [1], [0, 0, 1, 1], [], []>} : vector<288x24xbf16>, vector<24x128xbf16>, vector<288x128xf32> -> vector<288x128xf32>
    %84 = arith.addf %78, %83 : vector<288x128xf32>
    %c2_127 = arith.constant 2 : index
    %c0_128 = arith.constant 0 : index
    %c0_129 = arith.constant 0 : index
    %85 = vector.load %arg12[%c2_127, %c0_128, %c0_129] : memref<20x16x24xbf16, #tpu.memory_space<vmem>>, vector<18x16x24xbf16>
    %86 = vector.shape_cast %85 : vector<18x16x24xbf16> to vector<288x24xbf16>
    %c2_130 = arith.constant 2 : index
    %c0_131 = arith.constant 0 : index
    %c0_132 = arith.constant 0 : index
    %87 = vector.load %arg7[%c2_130, %c0_131, %c0_132] : memref<3x24x128xbf16, #tpu.memory_space<vmem>>, vector<1x24x128xbf16>
    %88 = vector.shape_cast %87 : vector<1x24x128xbf16> to vector<24x128xbf16>
    %cst_133 = arith.constant dense<0.000000e+00> : vector<288x128xf32>
    %89 = tpu.matmul %86, %88, %cst_133 {dimension_numbers = #tpu.dot_dimension_numbers<[1], [0], [0], [1], [0, 0, 1, 1], [], []>} : vector<288x24xbf16>, vector<24x128xbf16>, vector<288x128xf32> -> vector<288x128xf32>
    %90 = arith.addf %84, %89 : vector<288x128xf32>
    %c0_134 = arith.constant 0 : index
    %c0_135 = arith.constant 0 : index
    %91 = vector.load %arg8[%c0_134, %c0_135] : memref<1x128xf32, #tpu.memory_space<vmem>>, vector<1x128xf32>
    %92 = vector.broadcast %91 : vector<1x128xf32> to vector<288x128xf32>
    %93 = arith.addf %90, %92 : vector<288x128xf32>
    %cst_136 = arith.constant 0.000000e+00 : f32
    %94 = vector.broadcast %cst_136 : f32 to vector<288x128xf32>
    %95 = arith.maximumf %93, %94 : vector<288x128xf32>
    %96 = vector.shape_cast %95 : vector<288x128xf32> to vector<18x16x128xf32>
    %97 = arith.truncf %96 : vector<18x16x128xf32> to vector<18x16x128xbf16>
    %c0_137 = arith.constant 0 : index
    %c0_138 = arith.constant 0 : index
    %c128 = arith.constant 128 : index
    %98 = vector.load %arg13[%c0_137, %c0_138, %c128] : memref<18x16x384xbf16, #tpu.memory_space<vmem>>, vector<18x16x128xbf16>
    tpu.vector_store %arg13[%c0_137, %c0_138, %c128], %97 {strides = array<i32>} : memref<18x16x384xbf16, #tpu.memory_space<vmem>>, vector<18x16x128xbf16>,
    %99 = arith.extui %10 : i1 to i32
    %c0_i32_139 = arith.constant 0 : i32
    %100 = arith.cmpi ne, %99, %c0_i32_139 : i32
    scf.if %100 {
      %cst_183 = arith.constant 0.000000e+00 : bf16
      %136 = vector.broadcast %cst_183 : bf16 to vector<1x16x128xbf16>
      %c0_184 = arith.constant 0 : index
      %c0_185 = arith.constant 0 : index
      %c128_186 = arith.constant 128 : index
      %137 = vector.load %arg13[%c0_184, %c0_185, %c128_186] : memref<18x16x384xbf16, #tpu.memory_space<vmem>>, vector<1x16x128xbf16>
      tpu.vector_store %arg13[%c0_184, %c0_185, %c128_186], %136 {strides = array<i32>} : memref<18x16x384xbf16, #tpu.memory_space<vmem>>, vector<1x16x128xbf16>,
    } else {
    }
    %101 = arith.extui %11 : i1 to i32
    %c0_i32_140 = arith.constant 0 : i32
    %102 = arith.cmpi ne, %101, %c0_i32_140 : i32
    scf.if %102 {
      %cst_183 = arith.constant 0.000000e+00 : bf16
      %136 = vector.broadcast %cst_183 : bf16 to vector<1x16x128xbf16>
      %c17 = arith.constant 17 : index
      %c0_184 = arith.constant 0 : index
      %c128_185 = arith.constant 128 : index
      %137 = vector.load %arg13[%c17, %c0_184, %c128_185] : memref<18x16x384xbf16, #tpu.memory_space<vmem>>, vector<1x16x128xbf16>
      tpu.vector_store %arg13[%c17, %c0_184, %c128_185], %136 {strides = array<i32>} : memref<18x16x384xbf16, #tpu.memory_space<vmem>>, vector<1x16x128xbf16>,
    } else {
    }
    %c0_141 = arith.constant 0 : index
    %c0_142 = arith.constant 0 : index
    %c128_143 = arith.constant 128 : index
    %103 = vector.load %arg13[%c0_141, %c0_142, %c128_143] : memref<18x16x384xbf16, #tpu.memory_space<vmem>>, vector<18x16x128xbf16>
    %cst_144 = arith.constant 0.000000e+00 : bf16
    %104 = vector.broadcast %cst_144 : bf16 to vector<18x1x128xbf16>
    %c0_145 = arith.constant 0 : index
    %c0_146 = arith.constant 0 : index
    %c0_147 = arith.constant 0 : index
    %105 = vector.load %arg13[%c0_145, %c0_146, %c0_147] : memref<18x16x384xbf16, #tpu.memory_space<vmem>>, vector<18x1x128xbf16>
    tpu.vector_store %arg13[%c0_145, %c0_146, %c0_147], %104 {strides = array<i32>} : memref<18x16x384xbf16, #tpu.memory_space<vmem>>, vector<18x1x128xbf16>,
    %106 = vector.extract_strided_slice %103 {offsets = [0, 0, 0], sizes = [18, 15, 128], strides = [1, 1, 1]} : vector<18x16x128xbf16> to vector<18x15x128xbf16>
    %c0_148 = arith.constant 0 : index
    %c1_149 = arith.constant 1 : index
    %c0_150 = arith.constant 0 : index
    %107 = vector.load %arg13[%c0_148, %c1_149, %c0_150] : memref<18x16x384xbf16, #tpu.memory_space<vmem>>, vector<18x15x128xbf16>
    tpu.vector_store %arg13[%c0_148, %c1_149, %c0_150], %106 {strides = array<i32>} : memref<18x16x384xbf16, #tpu.memory_space<vmem>>, vector<18x15x128xbf16>,
    %108 = vector.extract_strided_slice %103 {offsets = [0, 1, 0], sizes = [18, 15, 128], strides = [1, 1, 1]} : vector<18x16x128xbf16> to vector<18x15x128xbf16>
    %c0_151 = arith.constant 0 : index
    %c0_152 = arith.constant 0 : index
    %c256 = arith.constant 256 : index
    %109 = vector.load %arg13[%c0_151, %c0_152, %c256] : memref<18x16x384xbf16, #tpu.memory_space<vmem>>, vector<18x15x128xbf16>
    tpu.vector_store %arg13[%c0_151, %c0_152, %c256], %108 {strides = array<i32>} : memref<18x16x384xbf16, #tpu.memory_space<vmem>>, vector<18x15x128xbf16>,
    %c0_153 = arith.constant 0 : index
    %c15_154 = arith.constant 15 : index
    %c256_155 = arith.constant 256 : index
    %110 = vector.load %arg13[%c0_153, %c15_154, %c256_155] : memref<18x16x384xbf16, #tpu.memory_space<vmem>>, vector<18x1x128xbf16>
    tpu.vector_store %arg13[%c0_153, %c15_154, %c256_155], %104 {strides = array<i32>} : memref<18x16x384xbf16, #tpu.memory_space<vmem>>, vector<18x1x128xbf16>,
    %c0_156 = arith.constant 0 : index
    %c0_157 = arith.constant 0 : index
    %c0_158 = arith.constant 0 : index
    %111 = vector.load %arg13[%c0_156, %c0_157, %c0_158] : memref<18x16x384xbf16, #tpu.memory_space<vmem>>, vector<16x16x384xbf16>
    %112 = vector.shape_cast %111 : vector<16x16x384xbf16> to vector<256x384xbf16>
    %c0_159 = arith.constant 0 : index
    %c0_160 = arith.constant 0 : index
    %c0_161 = arith.constant 0 : index
    %113 = vector.load %arg9[%c0_159, %c0_160, %c0_161] : memref<3x384x128xbf16, #tpu.memory_space<vmem>>, vector<1x384x128xbf16>
    %114 = vector.shape_cast %113 : vector<1x384x128xbf16> to vector<384x128xbf16>
    %cst_162 = arith.constant dense<0.000000e+00> : vector<256x128xf32>
    %115 = tpu.matmul %112, %114, %cst_162 {dimension_numbers = #tpu.dot_dimension_numbers<[1], [0], [0], [1], [0, 0, 1, 1], [], []>} : vector<256x384xbf16>, vector<384x128xbf16>, vector<256x128xf32> -> vector<256x128xf32>
    %c1_163 = arith.constant 1 : index
    %c0_164 = arith.constant 0 : index
    %c0_165 = arith.constant 0 : index
    %116 = vector.load %arg13[%c1_163, %c0_164, %c0_165] : memref<18x16x384xbf16, #tpu.memory_space<vmem>>, vector<16x16x384xbf16>
    %117 = vector.shape_cast %116 : vector<16x16x384xbf16> to vector<256x384xbf16>
    %c1_166 = arith.constant 1 : index
    %c0_167 = arith.constant 0 : index
    %c0_168 = arith.constant 0 : index
    %118 = vector.load %arg9[%c1_166, %c0_167, %c0_168] : memref<3x384x128xbf16, #tpu.memory_space<vmem>>, vector<1x384x128xbf16>
    %119 = vector.shape_cast %118 : vector<1x384x128xbf16> to vector<384x128xbf16>
    %cst_169 = arith.constant dense<0.000000e+00> : vector<256x128xf32>
    %120 = tpu.matmul %117, %119, %cst_169 {dimension_numbers = #tpu.dot_dimension_numbers<[1], [0], [0], [1], [0, 0, 1, 1], [], []>} : vector<256x384xbf16>, vector<384x128xbf16>, vector<256x128xf32> -> vector<256x128xf32>
    %121 = arith.addf %115, %120 : vector<256x128xf32>
    %c2_170 = arith.constant 2 : index
    %c0_171 = arith.constant 0 : index
    %c0_172 = arith.constant 0 : index
    %122 = vector.load %arg13[%c2_170, %c0_171, %c0_172] : memref<18x16x384xbf16, #tpu.memory_space<vmem>>, vector<16x16x384xbf16>
    %123 = vector.shape_cast %122 : vector<16x16x384xbf16> to vector<256x384xbf16>
    %c2_173 = arith.constant 2 : index
    %c0_174 = arith.constant 0 : index
    %c0_175 = arith.constant 0 : index
    %124 = vector.load %arg9[%c2_173, %c0_174, %c0_175] : memref<3x384x128xbf16, #tpu.memory_space<vmem>>, vector<1x384x128xbf16>
    %125 = vector.shape_cast %124 : vector<1x384x128xbf16> to vector<384x128xbf16>
    %cst_176 = arith.constant dense<0.000000e+00> : vector<256x128xf32>
    %126 = tpu.matmul %123, %125, %cst_176 {dimension_numbers = #tpu.dot_dimension_numbers<[1], [0], [0], [1], [0, 0, 1, 1], [], []>} : vector<256x384xbf16>, vector<384x128xbf16>, vector<256x128xf32> -> vector<256x128xf32>
    %127 = arith.addf %121, %126 : vector<256x128xf32>
    %c0_177 = arith.constant 0 : index
    %c0_178 = arith.constant 0 : index
    %128 = vector.load %arg10[%c0_177, %c0_178] : memref<1x128xf32, #tpu.memory_space<vmem>>, vector<1x128xf32>
    %129 = vector.broadcast %128 : vector<1x128xf32> to vector<256x128xf32>
    %130 = arith.addf %127, %129 : vector<256x128xf32>
    %cst_179 = arith.constant 0.000000e+00 : f32
    %131 = vector.broadcast %cst_179 : f32 to vector<256x128xf32>
    %132 = arith.maximumf %130, %131 : vector<256x128xf32>
    %133 = vector.shape_cast %132 : vector<256x128xf32> to vector<16x16x128xf32>
    %134 = arith.truncf %133 : vector<16x16x128xf32> to vector<16x16x128xbf16>
    %c0_180 = arith.constant 0 : index
    %c0_181 = arith.constant 0 : index
    %c0_182 = arith.constant 0 : index
    %135 = vector.load %arg11[%c0_180, %c0_181, %c0_182] : memref<16x16x128xbf16, #tpu.memory_space<vmem>>, vector<16x16x128xbf16>
    tpu.vector_store %arg11[%c0_180, %c0_181, %c0_182], %134 {strides = array<i32>} : memref<16x16x128xbf16, #tpu.memory_space<vmem>>, vector<16x16x128xbf16>,
    return
  }
  func.func @transform_0(%arg0: i32) -> (i32, i32, i32) {
    %c0_i32 = arith.constant 0 : i32
    %c0_i32_0 = arith.constant 0 : i32
    %c0_i32_1 = arith.constant 0 : i32
    return %arg0, %c0_i32, %c0_i32_0 : i32, i32, i32
  }
  func.func @transform_1(%arg0: i32) -> (i32, i32, i32) {
    %c8_i32 = arith.constant 8 : i32
    %0 = arith.muli %arg0, %c8_i32 : i32
    %c1_i32 = arith.constant 1 : i32
    %1 = arith.subi %0, %c1_i32 : i32
    %c0_i32 = arith.constant 0 : i32
    %2 = arith.maxsi %1, %c0_i32 : i32
    %c0_i32_0 = arith.constant 0 : i32
    %c0_i32_1 = arith.constant 0 : i32
    %c0_i32_2 = arith.constant 0 : i32
    return %2, %c0_i32_0, %c0_i32_1 : i32, i32, i32
  }
  func.func @transform_2(%arg0: i32) -> (i32, i32, i32) {
    %c1_i32 = arith.constant 1 : i32
    %0 = arith.addi %arg0, %c1_i32 : i32
    %c8_i32 = arith.constant 8 : i32
    %1 = arith.muli %0, %c8_i32 : i32
    %c15_i32 = arith.constant 15 : i32
    %2 = arith.minsi %1, %c15_i32 : i32
    %c0_i32 = arith.constant 0 : i32
    %c0_i32_0 = arith.constant 0 : i32
    %c0_i32_1 = arith.constant 0 : i32
    return %2, %c0_i32, %c0_i32_0 : i32, i32, i32
  }
  func.func @transform_3(%arg0: i32) -> (i32, i32, i32) {
    %c0_i32 = arith.constant 0 : i32
    %c0_i32_0 = arith.constant 0 : i32
    %c0_i32_1 = arith.constant 0 : i32
    return %arg0, %c0_i32, %c0_i32_0 : i32, i32, i32
  }
  func.func @transform_4(%arg0: i32) -> (i32, i32, i32) {
    %c8_i32 = arith.constant 8 : i32
    %0 = arith.muli %arg0, %c8_i32 : i32
    %c1_i32 = arith.constant 1 : i32
    %1 = arith.subi %0, %c1_i32 : i32
    %c0_i32 = arith.constant 0 : i32
    %2 = arith.maxsi %1, %c0_i32 : i32
    %c0_i32_0 = arith.constant 0 : i32
    %c0_i32_1 = arith.constant 0 : i32
    %c0_i32_2 = arith.constant 0 : i32
    return %2, %c0_i32_0, %c0_i32_1 : i32, i32, i32
  }
  func.func @transform_5(%arg0: i32) -> (i32, i32, i32) {
    %c1_i32 = arith.constant 1 : i32
    %0 = arith.addi %arg0, %c1_i32 : i32
    %c8_i32 = arith.constant 8 : i32
    %1 = arith.muli %0, %c8_i32 : i32
    %c15_i32 = arith.constant 15 : i32
    %2 = arith.minsi %1, %c15_i32 : i32
    %c0_i32 = arith.constant 0 : i32
    %c0_i32_0 = arith.constant 0 : i32
    %c0_i32_1 = arith.constant 0 : i32
    return %2, %c0_i32, %c0_i32_0 : i32, i32, i32
  }
  func.func @transform_6(%arg0: i32) -> (i32, i32, i32) {
    %c0_i32 = arith.constant 0 : i32
    %c0_i32_0 = arith.constant 0 : i32
    %c0_i32_1 = arith.constant 0 : i32
    %c0_i32_2 = arith.constant 0 : i32
    return %c0_i32, %c0_i32_0, %c0_i32_1 : i32, i32, i32
  }
  func.func @transform_7(%arg0: i32) -> (i32, i32) {
    %c0_i32 = arith.constant 0 : i32
    %c0_i32_0 = arith.constant 0 : i32
    %c0_i32_1 = arith.constant 0 : i32
    return %c0_i32, %c0_i32_0 : i32, i32
  }
  func.func @transform_8(%arg0: i32) -> (i32, i32, i32) {
    %c0_i32 = arith.constant 0 : i32
    %c0_i32_0 = arith.constant 0 : i32
    %c0_i32_1 = arith.constant 0 : i32
    %c0_i32_2 = arith.constant 0 : i32
    return %c0_i32, %c0_i32_0, %c0_i32_1 : i32, i32, i32
  }
  func.func @transform_9(%arg0: i32) -> (i32, i32) {
    %c0_i32 = arith.constant 0 : i32
    %c0_i32_0 = arith.constant 0 : i32
    %c0_i32_1 = arith.constant 0 : i32
    return %c0_i32, %c0_i32_0 : i32, i32
  }
  func.func @transform_10(%arg0: i32) -> (i32, i32, i32) {
    %c0_i32 = arith.constant 0 : i32
    %c0_i32_0 = arith.constant 0 : i32
    %c0_i32_1 = arith.constant 0 : i32
    return %arg0, %c0_i32, %c0_i32_0 : i32, i32, i32
  }
}

</mosaic_0001>

<llo_original>
// kernel: tpu_custom_call.1
$region0: #{tpu_custom_call.1}
  #allocation0 [shape = 'u32[]', space=smem, size = 0x4, offset = 0x4, fixed_abs, tag = 'smem constant byte address 0x4 - core index']
  #allocation1 [shape = 'u32[144,128]{1,0:T(1,128)}', space=vmem, size = 0x12000, scoped, tag = 'internal scratch']
  #allocation2 [shape = 'bf16[20,16,24]{2,1,0:T(16,128)(2,1)}', space=vmem, size = 0x14000, scoped, tag = 'scratch operand']
  #allocation3 [shape = 'bf16[18,16,384]{2,1,0:T(16,128)(2,1)}', space=vmem, size = 0x36000, scoped, tag = 'scratch operand']
  %s0 = inlined_call_operand.vmem [shape: bf16[32,16,4], index: 0, kind: input, shape index: {}]
  %s1 = inlined_call_operand.vmem [shape: bf16[32,16,4], index: 1, kind: input, shape index: {}]
  %s2 = inlined_call_operand.vmem [shape: bf16[32,16,4], index: 2, kind: input, shape index: {}]
  %s3 = inlined_call_operand.vmem [shape: bf16[32,16,4], index: 3, kind: input, shape index: {}]
  %s4 = inlined_call_operand.vmem [shape: bf16[32,16,4], index: 4, kind: input, shape index: {}]
  %s5 = inlined_call_operand.vmem [shape: bf16[32,16,4], index: 5, kind: input, shape index: {}]
  %s6 = inlined_call_operand.vmem [shape: bf16[3,24,128], index: 6, kind: input, shape index: {}]
  %s7 = inlined_call_operand.vmem [shape: f32[1,128], index: 7, kind: input, shape index: {}]
  %s8 = inlined_call_operand.vmem [shape: bf16[3,384,128], index: 8, kind: input, shape index: {}]
  %s9 = inlined_call_operand.vmem [shape: f32[1,128], index: 9, kind: input, shape index: {}]
  %s10 = inlined_call_operand.hbm [shape: bf16[32,16,128], index: 10, kind: output, shape index: {}]
  %s11 = sld [smem:[#allocation0]]
  $region73: #{tpu_custom_call.1} parent=0
    _
  %s13 = ssub.s32 1, %s11
  %s14 = scalar_select 0, %s13, %s11
  $region1: #{tpu_custom_call.1} parent=0
    #allocation4 [shape = 'u8[131072]{0}', space=vmem, size = 0x20000, scoped, tag = 'output window, operand 0']
    #allocation5 [shape = 's32[2]{0}', space=sflag, size = 0x8, scoped, tag = 'scoped memory for tpu_custom_call.1']
    %15 = vsyncpa [#allocation5], 0
    %s16 = scalar_lea.sflag [#allocation5], 1
    %17 = vsyncpa %s16, 0
    loop: start=0, step=1, limit=4
    $region2: #{tpu_custom_call.1} parent=1 // loop_pre_header
      _
    $region3: #{tpu_custom_call.1} parent=1 // loop_header
      %s19 = sphi 0, %s23
      %p20 = scmp.ge.s32.totalorder %s19, 4
      %s29 = sphi 0, %s31
      %s32 = sphi 0, %s29
      %s33 = sphi 0, %s32
      %s49 = sphi 0, %s33
      %s63 = sphi 0, %s65
      %s66 = sphi 0, %s63
      %s67 = sphi 0, %s66
      %s83 = sphi 0, %s67
      %s97 = sphi 0, %s99
      %s100 = sphi 0, %s97
      %s101 = sphi 0, %s100
      %s117 = sphi 0, %s101
      %s123 = sphi 0, %s125
      %s126 = sphi 0, %s123
      %s127 = sphi 0, %s126
      %s143 = sphi 0, %s127
      %s157 = sphi 0, %s159
      %s160 = sphi 0, %s157
      %s161 = sphi 0, %s160
      %s177 = sphi 0, %s161
      %s191 = sphi 0, %s193
      %s194 = sphi 0, %s191
      %s195 = sphi 0, %s194
      %s211 = sphi 0, %s195
      %s215 = sphi 0, %s215
      %s217 = sphi 0, %s215
      %s218 = sphi 0, %s217
      %s232 = sphi 0, %s218
      %s236 = sphi 0, %s236
      %s238 = sphi 0, %s236
      %s239 = sphi 0, %s238
      %s253 = sphi 0, %s239
      %s257 = sphi 0, %s257
      %s259 = sphi 0, %s257
      %s260 = sphi 0, %s259
      %s274 = sphi 0, %s260
      %s278 = sphi 0, %s278
      %s280 = sphi 0, %s278
      %s281 = sphi 0, %s280
      %s295 = sphi 0, %s281
      %s301 = sphi 0, %s303
      %s304 = sphi 0, %s301
      %s305 = sphi 0, %s304
      %s321 = sphi 0, %s305
    $region4: #{tpu_custom_call.1} parent=1 // loop_header_branch
      %22 = sbr.rel (%p20) target = $region8
    $region5: #{tpu_custom_call.1} parent=1 // loop_body
      %s24 = ssub.s32 %s19, 1
      %s25 = ssub.s32 %s19, 2
      %s26 = sadd.s32 %s19, 1
      %s27 = ssub.s32 %s19, %s26
      %p28 = scmp.eq.s32.totalorder %s27, 0
      %s30 = sadd.s32 %s29, 1
      %s31 = scalar_select %p28, %s29, %s30
      %p34 = pneg %p28
      %p35 = scmp.eq.s32.totalorder %s19, 1
      %p36 = por %p34, %p35
      %p37 = scmp.ne.s32.totalorder %s29, %s32
      %p38 = scmp.eq.s32.totalorder %s19, 0
      %p39 = por %p37, %p38
      %p40 = scmp.ne.s32.totalorder %s29, %s32
      %p41 = scmp.eq.s32.totalorder %s24, 1
      %p42 = por %p40, %p41
      %p43 = scmp.ne.s32.totalorder %s32, %s33
      %p44 = scmp.eq.s32.totalorder %s24, 0
      %p45 = por %p43, %p44
      %p46 = scmp.ne.s32.totalorder %s32, %s33
      %p47 = scmp.eq.s32.totalorder %s25, 1
      %p48 = por %p46, %p47
      %p50 = scmp.ne.s32.totalorder %s33, %s49
      %p51 = scmp.eq.s32.totalorder %s25, 0
      %p52 = por %p50, %p51
      %s53 = smul.u32 %s19, 8
      %s54 = ssub.s32 %s53, 1
      %p55 = scmp.gt.s32.totalorder %s54, 0
      %s56 = scalar_select %p55, %s54, 0
      %s57 = smul.u32 %s26, 8
      %s58 = ssub.s32 %s57, 1
      %p59 = scmp.gt.s32.totalorder %s58, 0
      %s60 = scalar_select %p59, %s58, 0
      %s61 = ssub.s32 %s56, %s60
      %p62 = scmp.eq.s32.totalorder %s61, 0
      %s64 = sadd.s32 %s63, 1
      %s65 = scalar_select %p62, %s63, %s64
      %p68 = pneg %p62
      %p69 = scmp.eq.s32.totalorder %s19, 1
      %p70 = por %p68, %p69
      %p71 = scmp.ne.s32.totalorder %s63, %s66
      %p72 = scmp.eq.s32.totalorder %s19, 0
      %p73 = por %p71, %p72
      %p74 = scmp.ne.s32.totalorder %s63, %s66
      %p75 = scmp.eq.s32.totalorder %s24, 1
      %p76 = por %p74, %p75
      %p77 = scmp.ne.s32.totalorder %s66, %s67
      %p78 = scmp.eq.s32.totalorder %s24, 0
      %p79 = por %p77, %p78
      %p80 = scmp.ne.s32.totalorder %s66, %s67
      %p81 = scmp.eq.s32.totalorder %s25, 1
      %p82 = por %p80, %p81
      %p84 = scmp.ne.s32.totalorder %s67, %s83
      %p85 = scmp.eq.s32.totalorder %s25, 0
      %p86 = por %p84, %p85
      %s87 = sadd.s32 %s19, 1
      %s88 = smul.u32 %s87, 8
      %p89 = scmp.lt.s32.totalorder %s88, 15
      %s90 = scalar_select %p89, %s88, 15
      %s91 = sadd.s32 %s26, 1
      %s92 = smul.u32 %s91, 8
      %p93 = scmp.lt.s32.totalorder %s92, 15
      %s94 = scalar_select %p93, %s92, 15
      %s95 = ssub.s32 %s90, %s94
      %p96 = scmp.eq.s32.totalorder %s95, 0
      %s98 = sadd.s32 %s97, 1
      %s99 = scalar_select %p96, %s97, %s98
      %p102 = pneg %p96
      %p103 = scmp.eq.s32.totalorder %s19, 1
      %p104 = por %p102, %p103
      %p105 = scmp.ne.s32.totalorder %s97, %s100
      %p106 = scmp.eq.s32.totalorder %s19, 0
      %p107 = por %p105, %p106
      %p108 = scmp.ne.s32.totalorder %s97, %s100
      %p109 = scmp.eq.s32.totalorder %s24, 1
      %p110 = por %p108, %p109
      %p111 = scmp.ne.s32.totalorder %s100, %s101
      %p112 = scmp.eq.s32.totalorder %s24, 0
      %p113 = por %p111, %p112
      %p114 = scmp.ne.s32.totalorder %s100, %s101
      %p115 = scmp.eq.s32.totalorder %s25, 1
      %p116 = por %p114, %p115
      %p118 = scmp.ne.s32.totalorder %s101, %s117
      %p119 = scmp.eq.s32.totalorder %s25, 0
      %p120 = por %p118, %p119
      %s121 = ssub.s32 %s19, %s26
      %p122 = scmp.eq.s32.totalorder %s121, 0
      %s124 = sadd.s32 %s123, 1
      %s125 = scalar_select %p122, %s123, %s124
      %p128 = pneg %p122
      %p129 = scmp.eq.s32.totalorder %s19, 1
      %p130 = por %p128, %p129
      %p131 = scmp.ne.s32.totalorder %s123, %s126
      %p132 = scmp.eq.s32.totalorder %s19, 0
      %p133 = por %p131, %p132
      %p134 = scmp.ne.s32.totalorder %s123, %s126
      %p135 = scmp.eq.s32.totalorder %s24, 1
      %p136 = por %p134, %p135
      %p137 = scmp.ne.s32.totalorder %s126, %s127
      %p138 = scmp.eq.s32.totalorder %s24, 0
      %p139 = por %p137, %p138
      %p140 = scmp.ne.s32.totalorder %s126, %s127
      %p141 = scmp.eq.s32.totalorder %s25, 1
      %p142 = por %p140, %p141
      %p144 = scmp.ne.s32.totalorder %s127, %s143
      %p145 = scmp.eq.s32.totalorder %s25, 0
      %p146 = por %p144, %p145
      %s147 = smul.u32 %s19, 8
      %s148 = ssub.s32 %s147, 1
      %p149 = scmp.gt.s32.totalorder %s148, 0
      %s150 = scalar_select %p149, %s148, 0
      %s151 = smul.u32 %s26, 8
      %s152 = ssub.s32 %s151, 1
      %p153 = scmp.gt.s32.totalorder %s152, 0
      %s154 = scalar_select %p153, %s152, 0
      %s155 = ssub.s32 %s150, %s154
      %p156 = scmp.eq.s32.totalorder %s155, 0
      %s158 = sadd.s32 %s157, 1
      %s159 = scalar_select %p156, %s157, %s158
      %p162 = pneg %p156
      %p163 = scmp.eq.s32.totalorder %s19, 1
      %p164 = por %p162, %p163
      %p165 = scmp.ne.s32.totalorder %s157, %s160
      %p166 = scmp.eq.s32.totalorder %s19, 0
      %p167 = por %p165, %p166
      %p168 = scmp.ne.s32.totalorder %s157, %s160
      %p169 = scmp.eq.s32.totalorder %s24, 1
      %p170 = por %p168, %p169
      %p171 = scmp.ne.s32.totalorder %s160, %s161
      %p172 = scmp.eq.s32.totalorder %s24, 0
      %p173 = por %p171, %p172
      %p174 = scmp.ne.s32.totalorder %s160, %s161
      %p175 = scmp.eq.s32.totalorder %s25, 1
      %p176 = por %p174, %p175
      %p178 = scmp.ne.s32.totalorder %s161, %s177
      %p179 = scmp.eq.s32.totalorder %s25, 0
      %p180 = por %p178, %p179
      %s181 = sadd.s32 %s19, 1
      %s182 = smul.u32 %s181, 8
      %p183 = scmp.lt.s32.totalorder %s182, 15
      %s184 = scalar_select %p183, %s182, 15
      %s185 = sadd.s32 %s26, 1
      %s186 = smul.u32 %s185, 8
      %p187 = scmp.lt.s32.totalorder %s186, 15
      %s188 = scalar_select %p187, %s186, 15
      %s189 = ssub.s32 %s184, %s188
      %p190 = scmp.eq.s32.totalorder %s189, 0
      %s192 = sadd.s32 %s191, 1
      %s193 = scalar_select %p190, %s191, %s192
      %p196 = pneg %p190
      %p197 = scmp.eq.s32.totalorder %s19, 1
      %p198 = por %p196, %p197
      %p199 = scmp.ne.s32.totalorder %s191, %s194
      %p200 = scmp.eq.s32.totalorder %s19, 0
      %p201 = por %p199, %p200
      %p202 = scmp.ne.s32.totalorder %s191, %s194
      %p203 = scmp.eq.s32.totalorder %s24, 1
      %p204 = por %p202, %p203
      %p205 = scmp.ne.s32.totalorder %s194, %s195
      %p206 = scmp.eq.s32.totalorder %s24, 0
      %p207 = por %p205, %p206
      %p208 = scmp.ne.s32.totalorder %s194, %s195
      %p209 = scmp.eq.s32.totalorder %s25, 1
      %p210 = por %p208, %p209
      %p212 = scmp.ne.s32.totalorder %s195, %s211
      %p213 = scmp.eq.s32.totalorder %s25, 0
      %p214 = por %p212, %p213
      %s216 = sadd.s32 %s215, 1
      %p219 = scmp.eq.s32.totalorder %s19, 1
      %p220 = scmp.ne.s32.totalorder %s215, %s217
      %p221 = scmp.eq.s32.totalorder %s19, 0
      %p222 = por %p220, %p221
      %p223 = scmp.ne.s32.totalorder %s215, %s217
      %p224 = scmp.eq.s32.totalorder %s24, 1
      %p225 = por %p223, %p224
      %p226 = scmp.ne.s32.totalorder %s217, %s218
      %p227 = scmp.eq.s32.totalorder %s24, 0
      %p228 = por %p226, %p227
      %p229 = scmp.ne.s32.totalorder %s217, %s218
      %p230 = scmp.eq.s32.totalorder %s25, 1
      %p231 = por %p229, %p230
      %p233 = scmp.ne.s32.totalorder %s218, %s232
      %p234 = scmp.eq.s32.totalorder %s25, 0
      %p235 = por %p233, %p234
      %s237 = sadd.s32 %s236, 1
      %p240 = scmp.eq.s32.totalorder %s19, 1
      %p241 = scmp.ne.s32.totalorder %s236, %s238
      %p242 = scmp.eq.s32.totalorder %s19, 0
      %p243 = por %p241, %p242
      %p244 = scmp.ne.s32.totalorder %s236, %s238
      %p245 = scmp.eq.s32.totalorder %s24, 1
      %p246 = por %p244, %p245
      %p247 = scmp.ne.s32.totalorder %s238, %s239
      %p248 = scmp.eq.s32.totalorder %s24, 0
      %p249 = por %p247, %p248
      %p250 = scmp.ne.s32.totalorder %s238, %s239
      %p251 = scmp.eq.s32.totalorder %s25, 1
      %p252 = por %p250, %p251
      %p254 = scmp.ne.s32.totalorder %s239, %s253
      %p255 = scmp.eq.s32.totalorder %s25, 0
      %p256 = por %p254, %p255
      %s258 = sadd.s32 %s257, 1
      %p261 = scmp.eq.s32.totalorder %s19, 1
      %p262 = scmp.ne.s32.totalorder %s257, %s259
      %p263 = scmp.eq.s32.totalorder %s19, 0
      %p264 = por %p262, %p263
      %p265 = scmp.ne.s32.totalorder %s257, %s259
      %p266 = scmp.eq.s32.totalorder %s24, 1
      %p267 = por %p265, %p266
      %p268 = scmp.ne.s32.totalorder %s259, %s260
      %p269 = scmp.eq.s32.totalorder %s24, 0
      %p270 = por %p268, %p269
      %p271 = scmp.ne.s32.totalorder %s259, %s260
      %p272 = scmp.eq.s32.totalorder %s25, 1
      %p273 = por %p271, %p272
      %p275 = scmp.ne.s32.totalorder %s260, %s274
      %p276 = scmp.eq.s32.totalorder %s25, 0
      %p277 = por %p275, %p276
      %s279 = sadd.s32 %s278, 1
      %p282 = scmp.eq.s32.totalorder %s19, 1
      %p283 = scmp.ne.s32.totalorder %s278, %s280
      %p284 = scmp.eq.s32.totalorder %s19, 0
      %p285 = por %p283, %p284
      %p286 = scmp.ne.s32.totalorder %s278, %s280
      %p287 = scmp.eq.s32.totalorder %s24, 1
      %p288 = por %p286, %p287
      %p289 = scmp.ne.s32.totalorder %s280, %s281
      %p290 = scmp.eq.s32.totalorder %s24, 0
      %p291 = por %p289, %p290
      %p292 = scmp.ne.s32.totalorder %s280, %s281
      %p293 = scmp.eq.s32.totalorder %s25, 1
      %p294 = por %p292, %p293
      %p296 = scmp.ne.s32.totalorder %s281, %s295
      %p297 = scmp.eq.s32.totalorder %s25, 0
      %p298 = por %p296, %p297
      %s299 = ssub.s32 %s19, %s26
      %p300 = scmp.eq.s32.totalorder %s299, 0
      %s302 = sadd.s32 %s301, 1
      %s303 = scalar_select %p300, %s301, %s302
      %p306 = pneg %p300
      %p307 = scmp.eq.s32.totalorder %s19, 1
      %p308 = por %p306, %p307
      %p309 = scmp.ne.s32.totalorder %s301, %s304
      %p310 = scmp.eq.s32.totalorder %s19, 0
      %p311 = por %p309, %p310
      %p312 = scmp.ne.s32.totalorder %s301, %s304
      %p313 = scmp.eq.s32.totalorder %s24, 1
      %p314 = por %p312, %p313
      %p315 = scmp.ne.s32.totalorder %s304, %s305
      %p316 = scmp.eq.s32.totalorder %s24, 0
      %p317 = por %p315, %p316
      %p318 = scmp.ne.s32.totalorder %s304, %s305
      %p319 = scmp.eq.s32.totalorder %s25, 1
      %p320 = por %p318, %p319
      %p322 = scmp.ne.s32.totalorder %s305, %s321
      %p323 = scmp.eq.s32.totalorder %s25, 0
      %p324 = por %p322, %p323
      %p325 = scmp.le.s32.totalorder 1, %s19
      %p326 = scmp.lt.s32.totalorder %s19, 3
      %p327 = pnand %p325, %p326
      %p328 = pneg %p327
      // Predicated region
      $region9: #{tpu_custom_call.1} parent=5 // pred_check
        _
      $region10: #{tpu_custom_call.1} parent=5 // pred_check_branch
        %330 = sbr.rel (%p327) target = $region12
      $region11: #{tpu_custom_call.1} parent=5 // pred_region
        %s331 = ssub.s32 %s19, 1
        // Predicated region
        $region13: #{tpu_custom_call.1} parent=11 // pred_check
          %p332 = pneg %p228
        $region14: #{tpu_custom_call.1} parent=11 // pred_check_branch
          %334 = sbr.rel (%p332) target = $region16
        $region15: #{tpu_custom_call.1} parent=11 // pred_region
          _
        $region16: #{tpu_custom_call.1} parent=11 // pred_fallthru
          _
        // Predicated region
        $region17: #{tpu_custom_call.1} parent=11 // pred_check
          %p335 = pneg %p249
        $region18: #{tpu_custom_call.1} parent=11 // pred_check_branch
          %337 = sbr.rel (%p335) target = $region20
        $region19: #{tpu_custom_call.1} parent=11 // pred_region
          _
        $region20: #{tpu_custom_call.1} parent=11 // pred_fallthru
          _
        // Predicated region
        $region21: #{tpu_custom_call.1} parent=11 // pred_check
          %p338 = pneg %p270
        $region22: #{tpu_custom_call.1} parent=11 // pred_check_branch
          %340 = sbr.rel (%p338) target = $region24
        $region23: #{tpu_custom_call.1} parent=11 // pred_region
          _
        $region24: #{tpu_custom_call.1} parent=11 // pred_fallthru
          _
        // Predicated region
        $region25: #{tpu_custom_call.1} parent=11 // pred_check
          %p341 = pneg %p291
        $region26: #{tpu_custom_call.1} parent=11 // pred_check_branch
          %343 = sbr.rel (%p341) target = $region28
        $region27: #{tpu_custom_call.1} parent=11 // pred_region
          _
        $region28: #{tpu_custom_call.1} parent=11 // pred_fallthru
          _
      $region12: #{tpu_custom_call.1} parent=5 // pred_fallthru
        _
      %p344 = scmp.lt.s32.totalorder %s19, 2
      // Predicated region
      $region29: #{tpu_custom_call.1} parent=5 // pred_check
        %p345 = pneg %p344
      $region30: #{tpu_custom_call.1} parent=5 // pred_check_branch
        %347 = sbr.rel (%p345) target = $region32
      $region31: #{tpu_custom_call.1} parent=5 // pred_region
        // Predicated region
        $region33: #{tpu_custom_call.1} parent=31 // pred_check
          %p348 = pneg %p39
        $region34: #{tpu_custom_call.1} parent=31 // pred_check_branch
          %350 = sbr.rel (%p348) target = $region36
        $region35: #{tpu_custom_call.1} parent=31 // pred_region
          %s351 = smul.u32 16, %s19
          %p352 = scmp.lt.s32.totalorder %s351, 31
          %s353 = scalar_select %p352, %s351, 31
          %s354 = smul.addr %s353, 2
          %s355 = smul.addr %s354, 4
          %s356 = scalar_lea.vmem %s0, %s355
          %s357 = smul.u32 16, %s19
        $region36: #{tpu_custom_call.1} parent=31 // pred_fallthru
          _
        // Predicated region
        $region37: #{tpu_custom_call.1} parent=31 // pred_check
          %p358 = pneg %p73
        $region38: #{tpu_custom_call.1} parent=31 // pred_check_branch
          %360 = sbr.rel (%p358) target = $region40
        $region39: #{tpu_custom_call.1} parent=31 // pred_region
          %s361 = smul.u32 %s19, 8
          %s362 = ssub.s32 %s361, 1
          %p363 = scmp.gt.s32.totalorder %s362, 0
          %s364 = scalar_select %p363, %s362, 0
          %s365 = smul.u32 2, %s364
          %p366 = scmp.lt.s32.totalorder %s365, 31
          %s367 = scalar_select %p366, %s365, 31
          %s368 = smul.addr %s367, 2
          %s369 = smul.addr %s368, 4
          %s370 = scalar_lea.vmem %s1, %s369
          %s371 = smul.u32 %s19, 8
          %s372 = ssub.s32 %s371, 1
          %p373 = scmp.gt.s32.totalorder %s372, 0
          %s374 = scalar_select %p373, %s372, 0
          %s375 = smul.u32 2, %s374
        $region40: #{tpu_custom_call.1} parent=31 // pred_fallthru
          _
        // Predicated region
        $region41: #{tpu_custom_call.1} parent=31 // pred_check
          %p376 = pneg %p107
        $region42: #{tpu_custom_call.1} parent=31 // pred_check_branch
          %378 = sbr.rel (%p376) target = $region44
        $region43: #{tpu_custom_call.1} parent=31 // pred_region
          %s379 = sadd.s32 %s19, 1
          %s380 = smul.u32 %s379, 8
          %p381 = scmp.lt.s32.totalorder %s380, 15
          %s382 = scalar_select %p381, %s380, 15
          %s383 = smul.u32 2, %s382
          %p384 = scmp.lt.s32.totalorder %s383, 31
          %s385 = scalar_select %p384, %s383, 31
          %s386 = smul.addr %s385, 2
          %s387 = smul.addr %s386, 4
          %s388 = scalar_lea.vmem %s2, %s387
          %s389 = sadd.s32 %s19, 1
          %s390 = smul.u32 %s389, 8
          %p391 = scmp.lt.s32.totalorder %s390, 15
          %s392 = scalar_select %p391, %s390, 15
          %s393 = smul.u32 2, %s392
        $region44: #{tpu_custom_call.1} parent=31 // pred_fallthru
          _
        // Predicated region
        $region45: #{tpu_custom_call.1} parent=31 // pred_check
          %p394 = pneg %p133
        $region46: #{tpu_custom_call.1} parent=31 // pred_check_branch
          %396 = sbr.rel (%p394) target = $region48
        $region47: #{tpu_custom_call.1} parent=31 // pred_region
          %s397 = smul.u32 16, %s19
          %p398 = scmp.lt.s32.totalorder %s397, 31
          %s399 = scalar_select %p398, %s397, 31
          %s400 = smul.addr %s399, 2
          %s401 = smul.addr %s400, 4
          %s402 = scalar_lea.vmem %s3, %s401
          %s403 = smul.u32 16, %s19
        $region48: #{tpu_custom_call.1} parent=31 // pred_fallthru
          _
        // Predicated region
        $region49: #{tpu_custom_call.1} parent=31 // pred_check
          %p404 = pneg %p167
        $region50: #{tpu_custom_call.1} parent=31 // pred_check_branch
          %406 = sbr.rel (%p404) target = $region52
        $region51: #{tpu_custom_call.1} parent=31 // pred_region
          %s407 = smul.u32 %s19, 8
          %s408 = ssub.s32 %s407, 1
          %p409 = scmp.gt.s32.totalorder %s408, 0
          %s410 = scalar_select %p409, %s408, 0
          %s411 = smul.u32 2, %s410
          %p412 = scmp.lt.s32.totalorder %s411, 31
          %s413 = scalar_select %p412, %s411, 31
          %s414 = smul.addr %s413, 2
          %s415 = smul.addr %s414, 4
          %s416 = scalar_lea.vmem %s4, %s415
          %s417 = smul.u32 %s19, 8
          %s418 = ssub.s32 %s417, 1
          %p419 = scmp.gt.s32.totalorder %s418, 0
          %s420 = scalar_select %p419, %s418, 0
          %s421 = smul.u32 2, %s420
        $region52: #{tpu_custom_call.1} parent=31 // pred_fallthru
          _
        // Predicated region
        $region53: #{tpu_custom_call.1} parent=31 // pred_check
          %p422 = pneg %p201
        $region54: #{tpu_custom_call.1} parent=31 // pred_check_branch
          %424 = sbr.rel (%p422) target = $region56
        $region55: #{tpu_custom_call.1} parent=31 // pred_region
          %s425 = sadd.s32 %s19, 1
          %s426 = smul.u32 %s425, 8
          %p427 = scmp.lt.s32.totalorder %s426, 15
          %s428 = scalar_select %p427, %s426, 15
          %s429 = smul.u32 2, %s428
          %p430 = scmp.lt.s32.totalorder %s429, 31
          %s431 = scalar_select %p430, %s429, 31
          %s432 = smul.addr %s431, 2
          %s433 = smul.addr %s432, 4
          %s434 = scalar_lea.vmem %s5, %s433
          %s435 = sadd.s32 %s19, 1
          %s436 = smul.u32 %s435, 8
          %p437 = scmp.lt.s32.totalorder %s436, 15
          %s438 = scalar_select %p437, %s436, 15
          %s439 = smul.u32 2, %s438
        $region56: #{tpu_custom_call.1} parent=31 // pred_fallthru
          _
      $region32: #{tpu_custom_call.1} parent=5 // pred_fallthru
        _
      %p440 = scmp.le.s32.totalorder 1, %s19
      %p441 = scmp.lt.s32.totalorder %s19, 3
      %p442 = pnand %p440, %p441
      %p443 = pneg %p442
      // Predicated region
      $region57: #{tpu_custom_call.1} parent=5 // pred_check
        _
      $region58: #{tpu_custom_call.1} parent=5 // pred_check_branch
        %445 = sbr.rel (%p442) target = $region60
      $region59: #{tpu_custom_call.1} parent=5 // pred_region
        %s446 = ssub.s32 %s19, 1
        %s447 = smul.u32 16, %s24
        %p448 = scmp.lt.s32.totalorder %s447, 31
        %s449 = scalar_select %p448, %s447, 31
        %s450 = smul.addr %s449, 2
        %s451 = smul.addr %s450, 4
        %s452 = scalar_lea.vmem %s0, %s451
        %p453 = pneg %p45
        %p454 = pneg %p42
        %s455 = smul.u32 %s24, 8
        %s456 = ssub.s32 %s455, 1
        %p457 = scmp.gt.s32.totalorder %s456, 0
        %s458 = scalar_select %p457, %s456, 0
        %s459 = smul.u32 2, %s458
        %p460 = scmp.lt.s32.totalorder %s459, 31
        %s461 = scalar_select %p460, %s459, 31
        %s462 = smul.addr %s461, 2
        %s463 = smul.addr %s462, 4
        %s464 = scalar_lea.vmem %s1, %s463
        %p465 = pneg %p79
        %p466 = pneg %p76
        %s467 = sadd.s32 %s24, 1
        %s468 = smul.u32 %s467, 8
        %p469 = scmp.lt.s32.totalorder %s468, 15
        %s470 = scalar_select %p469, %s468, 15
        %s471 = smul.u32 2, %s470
        %p472 = scmp.lt.s32.totalorder %s471, 31
        %s473 = scalar_select %p472, %s471, 31
        %s474 = smul.addr %s473, 2
        %s475 = smul.addr %s474, 4
        %s476 = scalar_lea.vmem %s2, %s475
        %p477 = pneg %p113
        %p478 = pneg %p110
        %s479 = smul.u32 16, %s24
        %p480 = scmp.lt.s32.totalorder %s479, 31
        %s481 = scalar_select %p480, %s479, 31
        %s482 = smul.addr %s481, 2
        %s483 = smul.addr %s482, 4
        %s484 = scalar_lea.vmem %s3, %s483
        %p485 = pneg %p139
        %p486 = pneg %p136
        %s487 = smul.u32 %s24, 8
        %s488 = ssub.s32 %s487, 1
        %p489 = scmp.gt.s32.totalorder %s488, 0
        %s490 = scalar_select %p489, %s488, 0
        %s491 = smul.u32 2, %s490
        %p492 = scmp.lt.s32.totalorder %s491, 31
        %s493 = scalar_select %p492, %s491, 31
        %s494 = smul.addr %s493, 2
        %s495 = smul.addr %s494, 4
        %s496 = scalar_lea.vmem %s4, %s495
        %p497 = pneg %p173
        %p498 = pneg %p170
        %s499 = sadd.s32 %s24, 1
        %s500 = smul.u32 %s499, 8
        %p501 = scmp.lt.s32.totalorder %s500, 15
        %s502 = scalar_select %p501, %s500, 15
        %s503 = smul.u32 2, %s502
        %p504 = scmp.lt.s32.totalorder %s503, 31
        %s505 = scalar_select %p504, %s503, 31
        %s506 = smul.addr %s505, 2
        %s507 = smul.addr %s506, 4
        %s508 = scalar_lea.vmem %s5, %s507
        %p509 = pneg %p207
        %p510 = pneg %p204
        %p511 = pneg %p228
        %p512 = pneg %p225
        %p513 = pneg %p249
        %p514 = pneg %p246
        %p515 = pneg %p270
        %p516 = pneg %p267
        %p517 = pneg %p291
        %p518 = pneg %p288
        %p519 = pneg %p317
        %p520 = pneg %p314
        %s521 = sand.u32 %s304, 1
        %s522 = scalar_lea.sflag [#allocation5], %s521
        %s523 = sand.u32 %s304, 1
        %s524 = smul.addr %s523, 128
        %s525 = scalar_lea.vmem [#allocation4], %s524
        %s526 = smul.u32 16, %s24
        %p527 = scmp.lt.s32.totalorder %s526, 31
        %s528 = scalar_select %p527, %s526, 31
        %s529 = smul.addr %s528, 2
        %s530 = smul.addr %s529, 4
        %s531 = scalar_lea.vmem %s0, %s530
        %s532 = smul.u32 16, %s24
        %s533 = smul.u32 %s24, 8
        %s534 = ssub.s32 %s533, 1
        %p535 = scmp.gt.s32.totalorder %s534, 0
        %s536 = scalar_select %p535, %s534, 0
        %s537 = smul.u32 2, %s536
        %p538 = scmp.lt.s32.totalorder %s537, 31
        %s539 = scalar_select %p538, %s537, 31
        %s540 = smul.addr %s539, 2
        %s541 = smul.addr %s540, 4
        %s542 = scalar_lea.vmem %s1, %s541
        %s543 = smul.u32 %s24, 8
        %s544 = ssub.s32 %s543, 1
        %p545 = scmp.gt.s32.totalorder %s544, 0
        %s546 = scalar_select %p545, %s544, 0
        %s547 = smul.u32 2, %s546
        %s548 = sadd.s32 %s24, 1
        %s549 = smul.u32 %s548, 8
        %p550 = scmp.lt.s32.totalorder %s549, 15
        %s551 = scalar_select %p550, %s549, 15
        %s552 = smul.u32 2, %s551
        %p553 = scmp.lt.s32.totalorder %s552, 31
        %s554 = scalar_select %p553, %s552, 31
        %s555 = smul.addr %s554, 2
        %s556 = smul.addr %s555, 4
        %s557 = scalar_lea.vmem %s2, %s556
        %s558 = sadd.s32 %s24, 1
        %s559 = smul.u32 %s558, 8
        %p560 = scmp.lt.s32.totalorder %s559, 15
        %s561 = scalar_select %p560, %s559, 15
        %s562 = smul.u32 2, %s561
        %s563 = smul.u32 16, %s24
        %p564 = scmp.lt.s32.totalorder %s563, 31
        %s565 = scalar_select %p564, %s563, 31
        %s566 = smul.addr %s565, 2
        %s567 = smul.addr %s566, 4
        %s568 = scalar_lea.vmem %s3, %s567
        %s569 = smul.u32 16, %s24
        %s570 = smul.u32 %s24, 8
        %s571 = ssub.s32 %s570, 1
        %p572 = scmp.gt.s32.totalorder %s571, 0
        %s573 = scalar_select %p572, %s571, 0
        %s574 = smul.u32 2, %s573
        %p575 = scmp.lt.s32.totalorder %s574, 31
        %s576 = scalar_select %p575, %s574, 31
        %s577 = smul.addr %s576, 2
        %s578 = smul.addr %s577, 4
        %s579 = scalar_lea.vmem %s4, %s578
        %s580 = smul.u32 %s24, 8
        %s581 = ssub.s32 %s580, 1
        %p582 = scmp.gt.s32.totalorder %s581, 0
        %s583 = scalar_select %p582, %s581, 0
        %s584 = smul.u32 2, %s583
        %s585 = sadd.s32 %s24, 1
        %s586 = smul.u32 %s585, 8
        %p587 = scmp.lt.s32.totalorder %s586, 15
        %s588 = scalar_select %p587, %s586, 15
        %s589 = smul.u32 2, %s588
        %p590 = scmp.lt.s32.totalorder %s589, 31
        %s591 = scalar_select %p590, %s589, 31
        %s592 = smul.addr %s591, 2
        %s593 = smul.addr %s592, 4
        %s594 = scalar_lea.vmem %s5, %s593
        %s595 = sadd.s32 %s24, 1
        %s596 = smul.u32 %s595, 8
        %p597 = scmp.lt.s32.totalorder %s596, 15
        %s598 = scalar_select %p597, %s596, 15
        %s599 = smul.u32 2, %s598
        %s600 = smul.u32 16, %s24
        %vm602 = vcmask 24576
        %vm603 = vsmask.f32 256
        %vm604 = vmand %vm602, %vm603
        %v605 = vld [vmem:[#allocation2] sm:$0x1]
        %v606 = vsel %vm604, 0, %v605
        %607 = vst [vmem:[#allocation2] sm:$0x1] %v606
        %v608 = vld [vmem:[#allocation2 + $0x8] sm:$0x1]
        %v609 = vsel %vm604, 0, %v608
        %610 = vst [vmem:[#allocation2 + $0x8] sm:$0x1] %v609
        %vm611 = vcmask 31744
        %vm612 = vsmask.f32 7938
        %vm613 = vmand %vm611, %vm612
        %v614 = vld [vmem:[#allocation2] sm:$0xff]
        %v615 = vsel %vm613, 0, %v614
        %616 = vst [vmem:[#allocation2] sm:$0xff] %v615
        %v617 = vld [vmem:[#allocation2 + $0x8] sm:$0xff]
        %v618 = vsel %vm613, 0, %v617
        %619 = vst [vmem:[#allocation2 + $0x8] sm:$0xff] %v618
        %vm620 = vcmask 64544
        %621 = vst.msk [vmem:[#allocation2] sm:$0xff] %vm620, 0
        %622 = vst.msk [vmem:[#allocation2 + $0x8] sm:$0xff] %vm620, 0
        %vm623 = vcmask 97344
        %vm624 = vsmask.f32 7424
        %vm625 = vmand %vm623, %vm624
        %v626 = vld [vmem:[#allocation2] sm:$0xff]
        %v627 = vsel %vm625, 0, %v626
        %628 = vst [vmem:[#allocation2] sm:$0xff] %v627
        %v629 = vld [vmem:[#allocation2 + $0x8] sm:$0xff]
        %v630 = vsel %vm625, 0, %v629
        %631 = vst [vmem:[#allocation2 + $0x8] sm:$0xff] %v630
        %vm632 = vcmask 97351
        %vm633 = vsmask.f32 7966
        %vm634 = vmand %vm632, %vm633
        %v635 = vld [vmem:[#allocation2] sm:$0x80]
        %v636 = vsel %vm634, 0, %v635
        %637 = vst [vmem:[#allocation2] sm:$0x80] %v636
        %v638 = vld [vmem:[#allocation2 + $0x8] sm:$0x80]
        %v639 = vsel %vm634, 0, %v638
        %640 = vst [vmem:[#allocation2 + $0x8] sm:$0x80] %v639
        %v641 = vld [vmem:[%s531] sm:$0xf]
        %v642 = vld [vmem:[%s531 + $0x4] sm:$0xf]
        %v643 = vld [vmem:[%s531 + $0x8] sm:$0xf]
        %v644 = vld [vmem:[%s531 + $0xc] sm:$0xf]
        %v645 = vld [vmem:[%s531 + $0x10] sm:$0xf]
        %v646 = vld [vmem:[%s531 + $0x14] sm:$0xf]
        %v647 = vld [vmem:[%s531 + $0x18] sm:$0xf]
        %v648 = vld [vmem:[%s531 + $0x1c] sm:$0xf]
        %v649 = vld [vmem:[%s531 + $0x20] sm:$0xf]
        %v650 = vld [vmem:[%s531 + $0x24] sm:$0xf]
        %v651 = vld [vmem:[%s531 + $0x28] sm:$0xf]
        %v652 = vld [vmem:[%s531 + $0x2c] sm:$0xf]
        %v653 = vld [vmem:[%s531 + $0x30] sm:$0xf]
        %v654 = vld [vmem:[%s531 + $0x34] sm:$0xf]
        %v655 = vld [vmem:[%s531 + $0x38] sm:$0xf]
        %v656 = vld [vmem:[%s531 + $0x3c] sm:$0xf]
        %v657 = vld [vmem:[%s531 + $0x40] sm:$0xf]
        %v658 = vld [vmem:[%s531 + $0x44] sm:$0xf]
        %v659 = vld [vmem:[%s531 + $0x48] sm:$0xf]
        %v660 = vld [vmem:[%s531 + $0x4c] sm:$0xf]
        %v661 = vld [vmem:[%s531 + $0x50] sm:$0xf]
        %v662 = vld [vmem:[%s531 + $0x54] sm:$0xf]
        %v663 = vld [vmem:[%s531 + $0x58] sm:$0xf]
        %v664 = vld [vmem:[%s531 + $0x5c] sm:$0xf]
        %v665 = vld [vmem:[%s531 + $0x60] sm:$0xf]
        %v666 = vld [vmem:[%s531 + $0x64] sm:$0xf]
        %v667 = vld [vmem:[%s531 + $0x68] sm:$0xf]
        %v668 = vld [vmem:[%s531 + $0x6c] sm:$0xf]
        %v669 = vld [vmem:[%s531 + $0x70] sm:$0xf]
        %v670 = vld [vmem:[%s531 + $0x74] sm:$0xf]
        %v671 = vld [vmem:[%s531 + $0x78] sm:$0xf]
        %v672 = vld [vmem:[%s531 + $0x7c] sm:$0xf]
        %s673 = scalar_lea.vmem [#allocation2], 16
        %v674 = vld [vmem:[%s673] sm:$0x1]
        %v675 = vsel %vm604, 0, %v674
        %676 = vst [vmem:[%s673] sm:$0x1] %v675
        %v677 = vld [vmem:[%s673 + $0x8] sm:$0x1]
        %v678 = vsel %vm604, 0, %v677
        %679 = vst [vmem:[%s673 + $0x8] sm:$0x1] %v678
        %v680 = vld [vmem:[%s673 + $0x10] sm:$0x1]
        %v681 = vsel %vm604, 0, %v680
        %682 = vst [vmem:[%s673 + $0x10] sm:$0x1] %v681
        %v683 = vld [vmem:[%s673 + $0x18] sm:$0x1]
        %v684 = vsel %vm604, 0, %v683
        %685 = vst [vmem:[%s673 + $0x18] sm:$0x1] %v684
        %v686 = vld [vmem:[%s673 + $0x20] sm:$0x1]
        %v687 = vsel %vm604, 0, %v686
        %688 = vst [vmem:[%s673 + $0x20] sm:$0x1] %v687
        %v689 = vld [vmem:[%s673 + $0x28] sm:$0x1]
        %v690 = vsel %vm604, 0, %v689
        %691 = vst [vmem:[%s673 + $0x28] sm:$0x1] %v690
        %v692 = vld [vmem:[%s673 + $0x30] sm:$0x1]
        %v693 = vsel %vm604, 0, %v692
        %694 = vst [vmem:[%s673 + $0x30] sm:$0x1] %v693
        %v695 = vld [vmem:[%s673 + $0x38] sm:$0x1]
        %v696 = vsel %vm604, 0, %v695
        %697 = vst [vmem:[%s673 + $0x38] sm:$0x1] %v696
        %v698 = vld [vmem:[%s673 + $0x40] sm:$0x1]
        %v699 = vsel %vm604, 0, %v698
        %700 = vst [vmem:[%s673 + $0x40] sm:$0x1] %v699
        %v701 = vld [vmem:[%s673 + $0x48] sm:$0x1]
        %v702 = vsel %vm604, 0, %v701
        %703 = vst [vmem:[%s673 + $0x48] sm:$0x1] %v702
        %v704 = vld [vmem:[%s673 + $0x50] sm:$0x1]
        %v705 = vsel %vm604, 0, %v704
        %706 = vst [vmem:[%s673 + $0x50] sm:$0x1] %v705
        %v707 = vld [vmem:[%s673 + $0x58] sm:$0x1]
        %v708 = vsel %vm604, 0, %v707
        %709 = vst [vmem:[%s673 + $0x58] sm:$0x1] %v708
        %v710 = vld [vmem:[%s673 + $0x60] sm:$0x1]
        %v711 = vsel %vm604, 0, %v710
        %712 = vst [vmem:[%s673 + $0x60] sm:$0x1] %v711
        %v713 = vld [vmem:[%s673 + $0x68] sm:$0x1]
        %v714 = vsel %vm604, 0, %v713
        %715 = vst [vmem:[%s673 + $0x68] sm:$0x1] %v714
        %v716 = vld [vmem:[%s673 + $0x70] sm:$0x1]
        %v717 = vsel %vm604, 0, %v716
        %718 = vst [vmem:[%s673 + $0x70] sm:$0x1] %v717
        %v719 = vld [vmem:[%s673 + $0x78] sm:$0x1]
        %v720 = vsel %vm604, 0, %v719
        %721 = vst [vmem:[%s673 + $0x78] sm:$0x1] %v720
        %v754 = vunpack.c.l.b16 %v641
        %v755 = vunpack.c.l.b16 %v642
        %v756 = vunpack.c.l.b16 %v643
        %v757 = vunpack.c.l.b16 %v644
        %v758 = vunpack.c.l.b16 %v645
        %v759 = vunpack.c.l.b16 %v646
        %v760 = vunpack.c.l.b16 %v647
        %v761 = vunpack.c.l.b16 %v648
        %v762 = vunpack.c.l.b16 %v649
        %v763 = vunpack.c.l.b16 %v650
        %v764 = vunpack.c.l.b16 %v651
        %v765 = vunpack.c.l.b16 %v652
        %v766 = vunpack.c.l.b16 %v653
        %v767 = vunpack.c.l.b16 %v654
        %v768 = vunpack.c.l.b16 %v655
        %v769 = vunpack.c.l.b16 %v656
        %v770 = vunpack.c.l.b16 %v657
        %v771 = vunpack.c.l.b16 %v658
        %v772 = vunpack.c.l.b16 %v659
        %v773 = vunpack.c.l.b16 %v660
        %v774 = vunpack.c.l.b16 %v661
        %v775 = vunpack.c.l.b16 %v662
        %v776 = vunpack.c.l.b16 %v663
        %v777 = vunpack.c.l.b16 %v664
        %v778 = vunpack.c.l.b16 %v665
        %v779 = vunpack.c.l.b16 %v666
        %v780 = vunpack.c.l.b16 %v667
        %v781 = vunpack.c.l.b16 %v668
        %v782 = vunpack.c.l.b16 %v669
        %v783 = vunpack.c.l.b16 %v670
        %v784 = vunpack.c.l.b16 %v671
        %v785 = vunpack.c.l.b16 %v672
        %v786 = vpack.c.b16 %v755, %v754
        %v787 = vpack.c.b16 %v757, %v756
        %v788 = vpack.c.b16 %v759, %v758
        %v789 = vpack.c.b16 %v761, %v760
        %v790 = vpack.c.b16 %v763, %v762
        %v791 = vpack.c.b16 %v765, %v764
        %v792 = vpack.c.b16 %v767, %v766
        %v793 = vpack.c.b16 %v769, %v768
        %v794 = vpack.c.b16 %v771, %v770
        %v795 = vpack.c.b16 %v773, %v772
        %v796 = vpack.c.b16 %v775, %v774
        %v797 = vpack.c.b16 %v777, %v776
        %v798 = vpack.c.b16 %v779, %v778
        %v799 = vpack.c.b16 %v781, %v780
        %v800 = vpack.c.b16 %v783, %v782
        %v801 = vpack.c.b16 %v785, %v784
        %v803 = vshrl.u32 %v786, 16
        %v805 = vrot.slane %v803, 7
        %v806 = vshll.u32 %v786, 16
        %v808 = vor.u32 %v805, %v806
        %v810 = vshrl.u32 %v787, 16
        %v812 = vrot.slane %v810, 7
        %v813 = vshll.u32 %v787, 16
        %v815 = vor.u32 %v812, %v813
        %v817 = vshrl.u32 %v788, 16
        %v819 = vrot.slane %v817, 7
        %v820 = vshll.u32 %v788, 16
        %v822 = vor.u32 %v819, %v820
        %v824 = vshrl.u32 %v789, 16
        %v826 = vrot.slane %v824, 7
        %v827 = vshll.u32 %v789, 16
        %v829 = vor.u32 %v826, %v827
        %v831 = vshrl.u32 %v790, 16
        %v833 = vrot.slane %v831, 7
        %v834 = vshll.u32 %v790, 16
        %v836 = vor.u32 %v833, %v834
        %v838 = vshrl.u32 %v791, 16
        %v840 = vrot.slane %v838, 7
        %v841 = vshll.u32 %v791, 16
        %v843 = vor.u32 %v840, %v841
        %v845 = vshrl.u32 %v792, 16
        %v847 = vrot.slane %v845, 7
        %v848 = vshll.u32 %v792, 16
        %v850 = vor.u32 %v847, %v848
        %v852 = vshrl.u32 %v793, 16
        %v854 = vrot.slane %v852, 7
        %v855 = vshll.u32 %v793, 16
        %v857 = vor.u32 %v854, %v855
        %v859 = vshrl.u32 %v794, 16
        %v861 = vrot.slane %v859, 7
        %v862 = vshll.u32 %v794, 16
        %v864 = vor.u32 %v861, %v862
        %v866 = vshrl.u32 %v795, 16
        %v868 = vrot.slane %v866, 7
        %v869 = vshll.u32 %v795, 16
        %v871 = vor.u32 %v868, %v869
        %v873 = vshrl.u32 %v796, 16
        %v875 = vrot.slane %v873, 7
        %v876 = vshll.u32 %v796, 16
        %v878 = vor.u32 %v875, %v876
        %v880 = vshrl.u32 %v797, 16
        %v882 = vrot.slane %v880, 7
        %v883 = vshll.u32 %v797, 16
        %v885 = vor.u32 %v882, %v883
        %v887 = vshrl.u32 %v798, 16
        %v889 = vrot.slane %v887, 7
        %v890 = vshll.u32 %v798, 16
        %v892 = vor.u32 %v889, %v890
        %v894 = vshrl.u32 %v799, 16
        %v896 = vrot.slane %v894, 7
        %v897 = vshll.u32 %v799, 16
        %v899 = vor.u32 %v896, %v897
        %v901 = vshrl.u32 %v800, 16
        %v903 = vrot.slane %v901, 7
        %v904 = vshll.u32 %v800, 16
        %v906 = vor.u32 %v903, %v904
        %v908 = vshrl.u32 %v801, 16
        %v910 = vrot.slane %v908, 7
        %v911 = vshll.u32 %v801, 16
        %v913 = vor.u32 %v910, %v911
        %v930 = vld [vmem:[%s673] sm:$0xff]
        %v931 = vsel %vm613, %v808, %v930
        %932 = vst [vmem:[%s673] sm:$0xff] %v931
        %v933 = vld [vmem:[%s673 + $0x8] sm:$0xff]
        %v934 = vsel %vm613, %v815, %v933
        %935 = vst [vmem:[%s673 + $0x8] sm:$0xff] %v934
        %v936 = vld [vmem:[%s673 + $0x10] sm:$0xff]
        %v937 = vsel %vm613, %v822, %v936
        %938 = vst [vmem:[%s673 + $0x10] sm:$0xff] %v937
        %v939 = vld [vmem:[%s673 + $0x18] sm:$0xff]
        %v940 = vsel %vm613, %v829, %v939
        %941 = vst [vmem:[%s673 + $0x18] sm:$0xff] %v940
        %v942 = vld [vmem:[%s673 + $0x20] sm:$0xff]
        %v943 = vsel %vm613, %v836, %v942
        %944 = vst [vmem:[%s673 + $0x20] sm:$0xff] %v943
        %v945 = vld [vmem:[%s673 + $0x28] sm:$0xff]
        %v946 = vsel %vm613, %v843, %v945
        %947 = vst [vmem:[%s673 + $0x28] sm:$0xff] %v946
        %v948 = vld [vmem:[%s673 + $0x30] sm:$0xff]
        %v949 = vsel %vm613, %v850, %v948
        %950 = vst [vmem:[%s673 + $0x30] sm:$0xff] %v949
        %v951 = vld [vmem:[%s673 + $0x38] sm:$0xff]
        %v952 = vsel %vm613, %v857, %v951
        %953 = vst [vmem:[%s673 + $0x38] sm:$0xff] %v952
        %v954 = vld [vmem:[%s673 + $0x40] sm:$0xff]
        %v955 = vsel %vm613, %v864, %v954
        %956 = vst [vmem:[%s673 + $0x40] sm:$0xff] %v955
        %v957 = vld [vmem:[%s673 + $0x48] sm:$0xff]
        %v958 = vsel %vm613, %v871, %v957
        %959 = vst [vmem:[%s673 + $0x48] sm:$0xff] %v958
        %v960 = vld [vmem:[%s673 + $0x50] sm:$0xff]
        %v961 = vsel %vm613, %v878, %v960
        %962 = vst [vmem:[%s673 + $0x50] sm:$0xff] %v961
        %v963 = vld [vmem:[%s673 + $0x58] sm:$0xff]
        %v964 = vsel %vm613, %v885, %v963
        %965 = vst [vmem:[%s673 + $0x58] sm:$0xff] %v964
        %v966 = vld [vmem:[%s673 + $0x60] sm:$0xff]
        %v967 = vsel %vm613, %v892, %v966
        %968 = vst [vmem:[%s673 + $0x60] sm:$0xff] %v967
        %v969 = vld [vmem:[%s673 + $0x68] sm:$0xff]
        %v970 = vsel %vm613, %v899, %v969
        %971 = vst [vmem:[%s673 + $0x68] sm:$0xff] %v970
        %v972 = vld [vmem:[%s673 + $0x70] sm:$0xff]
        %v973 = vsel %vm613, %v906, %v972
        %974 = vst [vmem:[%s673 + $0x70] sm:$0xff] %v973
        %v975 = vld [vmem:[%s673 + $0x78] sm:$0xff]
        %v976 = vsel %vm613, %v913, %v975
        %977 = vst [vmem:[%s673 + $0x78] sm:$0xff] %v976
        %978 = vrot.lane.b32.xlu0 %v786, 4
        %v979 = vpop.permute.xlu0 %978
        %980 = vrot.lane.b32.xlu0 %v787, 4
        %v981 = vpop.permute.xlu0 %980
        %982 = vrot.lane.b32.xlu0 %v788, 4
        %v983 = vpop.permute.xlu0 %982
        %984 = vrot.lane.b32.xlu0 %v789, 4
        %v985 = vpop.permute.xlu0 %984
        %986 = vrot.lane.b32.xlu0 %v790, 4
        %v987 = vpop.permute.xlu0 %986
        %988 = vrot.lane.b32.xlu0 %v791, 4
        %v989 = vpop.permute.xlu0 %988
        %990 = vrot.lane.b32.xlu0 %v792, 4
        %v991 = vpop.permute.xlu0 %990
        %992 = vrot.lane.b32.xlu0 %v793, 4
        %v993 = vpop.permute.xlu0 %992
        %994 = vrot.lane.b32.xlu0 %v794, 4
        %v995 = vpop.permute.xlu0 %994
        %996 = vrot.lane.b32.xlu0 %v795, 4
        %v997 = vpop.permute.xlu0 %996
        %998 = vrot.lane.b32.xlu0 %v796, 4
        %v999 = vpop.permute.xlu0 %998
        %1000 = vrot.lane.b32.xlu0 %v797, 4
        %v1001 = vpop.permute.xlu0 %1000
        %1002 = vrot.lane.b32.xlu0 %v798, 4
        %v1003 = vpop.permute.xlu0 %1002
        %1004 = vrot.lane.b32.xlu0 %v799, 4
        %v1005 = vpop.permute.xlu0 %1004
        %1006 = vrot.lane.b32.xlu0 %v800, 4
        %v1007 = vpop.permute.xlu0 %1006
        %1008 = vrot.lane.b32.xlu0 %v801, 4
        %v1009 = vpop.permute.xlu0 %1008
        %1026 = vst.msk [vmem:[%s673] sm:$0xff] %vm620, %v979
        %1027 = vst.msk [vmem:[%s673 + $0x8] sm:$0xff] %vm620, %v981
        %1028 = vst.msk [vmem:[%s673 + $0x10] sm:$0xff] %vm620, %v983
        %1029 = vst.msk [vmem:[%s673 + $0x18] sm:$0xff] %vm620, %v985
        %1030 = vst.msk [vmem:[%s673 + $0x20] sm:$0xff] %vm620, %v987
        %1031 = vst.msk [vmem:[%s673 + $0x28] sm:$0xff] %vm620, %v989
        %1032 = vst.msk [vmem:[%s673 + $0x30] sm:$0xff] %vm620, %v991
        %1033 = vst.msk [vmem:[%s673 + $0x38] sm:$0xff] %vm620, %v993
        %1034 = vst.msk [vmem:[%s673 + $0x40] sm:$0xff] %vm620, %v995
        %1035 = vst.msk [vmem:[%s673 + $0x48] sm:$0xff] %vm620, %v997
        %1036 = vst.msk [vmem:[%s673 + $0x50] sm:$0xff] %vm620, %v999
        %1037 = vst.msk [vmem:[%s673 + $0x58] sm:$0xff] %vm620, %v1001
        %1038 = vst.msk [vmem:[%s673 + $0x60] sm:$0xff] %vm620, %v1003
        %1039 = vst.msk [vmem:[%s673 + $0x68] sm:$0xff] %vm620, %v1005
        %1040 = vst.msk [vmem:[%s673 + $0x70] sm:$0xff] %vm620, %v1007
        %1041 = vst.msk [vmem:[%s673 + $0x78] sm:$0xff] %vm620, %v1009
        %v1042 = vrot.slane %v806, 1
        %v1043 = vor.u32 %v803, %v1042
        %v1044 = vrot.slane %v813, 1
        %v1045 = vor.u32 %v810, %v1044
        %v1046 = vrot.slane %v820, 1
        %v1047 = vor.u32 %v817, %v1046
        %v1048 = vrot.slane %v827, 1
        %v1049 = vor.u32 %v824, %v1048
        %v1050 = vrot.slane %v834, 1
        %v1051 = vor.u32 %v831, %v1050
        %v1052 = vrot.slane %v841, 1
        %v1053 = vor.u32 %v838, %v1052
        %v1054 = vrot.slane %v848, 1
        %v1055 = vor.u32 %v845, %v1054
        %v1056 = vrot.slane %v855, 1
        %v1057 = vor.u32 %v852, %v1056
        %v1058 = vrot.slane %v862, 1
        %v1059 = vor.u32 %v859, %v1058
        %v1060 = vrot.slane %v869, 1
        %v1061 = vor.u32 %v866, %v1060
        %v1062 = vrot.slane %v876, 1
        %v1063 = vor.u32 %v873, %v1062
        %v1064 = vrot.slane %v883, 1
        %v1065 = vor.u32 %v880, %v1064
        %v1066 = vrot.slane %v890, 1
        %v1067 = vor.u32 %v887, %v1066
        %v1068 = vrot.slane %v897, 1
        %v1069 = vor.u32 %v894, %v1068
        %v1070 = vrot.slane %v904, 1
        %v1071 = vor.u32 %v901, %v1070
        %v1072 = vrot.slane %v911, 1
        %v1073 = vor.u32 %v908, %v1072
        %1074 = vrot.lane.b32.xlu0 %v1043, 8
        %v1075 = vpop.permute.xlu0 %1074
        %1076 = vrot.lane.b32.xlu0 %v1045, 8
        %v1077 = vpop.permute.xlu0 %1076
        %1078 = vrot.lane.b32.xlu0 %v1047, 8
        %v1079 = vpop.permute.xlu0 %1078
        %1080 = vrot.lane.b32.xlu0 %v1049, 8
        %v1081 = vpop.permute.xlu0 %1080
        %1082 = vrot.lane.b32.xlu0 %v1051, 8
        %v1083 = vpop.permute.xlu0 %1082
        %1084 = vrot.lane.b32.xlu0 %v1053, 8
        %v1085 = vpop.permute.xlu0 %1084
        %1086 = vrot.lane.b32.xlu0 %v1055, 8
        %v1087 = vpop.permute.xlu0 %1086
        %1088 = vrot.lane.b32.xlu0 %v1057, 8
        %v1089 = vpop.permute.xlu0 %1088
        %1090 = vrot.lane.b32.xlu0 %v1059, 8
        %v1091 = vpop.permute.xlu0 %1090
        %1092 = vrot.lane.b32.xlu0 %v1061, 8
        %v1093 = vpop.permute.xlu0 %1092
        %1094 = vrot.lane.b32.xlu0 %v1063, 8
        %v1095 = vpop.permute.xlu0 %1094
        %1096 = vrot.lane.b32.xlu0 %v1065, 8
        %v1097 = vpop.permute.xlu0 %1096
        %1098 = vrot.lane.b32.xlu0 %v1067, 8
        %v1099 = vpop.permute.xlu0 %1098
        %1100 = vrot.lane.b32.xlu0 %v1069, 8
        %v1101 = vpop.permute.xlu0 %1100
        %1102 = vrot.lane.b32.xlu0 %v1071, 8
        %v1103 = vpop.permute.xlu0 %1102
        %1104 = vrot.lane.b32.xlu0 %v1073, 8
        %v1105 = vpop.permute.xlu0 %1104
        %v1122 = vld [vmem:[%s673] sm:$0xff]
        %v1123 = vsel %vm625, %v1075, %v1122
        %1124 = vst [vmem:[%s673] sm:$0xff] %v1123
        %v1125 = vld [vmem:[%s673 + $0x8] sm:$0xff]
        %v1126 = vsel %vm625, %v1077, %v1125
        %1127 = vst [vmem:[%s673 + $0x8] sm:$0xff] %v1126
        %v1128 = vld [vmem:[%s673 + $0x10] sm:$0xff]
        %v1129 = vsel %vm625, %v1079, %v1128
        %1130 = vst [vmem:[%s673 + $0x10] sm:$0xff] %v1129
        %v1131 = vld [vmem:[%s673 + $0x18] sm:$0xff]
        %v1132 = vsel %vm625, %v1081, %v1131
        %1133 = vst [vmem:[%s673 + $0x18] sm:$0xff] %v1132
        %v1134 = vld [vmem:[%s673 + $0x20] sm:$0xff]
        %v1135 = vsel %vm625, %v1083, %v1134
        %1136 = vst [vmem:[%s673 + $0x20] sm:$0xff] %v1135
        %v1137 = vld [vmem:[%s673 + $0x28] sm:$0xff]
        %v1138 = vsel %vm625, %v1085, %v1137
        %1139 = vst [vmem:[%s673 + $0x28] sm:$0xff] %v1138
        %v1140 = vld [vmem:[%s673 + $0x30] sm:$0xff]
        %v1141 = vsel %vm625, %v1087, %v1140
        %1142 = vst [vmem:[%s673 + $0x30] sm:$0xff] %v1141
        %v1143 = vld [vmem:[%s673 + $0x38] sm:$0xff]
        %v1144 = vsel %vm625, %v1089, %v1143
        %1145 = vst [vmem:[%s673 + $0x38] sm:$0xff] %v1144
        %v1146 = vld [vmem:[%s673 + $0x40] sm:$0xff]
        %v1147 = vsel %vm625, %v1091, %v1146
        %1148 = vst [vmem:[%s673 + $0x40] sm:$0xff] %v1147
        %v1149 = vld [vmem:[%s673 + $0x48] sm:$0xff]
        %v1150 = vsel %vm625, %v1093, %v1149
        %1151 = vst [vmem:[%s673 + $0x48] sm:$0xff] %v1150
        %v1152 = vld [vmem:[%s673 + $0x50] sm:$0xff]
        %v1153 = vsel %vm625, %v1095, %v1152
        %1154 = vst [vmem:[%s673 + $0x50] sm:$0xff] %v1153
        %v1155 = vld [vmem:[%s673 + $0x58] sm:$0xff]
        %v1156 = vsel %vm625, %v1097, %v1155
        %1157 = vst [vmem:[%s673 + $0x58] sm:$0xff] %v1156
        %v1158 = vld [vmem:[%s673 + $0x60] sm:$0xff]
        %v1159 = vsel %vm625, %v1099, %v1158
        %1160 = vst [vmem:[%s673 + $0x60] sm:$0xff] %v1159
        %v1161 = vld [vmem:[%s673 + $0x68] sm:$0xff]
        %v1162 = vsel %vm625, %v1101, %v1161
        %1163 = vst [vmem:[%s673 + $0x68] sm:$0xff] %v1162
        %v1164 = vld [vmem:[%s673 + $0x70] sm:$0xff]
        %v1165 = vsel %vm625, %v1103, %v1164
        %1166 = vst [vmem:[%s673 + $0x70] sm:$0xff] %v1165
        %v1167 = vld [vmem:[%s673 + $0x78] sm:$0xff]
        %v1168 = vsel %vm625, %v1105, %v1167
        %1169 = vst [vmem:[%s673 + $0x78] sm:$0xff] %v1168
        %v1170 = vld [vmem:[%s673] sm:$0x80]
        %v1171 = vsel %vm634, 0, %v1170
        %1172 = vst [vmem:[%s673] sm:$0x80] %v1171
        %v1173 = vld [vmem:[%s673 + $0x8] sm:$0x80]
        %v1174 = vsel %vm634, 0, %v1173
        %1175 = vst [vmem:[%s673 + $0x8] sm:$0x80] %v1174
        %v1176 = vld [vmem:[%s673 + $0x10] sm:$0x80]
        %v1177 = vsel %vm634, 0, %v1176
        %1178 = vst [vmem:[%s673 + $0x10] sm:$0x80] %v1177
        %v1179 = vld [vmem:[%s673 + $0x18] sm:$0x80]
        %v1180 = vsel %vm634, 0, %v1179
        %1181 = vst [vmem:[%s673 + $0x18] sm:$0x80] %v1180
        %v1182 = vld [vmem:[%s673 + $0x20] sm:$0x80]
        %v1183 = vsel %vm634, 0, %v1182
        %1184 = vst [vmem:[%s673 + $0x20] sm:$0x80] %v1183
        %v1185 = vld [vmem:[%s673 + $0x28] sm:$0x80]
        %v1186 = vsel %vm634, 0, %v1185
        %1187 = vst [vmem:[%s673 + $0x28] sm:$0x80] %v1186
        %v1188 = vld [vmem:[%s673 + $0x30] sm:$0x80]
        %v1189 = vsel %vm634, 0, %v1188
        %1190 = vst [vmem:[%s673 + $0x30] sm:$0x80] %v1189
        %v1191 = vld [vmem:[%s673 + $0x38] sm:$0x80]
        %v1192 = vsel %vm634, 0, %v1191
        %1193 = vst [vmem:[%s673 + $0x38] sm:$0x80] %v1192
        %v1194 = vld [vmem:[%s673 + $0x40] sm:$0x80]
        %v1195 = vsel %vm634, 0, %v1194
        %1196 = vst [vmem:[%s673 + $0x40] sm:$0x80] %v1195
        %v1197 = vld [vmem:[%s673 + $0x48] sm:$0x80]
        %v1198 = vsel %vm634, 0, %v1197
        %1199 = vst [vmem:[%s673 + $0x48] sm:$0x80] %v1198
        %v1200 = vld [vmem:[%s673 + $0x50] sm:$0x80]
        %v1201 = vsel %vm634, 0, %v1200
        %1202 = vst [vmem:[%s673 + $0x50] sm:$0x80] %v1201
        %v1203 = vld [vmem:[%s673 + $0x58] sm:$0x80]
        %v1204 = vsel %vm634, 0, %v1203
        %1205 = vst [vmem:[%s673 + $0x58] sm:$0x80] %v1204
        %v1206 = vld [vmem:[%s673 + $0x60] sm:$0x80]
        %v1207 = vsel %vm634, 0, %v1206
        %1208 = vst [vmem:[%s673 + $0x60] sm:$0x80] %v1207
        %v1209 = vld [vmem:[%s673 + $0x68] sm:$0x80]
        %v1210 = vsel %vm634, 0, %v1209
        %1211 = vst [vmem:[%s673 + $0x68] sm:$0x80] %v1210
        %v1212 = vld [vmem:[%s673 + $0x70] sm:$0x80]
        %v1213 = vsel %vm634, 0, %v1212
        %1214 = vst [vmem:[%s673 + $0x70] sm:$0x80] %v1213
        %v1215 = vld [vmem:[%s673 + $0x78] sm:$0x80]
        %v1216 = vsel %vm634, 0, %v1215
        %1217 = vst [vmem:[%s673 + $0x78] sm:$0x80] %v1216
        %s1218 = scalar_lea.vmem [#allocation2], 144
        %v1219 = vld [vmem:[%s1218] sm:$0x1]
        %v1220 = vsel %vm604, 0, %v1219
        %1221 = vst [vmem:[%s1218] sm:$0x1] %v1220
        %v1222 = vld [vmem:[%s1218 + $0x8] sm:$0x1]
        %v1223 = vsel %vm604, 0, %v1222
        %1224 = vst [vmem:[%s1218 + $0x8] sm:$0x1] %v1223
        %v1225 = vld [vmem:[%s1218] sm:$0xff]
        %v1226 = vsel %vm613, 0, %v1225
        %1227 = vst [vmem:[%s1218] sm:$0xff] %v1226
        %v1228 = vld [vmem:[%s1218 + $0x8] sm:$0xff]
        %v1229 = vsel %vm613, 0, %v1228
        %1230 = vst [vmem:[%s1218 + $0x8] sm:$0xff] %v1229
        %1231 = vst.msk [vmem:[%s1218] sm:$0xff] %vm620, 0
        %1232 = vst.msk [vmem:[%s1218 + $0x8] sm:$0xff] %vm620, 0
        %v1233 = vld [vmem:[%s1218] sm:$0xff]
        %v1234 = vsel %vm625, 0, %v1233
        %1235 = vst [vmem:[%s1218] sm:$0xff] %v1234
        %v1236 = vld [vmem:[%s1218 + $0x8] sm:$0xff]
        %v1237 = vsel %vm625, 0, %v1236
        %1238 = vst [vmem:[%s1218 + $0x8] sm:$0xff] %v1237
        %v1239 = vld [vmem:[%s1218] sm:$0x80]
        %v1240 = vsel %vm634, 0, %v1239
        %1241 = vst [vmem:[%s1218] sm:$0x80] %v1240
        %v1242 = vld [vmem:[%s1218 + $0x8] sm:$0x80]
        %v1243 = vsel %vm634, 0, %v1242
        %1244 = vst [vmem:[%s1218 + $0x8] sm:$0x80] %v1243
        %vm1245 = vcmask 122976
        %vm1246 = vmand %vm1245, %vm603
        %v1247 = vld [vmem:[#allocation2] sm:$0x1]
        %v1248 = vsel %vm1246, 0, %v1247
        %1249 = vst [vmem:[#allocation2] sm:$0x1] %v1248
        %v1250 = vld [vmem:[#allocation2 + $0x8] sm:$0x1]
        %v1251 = vsel %vm1246, 0, %v1250
        %1252 = vst [vmem:[#allocation2 + $0x8] sm:$0x1] %v1251
        %vm1253 = vcmask 130144
        %vm1254 = vmand %vm1253, %vm612
        %v1255 = vld [vmem:[#allocation2] sm:$0xff]
        %v1256 = vsel %vm1254, 0, %v1255
        %1257 = vst [vmem:[#allocation2] sm:$0xff] %v1256
        %v1258 = vld [vmem:[#allocation2 + $0x8] sm:$0xff]
        %v1259 = vsel %vm1254, 0, %v1258
        %1260 = vst [vmem:[#allocation2 + $0x8] sm:$0xff] %v1259
        %vm1261 = vcmask 162944
        %1262 = vst.msk [vmem:[#allocation2] sm:$0xff] %vm1261, 0
        %1263 = vst.msk [vmem:[#allocation2 + $0x8] sm:$0xff] %vm1261, 0
        %vm1264 = vcmask 195744
        %vm1265 = vmand %vm1264, %vm624
        %v1266 = vld [vmem:[#allocation2] sm:$0xff]
        %v1267 = vsel %vm1265, 0, %v1266
        %1268 = vst [vmem:[#allocation2] sm:$0xff] %v1267
        %v1269 = vld [vmem:[#allocation2 + $0x8] sm:$0xff]
        %v1270 = vsel %vm1265, 0, %v1269
        %1271 = vst [vmem:[#allocation2 + $0x8] sm:$0xff] %v1270
        %vm1272 = vcmask 195751
        %vm1273 = vmand %vm1272, %vm633
        %v1274 = vld [vmem:[#allocation2] sm:$0x80]
        %v1275 = vsel %vm1273, 0, %v1274
        %1276 = vst [vmem:[#allocation2] sm:$0x80] %v1275
        %v1277 = vld [vmem:[#allocation2 + $0x8] sm:$0x80]
        %v1278 = vsel %vm1273, 0, %v1277
        %1279 = vst [vmem:[#allocation2 + $0x8] sm:$0x80] %v1278
        %v1280 = vld [vmem:[%s568] sm:$0xf]
        %v1281 = vld [vmem:[%s568 + $0x4] sm:$0xf]
        %v1282 = vld [vmem:[%s568 + $0x8] sm:$0xf]
        %v1283 = vld [vmem:[%s568 + $0xc] sm:$0xf]
        %v1284 = vld [vmem:[%s568 + $0x10] sm:$0xf]
        %v1285 = vld [vmem:[%s568 + $0x14] sm:$0xf]
        %v1286 = vld [vmem:[%s568 + $0x18] sm:$0xf]
        %v1287 = vld [vmem:[%s568 + $0x1c] sm:$0xf]
        %v1288 = vld [vmem:[%s568 + $0x20] sm:$0xf]
        %v1289 = vld [vmem:[%s568 + $0x24] sm:$0xf]
        %v1290 = vld [vmem:[%s568 + $0x28] sm:$0xf]
        %v1291 = vld [vmem:[%s568 + $0x2c] sm:$0xf]
        %v1292 = vld [vmem:[%s568 + $0x30] sm:$0xf]
        %v1293 = vld [vmem:[%s568 + $0x34] sm:$0xf]
        %v1294 = vld [vmem:[%s568 + $0x38] sm:$0xf]
        %v1295 = vld [vmem:[%s568 + $0x3c] sm:$0xf]
        %v1296 = vld [vmem:[%s568 + $0x40] sm:$0xf]
        %v1297 = vld [vmem:[%s568 + $0x44] sm:$0xf]
        %v1298 = vld [vmem:[%s568 + $0x48] sm:$0xf]
        %v1299 = vld [vmem:[%s568 + $0x4c] sm:$0xf]
        %v1300 = vld [vmem:[%s568 + $0x50] sm:$0xf]
        %v1301 = vld [vmem:[%s568 + $0x54] sm:$0xf]
        %v1302 = vld [vmem:[%s568 + $0x58] sm:$0xf]
        %v1303 = vld [vmem:[%s568 + $0x5c] sm:$0xf]
        %v1304 = vld [vmem:[%s568 + $0x60] sm:$0xf]
        %v1305 = vld [vmem:[%s568 + $0x64] sm:$0xf]
        %v1306 = vld [vmem:[%s568 + $0x68] sm:$0xf]
        %v1307 = vld [vmem:[%s568 + $0x6c] sm:$0xf]
        %v1308 = vld [vmem:[%s568 + $0x70] sm:$0xf]
        %v1309 = vld [vmem:[%s568 + $0x74] sm:$0xf]
        %v1310 = vld [vmem:[%s568 + $0x78] sm:$0xf]
        %v1311 = vld [vmem:[%s568 + $0x7c] sm:$0xf]
        %v1312 = vld [vmem:[%s673] sm:$0x1]
        %v1313 = vsel %vm1246, 0, %v1312
        %1314 = vst [vmem:[%s673] sm:$0x1] %v1313
        %v1315 = vld [vmem:[%s673 + $0x8] sm:$0x1]
        %v1316 = vsel %vm1246, 0, %v1315
        %1317 = vst [vmem:[%s673 + $0x8] sm:$0x1] %v1316
        %v1318 = vld [vmem:[%s673 + $0x10] sm:$0x1]
        %v1319 = vsel %vm1246, 0, %v1318
        %1320 = vst [vmem:[%s673 + $0x10] sm:$0x1] %v1319
        %v1321 = vld [vmem:[%s673 + $0x18] sm:$0x1]
        %v1322 = vsel %vm1246, 0, %v1321
        %1323 = vst [vmem:[%s673 + $0x18] sm:$0x1] %v1322
        %v1324 = vld [vmem:[%s673 + $0x20] sm:$0x1]
        %v1325 = vsel %vm1246, 0, %v1324
        %1326 = vst [vmem:[%s673 + $0x20] sm:$0x1] %v1325
        %v1327 = vld [vmem:[%s673 + $0x28] sm:$0x1]
        %v1328 = vsel %vm1246, 0, %v1327
        %1329 = vst [vmem:[%s673 + $0x28] sm:$0x1] %v1328
        %v1330 = vld [vmem:[%s673 + $0x30] sm:$0x1]
        %v1331 = vsel %vm1246, 0, %v1330
        %1332 = vst [vmem:[%s673 + $0x30] sm:$0x1] %v1331
        %v1333 = vld [vmem:[%s673 + $0x38] sm:$0x1]
        %v1334 = vsel %vm1246, 0, %v1333
        %1335 = vst [vmem:[%s673 + $0x38] sm:$0x1] %v1334
        %v1336 = vld [vmem:[%s673 + $0x40] sm:$0x1]
        %v1337 = vsel %vm1246, 0, %v1336
        %1338 = vst [vmem:[%s673 + $0x40] sm:$0x1] %v1337
        %v1339 = vld [vmem:[%s673 + $0x48] sm:$0x1]
        %v1340 = vsel %vm1246, 0, %v1339
        %1341 = vst [vmem:[%s673 + $0x48] sm:$0x1] %v1340
        %v1342 = vld [vmem:[%s673 + $0x50] sm:$0x1]
        %v1343 = vsel %vm1246, 0, %v1342
        %1344 = vst [vmem:[%s673 + $0x50] sm:$0x1] %v1343
        %v1345 = vld [vmem:[%s673 + $0x58] sm:$0x1]
        %v1346 = vsel %vm1246, 0, %v1345
        %1347 = vst [vmem:[%s673 + $0x58] sm:$0x1] %v1346
        %v1348 = vld [vmem:[%s673 + $0x60] sm:$0x1]
        %v1349 = vsel %vm1246, 0, %v1348
        %1350 = vst [vmem:[%s673 + $0x60] sm:$0x1] %v1349
        %v1351 = vld [vmem:[%s673 + $0x68] sm:$0x1]
        %v1352 = vsel %vm1246, 0, %v1351
        %1353 = vst [vmem:[%s673 + $0x68] sm:$0x1] %v1352
        %v1354 = vld [vmem:[%s673 + $0x70] sm:$0x1]
        %v1355 = vsel %vm1246, 0, %v1354
        %1356 = vst [vmem:[%s673 + $0x70] sm:$0x1] %v1355
        %v1357 = vld [vmem:[%s673 + $0x78] sm:$0x1]
        %v1358 = vsel %vm1246, 0, %v1357
        %1359 = vst [vmem:[%s673 + $0x78] sm:$0x1] %v1358
        %v1392 = vunpack.c.l.b16 %v1280
        %v1393 = vunpack.c.l.b16 %v1281
        %v1394 = vunpack.c.l.b16 %v1282
        %v1395 = vunpack.c.l.b16 %v1283
        %v1396 = vunpack.c.l.b16 %v1284
        %v1397 = vunpack.c.l.b16 %v1285
        %v1398 = vunpack.c.l.b16 %v1286
        %v1399 = vunpack.c.l.b16 %v1287
        %v1400 = vunpack.c.l.b16 %v1288
        %v1401 = vunpack.c.l.b16 %v1289
        %v1402 = vunpack.c.l.b16 %v1290
        %v1403 = vunpack.c.l.b16 %v1291
        %v1404 = vunpack.c.l.b16 %v1292
        %v1405 = vunpack.c.l.b16 %v1293
        %v1406 = vunpack.c.l.b16 %v1294
        %v1407 = vunpack.c.l.b16 %v1295
        %v1408 = vunpack.c.l.b16 %v1296
        %v1409 = vunpack.c.l.b16 %v1297
        %v1410 = vunpack.c.l.b16 %v1298
        %v1411 = vunpack.c.l.b16 %v1299
        %v1412 = vunpack.c.l.b16 %v1300
        %v1413 = vunpack.c.l.b16 %v1301
        %v1414 = vunpack.c.l.b16 %v1302
        %v1415 = vunpack.c.l.b16 %v1303
        %v1416 = vunpack.c.l.b16 %v1304
        %v1417 = vunpack.c.l.b16 %v1305
        %v1418 = vunpack.c.l.b16 %v1306
        %v1419 = vunpack.c.l.b16 %v1307
        %v1420 = vunpack.c.l.b16 %v1308
        %v1421 = vunpack.c.l.b16 %v1309
        %v1422 = vunpack.c.l.b16 %v1310
        %v1423 = vunpack.c.l.b16 %v1311
        %v1424 = vpack.c.b16 %v1393, %v1392
        %v1425 = vpack.c.b16 %v1395, %v1394
        %v1426 = vpack.c.b16 %v1397, %v1396
        %v1427 = vpack.c.b16 %v1399, %v1398
        %v1428 = vpack.c.b16 %v1401, %v1400
        %v1429 = vpack.c.b16 %v1403, %v1402
        %v1430 = vpack.c.b16 %v1405, %v1404
        %v1431 = vpack.c.b16 %v1407, %v1406
        %v1432 = vpack.c.b16 %v1409, %v1408
        %v1433 = vpack.c.b16 %v1411, %v1410
        %v1434 = vpack.c.b16 %v1413, %v1412
        %v1435 = vpack.c.b16 %v1415, %v1414
        %v1436 = vpack.c.b16 %v1417, %v1416
        %v1437 = vpack.c.b16 %v1419, %v1418
        %v1438 = vpack.c.b16 %v1421, %v1420
        %v1439 = vpack.c.b16 %v1423, %v1422
        %v1441 = vshrl.u32 %v1424, 16
        %v1443 = vrot.slane %v1441, 7
        %v1444 = vshll.u32 %v1424, 16
        %v1446 = vor.u32 %v1443, %v1444
        %v1448 = vshrl.u32 %v1425, 16
        %v1450 = vrot.slane %v1448, 7
        %v1451 = vshll.u32 %v1425, 16
        %v1453 = vor.u32 %v1450, %v1451
        %v1455 = vshrl.u32 %v1426, 16
        %v1457 = vrot.slane %v1455, 7
        %v1458 = vshll.u32 %v1426, 16
        %v1460 = vor.u32 %v1457, %v1458
        %v1462 = vshrl.u32 %v1427, 16
        %v1464 = vrot.slane %v1462, 7
        %v1465 = vshll.u32 %v1427, 16
        %v1467 = vor.u32 %v1464, %v1465
        %v1469 = vshrl.u32 %v1428, 16
        %v1471 = vrot.slane %v1469, 7
        %v1472 = vshll.u32 %v1428, 16
        %v1474 = vor.u32 %v1471, %v1472
        %v1476 = vshrl.u32 %v1429, 16
        %v1478 = vrot.slane %v1476, 7
        %v1479 = vshll.u32 %v1429, 16
        %v1481 = vor.u32 %v1478, %v1479
        %v1483 = vshrl.u32 %v1430, 16
        %v1485 = vrot.slane %v1483, 7
        %v1486 = vshll.u32 %v1430, 16
        %v1488 = vor.u32 %v1485, %v1486
        %v1490 = vshrl.u32 %v1431, 16
        %v1492 = vrot.slane %v1490, 7
        %v1493 = vshll.u32 %v1431, 16
        %v1495 = vor.u32 %v1492, %v1493
        %v1497 = vshrl.u32 %v1432, 16
        %v1499 = vrot.slane %v1497, 7
        %v1500 = vshll.u32 %v1432, 16
        %v1502 = vor.u32 %v1499, %v1500
        %v1504 = vshrl.u32 %v1433, 16
        %v1506 = vrot.slane %v1504, 7
        %v1507 = vshll.u32 %v1433, 16
        %v1509 = vor.u32 %v1506, %v1507
        %v1511 = vshrl.u32 %v1434, 16
        %v1513 = vrot.slane %v1511, 7
        %v1514 = vshll.u32 %v1434, 16
        %v1516 = vor.u32 %v1513, %v1514
        %v1518 = vshrl.u32 %v1435, 16
        %v1520 = vrot.slane %v1518, 7
        %v1521 = vshll.u32 %v1435, 16
        %v1523 = vor.u32 %v1520, %v1521
        %v1525 = vshrl.u32 %v1436, 16
        %v1527 = vrot.slane %v1525, 7
        %v1528 = vshll.u32 %v1436, 16
        %v1530 = vor.u32 %v1527, %v1528
        %v1532 = vshrl.u32 %v1437, 16
        %v1534 = vrot.slane %v1532, 7
        %v1535 = vshll.u32 %v1437, 16
        %v1537 = vor.u32 %v1534, %v1535
        %v1539 = vshrl.u32 %v1438, 16
        %v1541 = vrot.slane %v1539, 7
        %v1542 = vshll.u32 %v1438, 16
        %v1544 = vor.u32 %v1541, %v1542
        %v1546 = vshrl.u32 %v1439, 16
        %v1548 = vrot.slane %v1546, 7
        %v1549 = vshll.u32 %v1439, 16
        %v1551 = vor.u32 %v1548, %v1549
        %1552 = vrot.lane.b32.xlu0 %v1446, 12
        %v1553 = vpop.permute.xlu0 %1552
        %1554 = vrot.lane.b32.xlu0 %v1453, 12
        %v1555 = vpop.permute.xlu0 %1554
        %1556 = vrot.lane.b32.xlu0 %v1460, 12
        %v1557 = vpop.permute.xlu0 %1556
        %1558 = vrot.lane.b32.xlu0 %v1467, 12
        %v1559 = vpop.permute.xlu0 %1558
        %1560 = vrot.lane.b32.xlu0 %v1474, 12
        %v1561 = vpop.permute.xlu0 %1560
        %1562 = vrot.lane.b32.xlu0 %v1481, 12
        %v1563 = vpop.permute.xlu0 %1562
        %1564 = vrot.lane.b32.xlu0 %v1488, 12
        %v1565 = vpop.permute.xlu0 %1564
        %1566 = vrot.lane.b32.xlu0 %v1495, 12
        %v1567 = vpop.permute.xlu0 %1566
        %1568 = vrot.lane.b32.xlu0 %v1502, 12
        %v1569 = vpop.permute.xlu0 %1568
        %1570 = vrot.lane.b32.xlu0 %v1509, 12
        %v1571 = vpop.permute.xlu0 %1570
        %1572 = vrot.lane.b32.xlu0 %v1516, 12
        %v1573 = vpop.permute.xlu0 %1572
        %1574 = vrot.lane.b32.xlu0 %v1523, 12
        %v1575 = vpop.permute.xlu0 %1574
        %1576 = vrot.lane.b32.xlu0 %v1530, 12
        %v1577 = vpop.permute.xlu0 %1576
        %1578 = vrot.lane.b32.xlu0 %v1537, 12
        %v1579 = vpop.permute.xlu0 %1578
        %1580 = vrot.lane.b32.xlu0 %v1544, 12
        %v1581 = vpop.permute.xlu0 %1580
        %1582 = vrot.lane.b32.xlu0 %v1551, 12
        %v1583 = vpop.permute.xlu0 %1582
        %v1600 = vld [vmem:[%s673] sm:$0xff]
        %v1601 = vsel %vm1254, %v1553, %v1600
        %1602 = vst [vmem:[%s673] sm:$0xff] %v1601
        %v1603 = vld [vmem:[%s673 + $0x8] sm:$0xff]
        %v1604 = vsel %vm1254, %v1555, %v1603
        %1605 = vst [vmem:[%s673 + $0x8] sm:$0xff] %v1604
        %v1606 = vld [vmem:[%s673 + $0x10] sm:$0xff]
        %v1607 = vsel %vm1254, %v1557, %v1606
        %1608 = vst [vmem:[%s673 + $0x10] sm:$0xff] %v1607
        %v1609 = vld [vmem:[%s673 + $0x18] sm:$0xff]
        %v1610 = vsel %vm1254, %v1559, %v1609
        %1611 = vst [vmem:[%s673 + $0x18] sm:$0xff] %v1610
        %v1612 = vld [vmem:[%s673 + $0x20] sm:$0xff]
        %v1613 = vsel %vm1254, %v1561, %v1612
        %1614 = vst [vmem:[%s673 + $0x20] sm:$0xff] %v1613
        %v1615 = vld [vmem:[%s673 + $0x28] sm:$0xff]
        %v1616 = vsel %vm1254, %v1563, %v1615
        %1617 = vst [vmem:[%s673 + $0x28] sm:$0xff] %v1616
        %v1618 = vld [vmem:[%s673 + $0x30] sm:$0xff]
        %v1619 = vsel %vm1254, %v1565, %v1618
        %1620 = vst [vmem:[%s673 + $0x30] sm:$0xff] %v1619
        %v1621 = vld [vmem:[%s673 + $0x38] sm:$0xff]
        %v1622 = vsel %vm1254, %v1567, %v1621
        %1623 = vst [vmem:[%s673 + $0x38] sm:$0xff] %v1622
        %v1624 = vld [vmem:[%s673 + $0x40] sm:$0xff]
        %v1625 = vsel %vm1254, %v1569, %v1624
        %1626 = vst [vmem:[%s673 + $0x40] sm:$0xff] %v1625
        %v1627 = vld [vmem:[%s673 + $0x48] sm:$0xff]
        %v1628 = vsel %vm1254, %v1571, %v1627
        %1629 = vst [vmem:[%s673 + $0x48] sm:$0xff] %v1628
        %v1630 = vld [vmem:[%s673 + $0x50] sm:$0xff]
        %v1631 = vsel %vm1254, %v1573, %v1630
        %1632 = vst [vmem:[%s673 + $0x50] sm:$0xff] %v1631
        %v1633 = vld [vmem:[%s673 + $0x58] sm:$0xff]
        %v1634 = vsel %vm1254, %v1575, %v1633
        %1635 = vst [vmem:[%s673 + $0x58] sm:$0xff] %v1634
        %v1636 = vld [vmem:[%s673 + $0x60] sm:$0xff]
        %v1637 = vsel %vm1254, %v1577, %v1636
        %1638 = vst [vmem:[%s673 + $0x60] sm:$0xff] %v1637
        %v1639 = vld [vmem:[%s673 + $0x68] sm:$0xff]
        %v1640 = vsel %vm1254, %v1579, %v1639
        %1641 = vst [vmem:[%s673 + $0x68] sm:$0xff] %v1640
        %v1642 = vld [vmem:[%s673 + $0x70] sm:$0xff]
        %v1643 = vsel %vm1254, %v1581, %v1642
        %1644 = vst [vmem:[%s673 + $0x70] sm:$0xff] %v1643
        %v1645 = vld [vmem:[%s673 + $0x78] sm:$0xff]
        %v1646 = vsel %vm1254, %v1583, %v1645
        %1647 = vst [vmem:[%s673 + $0x78] sm:$0xff] %v1646
        %1648 = vrot.lane.b32.xlu0 %v1424, 16
        %v1649 = vpop.permute.xlu0 %1648
        %1650 = vrot.lane.b32.xlu0 %v1425, 16
        %v1651 = vpop.permute.xlu0 %1650
        %1652 = vrot.lane.b32.xlu0 %v1426, 16
        %v1653 = vpop.permute.xlu0 %1652
        %1654 = vrot.lane.b32.xlu0 %v1427, 16
        %v1655 = vpop.permute.xlu0 %1654
        %1656 = vrot.lane.b32.xlu0 %v1428, 16
        %v1657 = vpop.permute.xlu0 %1656
        %1658 = vrot.lane.b32.xlu0 %v1429, 16
        %v1659 = vpop.permute.xlu0 %1658
        %1660 = vrot.lane.b32.xlu0 %v1430, 16
        %v1661 = vpop.permute.xlu0 %1660
        %1662 = vrot.lane.b32.xlu0 %v1431, 16
        %v1663 = vpop.permute.xlu0 %1662
        %1664 = vrot.lane.b32.xlu0 %v1432, 16
        %v1665 = vpop.permute.xlu0 %1664
        %1666 = vrot.lane.b32.xlu0 %v1433, 16
        %v1667 = vpop.permute.xlu0 %1666
        %1668 = vrot.lane.b32.xlu0 %v1434, 16
        %v1669 = vpop.permute.xlu0 %1668
        %1670 = vrot.lane.b32.xlu0 %v1435, 16
        %v1671 = vpop.permute.xlu0 %1670
        %1672 = vrot.lane.b32.xlu0 %v1436, 16
        %v1673 = vpop.permute.xlu0 %1672
        %1674 = vrot.lane.b32.xlu0 %v1437, 16
        %v1675 = vpop.permute.xlu0 %1674
        %1676 = vrot.lane.b32.xlu0 %v1438, 16
        %v1677 = vpop.permute.xlu0 %1676
        %1678 = vrot.lane.b32.xlu0 %v1439, 16
        %v1679 = vpop.permute.xlu0 %1678
        %1696 = vst.msk [vmem:[%s673] sm:$0xff] %vm1261, %v1649
        %1697 = vst.msk [vmem:[%s673 + $0x8] sm:$0xff] %vm1261, %v1651
        %1698 = vst.msk [vmem:[%s673 + $0x10] sm:$0xff] %vm1261, %v1653
        %1699 = vst.msk [vmem:[%s673 + $0x18] sm:$0xff] %vm1261, %v1655
        %1700 = vst.msk [vmem:[%s673 + $0x20] sm:$0xff] %vm1261, %v1657
        %1701 = vst.msk [vmem:[%s673 + $0x28] sm:$0xff] %vm1261, %v1659
        %1702 = vst.msk [vmem:[%s673 + $0x30] sm:$0xff] %vm1261, %v1661
        %1703 = vst.msk [vmem:[%s673 + $0x38] sm:$0xff] %vm1261, %v1663
        %1704 = vst.msk [vmem:[%s673 + $0x40] sm:$0xff] %vm1261, %v1665
        %1705 = vst.msk [vmem:[%s673 + $0x48] sm:$0xff] %vm1261, %v1667
        %1706 = vst.msk [vmem:[%s673 + $0x50] sm:$0xff] %vm1261, %v1669
        %1707 = vst.msk [vmem:[%s673 + $0x58] sm:$0xff] %vm1261, %v1671
        %1708 = vst.msk [vmem:[%s673 + $0x60] sm:$0xff] %vm1261, %v1673
        %1709 = vst.msk [vmem:[%s673 + $0x68] sm:$0xff] %vm1261, %v1675
        %1710 = vst.msk [vmem:[%s673 + $0x70] sm:$0xff] %vm1261, %v1677
        %1711 = vst.msk [vmem:[%s673 + $0x78] sm:$0xff] %vm1261, %v1679
        %v1712 = vrot.slane %v1444, 1
        %v1713 = vor.u32 %v1441, %v1712
        %v1714 = vrot.slane %v1451, 1
        %v1715 = vor.u32 %v1448, %v1714
        %v1716 = vrot.slane %v1458, 1
        %v1717 = vor.u32 %v1455, %v1716
        %v1718 = vrot.slane %v1465, 1
        %v1719 = vor.u32 %v1462, %v1718
        %v1720 = vrot.slane %v1472, 1
        %v1721 = vor.u32 %v1469, %v1720
        %v1722 = vrot.slane %v1479, 1
        %v1723 = vor.u32 %v1476, %v1722
        %v1724 = vrot.slane %v1486, 1
        %v1725 = vor.u32 %v1483, %v1724
        %v1726 = vrot.slane %v1493, 1
        %v1727 = vor.u32 %v1490, %v1726
        %v1728 = vrot.slane %v1500, 1
        %v1729 = vor.u32 %v1497, %v1728
        %v1730 = vrot.slane %v1507, 1
        %v1731 = vor.u32 %v1504, %v1730
        %v1732 = vrot.slane %v1514, 1
        %v1733 = vor.u32 %v1511, %v1732
        %v1734 = vrot.slane %v1521, 1
        %v1735 = vor.u32 %v1518, %v1734
        %v1736 = vrot.slane %v1528, 1
        %v1737 = vor.u32 %v1525, %v1736
        %v1738 = vrot.slane %v1535, 1
        %v1739 = vor.u32 %v1532, %v1738
        %v1740 = vrot.slane %v1542, 1
        %v1741 = vor.u32 %v1539, %v1740
        %v1742 = vrot.slane %v1549, 1
        %v1743 = vor.u32 %v1546, %v1742
        %1744 = vrot.lane.b32.xlu0 %v1713, 20
        %v1745 = vpop.permute.xlu0 %1744
        %1746 = vrot.lane.b32.xlu0 %v1715, 20
        %v1747 = vpop.permute.xlu0 %1746
        %1748 = vrot.lane.b32.xlu0 %v1717, 20
        %v1749 = vpop.permute.xlu0 %1748
        %1750 = vrot.lane.b32.xlu0 %v1719, 20
        %v1751 = vpop.permute.xlu0 %1750
        %1752 = vrot.lane.b32.xlu0 %v1721, 20
        %v1753 = vpop.permute.xlu0 %1752
        %1754 = vrot.lane.b32.xlu0 %v1723, 20
        %v1755 = vpop.permute.xlu0 %1754
        %1756 = vrot.lane.b32.xlu0 %v1725, 20
        %v1757 = vpop.permute.xlu0 %1756
        %1758 = vrot.lane.b32.xlu0 %v1727, 20
        %v1759 = vpop.permute.xlu0 %1758
        %1760 = vrot.lane.b32.xlu0 %v1729, 20
        %v1761 = vpop.permute.xlu0 %1760
        %1762 = vrot.lane.b32.xlu0 %v1731, 20
        %v1763 = vpop.permute.xlu0 %1762
        %1764 = vrot.lane.b32.xlu0 %v1733, 20
        %v1765 = vpop.permute.xlu0 %1764
        %1766 = vrot.lane.b32.xlu0 %v1735, 20
        %v1767 = vpop.permute.xlu0 %1766
        %1768 = vrot.lane.b32.xlu0 %v1737, 20
        %v1769 = vpop.permute.xlu0 %1768
        %1770 = vrot.lane.b32.xlu0 %v1739, 20
        %v1771 = vpop.permute.xlu0 %1770
        %1772 = vrot.lane.b32.xlu0 %v1741, 20
        %v1773 = vpop.permute.xlu0 %1772
        %1774 = vrot.lane.b32.xlu0 %v1743, 20
        %v1775 = vpop.permute.xlu0 %1774
        %v1792 = vld [vmem:[%s673] sm:$0xff]
        %v1793 = vsel %vm1265, %v1745, %v1792
        %1794 = vst [vmem:[%s673] sm:$0xff] %v1793
        %v1795 = vld [vmem:[%s673 + $0x8] sm:$0xff]
        %v1796 = vsel %vm1265, %v1747, %v1795
        %1797 = vst [vmem:[%s673 + $0x8] sm:$0xff] %v1796
        %v1798 = vld [vmem:[%s673 + $0x10] sm:$0xff]
        %v1799 = vsel %vm1265, %v1749, %v1798
        %1800 = vst [vmem:[%s673 + $0x10] sm:$0xff] %v1799
        %v1801 = vld [vmem:[%s673 + $0x18] sm:$0xff]
        %v1802 = vsel %vm1265, %v1751, %v1801
        %1803 = vst [vmem:[%s673 + $0x18] sm:$0xff] %v1802
        %v1804 = vld [vmem:[%s673 + $0x20] sm:$0xff]
        %v1805 = vsel %vm1265, %v1753, %v1804
        %1806 = vst [vmem:[%s673 + $0x20] sm:$0xff] %v1805
        %v1807 = vld [vmem:[%s673 + $0x28] sm:$0xff]
        %v1808 = vsel %vm1265, %v1755, %v1807
        %1809 = vst [vmem:[%s673 + $0x28] sm:$0xff] %v1808
        %v1810 = vld [vmem:[%s673 + $0x30] sm:$0xff]
        %v1811 = vsel %vm1265, %v1757, %v1810
        %1812 = vst [vmem:[%s673 + $0x30] sm:$0xff] %v1811
        %v1813 = vld [vmem:[%s673 + $0x38] sm:$0xff]
        %v1814 = vsel %vm1265, %v1759, %v1813
        %1815 = vst [vmem:[%s673 + $0x38] sm:$0xff] %v1814
        %v1816 = vld [vmem:[%s673 + $0x40] sm:$0xff]
        %v1817 = vsel %vm1265, %v1761, %v1816
        %1818 = vst [vmem:[%s673 + $0x40] sm:$0xff] %v1817
        %v1819 = vld [vmem:[%s673 + $0x48] sm:$0xff]
        %v1820 = vsel %vm1265, %v1763, %v1819
        %1821 = vst [vmem:[%s673 + $0x48] sm:$0xff] %v1820
        %v1822 = vld [vmem:[%s673 + $0x50] sm:$0xff]
        %v1823 = vsel %vm1265, %v1765, %v1822
        %1824 = vst [vmem:[%s673 + $0x50] sm:$0xff] %v1823
        %v1825 = vld [vmem:[%s673 + $0x58] sm:$0xff]
        %v1826 = vsel %vm1265, %v1767, %v1825
        %1827 = vst [vmem:[%s673 + $0x58] sm:$0xff] %v1826
        %v1828 = vld [vmem:[%s673 + $0x60] sm:$0xff]
        %v1829 = vsel %vm1265, %v1769, %v1828
        %1830 = vst [vmem:[%s673 + $0x60] sm:$0xff] %v1829
        %v1831 = vld [vmem:[%s673 + $0x68] sm:$0xff]
        %v1832 = vsel %vm1265, %v1771, %v1831
        %1833 = vst [vmem:[%s673 + $0x68] sm:$0xff] %v1832
        %v1834 = vld [vmem:[%s673 + $0x70] sm:$0xff]
        %v1835 = vsel %vm1265, %v1773, %v1834
        %1836 = vst [vmem:[%s673 + $0x70] sm:$0xff] %v1835
        %v1837 = vld [vmem:[%s673 + $0x78] sm:$0xff]
        %v1838 = vsel %vm1265, %v1775, %v1837
        %1839 = vst [vmem:[%s673 + $0x78] sm:$0xff] %v1838
        %v1840 = vld [vmem:[%s673] sm:$0x80]
        %v1841 = vsel %vm1273, 0, %v1840
        %1842 = vst [vmem:[%s673] sm:$0x80] %v1841
        %v1843 = vld [vmem:[%s673 + $0x8] sm:$0x80]
        %v1844 = vsel %vm1273, 0, %v1843
        %1845 = vst [vmem:[%s673 + $0x8] sm:$0x80] %v1844
        %v1846 = vld [vmem:[%s673 + $0x10] sm:$0x80]
        %v1847 = vsel %vm1273, 0, %v1846
        %1848 = vst [vmem:[%s673 + $0x10] sm:$0x80] %v1847
        %v1849 = vld [vmem:[%s673 + $0x18] sm:$0x80]
        %v1850 = vsel %vm1273, 0, %v1849
        %1851 = vst [vmem:[%s673 + $0x18] sm:$0x80] %v1850
        %v1852 = vld [vmem:[%s673 + $0x20] sm:$0x80]
        %v1853 = vsel %vm1273, 0, %v1852
        %1854 = vst [vmem:[%s673 + $0x20] sm:$0x80] %v1853
        %v1855 = vld [vmem:[%s673 + $0x28] sm:$0x80]
        %v1856 = vsel %vm1273, 0, %v1855
        %1857 = vst [vmem:[%s673 + $0x28] sm:$0x80] %v1856
        %v1858 = vld [vmem:[%s673 + $0x30] sm:$0x80]
        %v1859 = vsel %vm1273, 0, %v1858
        %1860 = vst [vmem:[%s673 + $0x30] sm:$0x80] %v1859
        %v1861 = vld [vmem:[%s673 + $0x38] sm:$0x80]
        %v1862 = vsel %vm1273, 0, %v1861
        %1863 = vst [vmem:[%s673 + $0x38] sm:$0x80] %v1862
        %v1864 = vld [vmem:[%s673 + $0x40] sm:$0x80]
        %v1865 = vsel %vm1273, 0, %v1864
        %1866 = vst [vmem:[%s673 + $0x40] sm:$0x80] %v1865
        %v1867 = vld [vmem:[%s673 + $0x48] sm:$0x80]
        %v1868 = vsel %vm1273, 0, %v1867
        %1869 = vst [vmem:[%s673 + $0x48] sm:$0x80] %v1868
        %v1870 = vld [vmem:[%s673 + $0x50] sm:$0x80]
        %v1871 = vsel %vm1273, 0, %v1870
        %1872 = vst [vmem:[%s673 + $0x50] sm:$0x80] %v1871
        %v1873 = vld [vmem:[%s673 + $0x58] sm:$0x80]
        %v1874 = vsel %vm1273, 0, %v1873
        %1875 = vst [vmem:[%s673 + $0x58] sm:$0x80] %v1874
        %v1876 = vld [vmem:[%s673 + $0x60] sm:$0x80]
        %v1877 = vsel %vm1273, 0, %v1876
        %1878 = vst [vmem:[%s673 + $0x60] sm:$0x80] %v1877
        %v1879 = vld [vmem:[%s673 + $0x68] sm:$0x80]
        %v1880 = vsel %vm1273, 0, %v1879
        %1881 = vst [vmem:[%s673 + $0x68] sm:$0x80] %v1880
        %v1882 = vld [vmem:[%s673 + $0x70] sm:$0x80]
        %v1883 = vsel %vm1273, 0, %v1882
        %1884 = vst [vmem:[%s673 + $0x70] sm:$0x80] %v1883
        %v1885 = vld [vmem:[%s673 + $0x78] sm:$0x80]
        %v1886 = vsel %vm1273, 0, %v1885
        %1887 = vst [vmem:[%s673 + $0x78] sm:$0x80] %v1886
        %v1888 = vld [vmem:[%s1218] sm:$0x1]
        %v1889 = vsel %vm1246, 0, %v1888
        %1890 = vst [vmem:[%s1218] sm:$0x1] %v1889
        %v1891 = vld [vmem:[%s1218 + $0x8] sm:$0x1]
        %v1892 = vsel %vm1246, 0, %v1891
        %1893 = vst [vmem:[%s1218 + $0x8] sm:$0x1] %v1892
        %v1894 = vld [vmem:[%s1218] sm:$0xff]
        %v1895 = vsel %vm1254, 0, %v1894
        %1896 = vst [vmem:[%s1218] sm:$0xff] %v1895
        %v1897 = vld [vmem:[%s1218 + $0x8] sm:$0xff]
        %v1898 = vsel %vm1254, 0, %v1897
        %1899 = vst [vmem:[%s1218 + $0x8] sm:$0xff] %v1898
        %1900 = vst.msk [vmem:[%s1218] sm:$0xff] %vm1261, 0
        %1901 = vst.msk [vmem:[%s1218 + $0x8] sm:$0xff] %vm1261, 0
        %v1902 = vld [vmem:[%s1218] sm:$0xff]
        %v1903 = vsel %vm1265, 0, %v1902
        %1904 = vst [vmem:[%s1218] sm:$0xff] %v1903
        %v1905 = vld [vmem:[%s1218 + $0x8] sm:$0xff]
        %v1906 = vsel %vm1265, 0, %v1905
        %1907 = vst [vmem:[%s1218 + $0x8] sm:$0xff] %v1906
        %v1908 = vld [vmem:[%s1218] sm:$0x80]
        %v1909 = vsel %vm1273, 0, %v1908
        %1910 = vst [vmem:[%s1218] sm:$0x80] %v1909
        %v1911 = vld [vmem:[%s1218 + $0x8] sm:$0x80]
        %v1912 = vsel %vm1273, 0, %v1911
        %1913 = vst [vmem:[%s1218 + $0x8] sm:$0x80] %v1912
        %v1914 = vld [vmem:[#allocation2] sm:$0xff]
        %v1915 = vld [vmem:[#allocation2 + $0x8] sm:$0xff]
        %v1916 = vld [vmem:[#allocation2 + $0x10] sm:$0xff]
        %v1917 = vld [vmem:[#allocation2 + $0x18] sm:$0xff]
        %v1918 = vld [vmem:[#allocation2 + $0x20] sm:$0xff]
        %v1919 = vld [vmem:[#allocation2 + $0x28] sm:$0xff]
        %v1920 = vld [vmem:[#allocation2 + $0x30] sm:$0xff]
        %v1921 = vld [vmem:[#allocation2 + $0x38] sm:$0xff]
        %v1922 = vld [vmem:[#allocation2 + $0x40] sm:$0xff]
        %v1923 = vld [vmem:[#allocation2 + $0x48] sm:$0xff]
        %v1924 = vld [vmem:[#allocation2 + $0x50] sm:$0xff]
        %v1925 = vld [vmem:[#allocation2 + $0x58] sm:$0xff]
        %v1926 = vld [vmem:[#allocation2 + $0x60] sm:$0xff]
        %v1927 = vld [vmem:[#allocation2 + $0x68] sm:$0xff]
        %v1928 = vld [vmem:[#allocation2 + $0x70] sm:$0xff]
        %v1929 = vld [vmem:[#allocation2 + $0x78] sm:$0xff]
        %v1930 = vld [vmem:[#allocation2 + $0x80] sm:$0xff]
        %v1931 = vld [vmem:[#allocation2 + $0x88] sm:$0xff]
        %v1932 = vld [vmem:[%s6] sm:$0xf]
        %v1933 = vld [vmem:[%s6 + $0x4] sm:$0xf]
        %v1934 = vld [vmem:[%s6 + $0x8] sm:$0xf]
        %s1935 = scalar_lea.vmem [#allocation2], 8
        %v1936 = vld [vmem:[%s1935] sm:$0xff]
        %v1937 = vld [vmem:[%s1935 + $0x8] sm:$0xff]
        %v1938 = vld [vmem:[%s1935 + $0x10] sm:$0xff]
        %v1939 = vld [vmem:[%s1935 + $0x18] sm:$0xff]
        %v1940 = vld [vmem:[%s1935 + $0x20] sm:$0xff]
        %v1941 = vld [vmem:[%s1935 + $0x28] sm:$0xff]
        %v1942 = vld [vmem:[%s1935 + $0x30] sm:$0xff]
        %v1943 = vld [vmem:[%s1935 + $0x38] sm:$0xff]
        %v1944 = vld [vmem:[%s1935 + $0x40] sm:$0xff]
        %v1945 = vld [vmem:[%s1935 + $0x48] sm:$0xff]
        %v1946 = vld [vmem:[%s1935 + $0x50] sm:$0xff]
        %v1947 = vld [vmem:[%s1935 + $0x58] sm:$0xff]
        %v1948 = vld [vmem:[%s1935 + $0x60] sm:$0xff]
        %v1949 = vld [vmem:[%s1935 + $0x68] sm:$0xff]
        %v1950 = vld [vmem:[%s1935 + $0x70] sm:$0xff]
        %v1951 = vld [vmem:[%s1935 + $0x78] sm:$0xff]
        %v1952 = vld [vmem:[%s1935 + $0x80] sm:$0xff]
        %v1953 = vld [vmem:[%s1935 + $0x88] sm:$0xff]
        %s1954 = scalar_lea.vmem %s6, 12
        %v1955 = vld [vmem:[%s1954] sm:$0xf]
        %v1956 = vld [vmem:[%s1954 + $0x4] sm:$0xf]
        %v1957 = vld [vmem:[%s1954 + $0x8] sm:$0xf]
        %v1961 = vunpack.c.l.b16 %v1955
        %v1962 = vunpack.c.l.b16 %v1956
        %v1963 = vunpack.c.l.b16 %v1957
        %v1964 = vpack.c.b16 %v1962, %v1961
        %v1965 = vpack.c.b16 %v1963, %v1963
        %vm1967 = vcmask 195584
        %v1969 = vsel %vm1967, %v1936, 0
        %v1972 = vsel %vm1967, %v1937, 0
        %v1975 = vsel %vm1967, %v1938, 0
        %v1978 = vsel %vm1967, %v1939, 0
        %v1981 = vsel %vm1967, %v1940, 0
        %v1984 = vsel %vm1967, %v1941, 0
        %v1987 = vsel %vm1967, %v1942, 0
        %v1990 = vsel %vm1967, %v1943, 0
        %v1993 = vsel %vm1967, %v1944, 0
        %v1996 = vsel %vm1967, %v1945, 0
        %v1999 = vsel %vm1967, %v1946, 0
        %v2002 = vsel %vm1967, %v1947, 0
        %v2005 = vsel %vm1967, %v1948, 0
        %v2008 = vsel %vm1967, %v1949, 0
        %v2011 = vsel %vm1967, %v1950, 0
        %v2014 = vsel %vm1967, %v1951, 0
        %v2017 = vsel %vm1967, %v1952, 0
        %v2020 = vsel %vm1967, %v1953, 0
        %vm2022 = vcmask 1043456
        %v2024 = vsel %vm2022, %v1965, 0
        %2026 = vmatprep.subr.bf16.mxu0 0
        %2027 = vmatpush1.bf16.msra.mxu0 %v1964
        %2028 = vmatprep.subr.bf16.mxu0 0
        %2029 = vmatpush1.bf16.msra.mxu0 %v2024
        %2030 = vmatprep.subr.bf16.mxu0 0
        %2031 = vmatpush1.bf16.msra.mxu0 0
        %2032 = vmatprep.subr.bf16.mxu0 0
        %2033 = vmatpush1.bf16.msra.mxu0 0
        %2034 = vmatprep.subr.bf16.mxu0 0
        %2035 = vmatpush1.bf16.msra.mxu0 0
        %2036 = vmatprep.subr.bf16.mxu0 0
        %2037 = vmatpush1.bf16.msra.mxu0 0
        %2038 = vmatprep.subr.bf16.mxu0 0
        %2039 = vmatpush1.bf16.msra.mxu0 0
        %2040 = vmatprep.subr.bf16.mxu0 0
        %2041 = vmatpush1.bf16.msra.mxu0 0
        %2042 = vmatprep.subr.bf16.mxu0 0
        %2043 = vmatpush1.bf16.msra.mxu0 0
        %2044 = vmatprep.subr.bf16.mxu0 0
        %2045 = vmatpush1.bf16.msra.mxu0 0
        %2046 = vmatprep.subr.bf16.mxu0 0
        %2047 = vmatpush1.bf16.msra.mxu0 0
        %2048 = vmatprep.subr.bf16.mxu0 0
        %2049 = vmatpush1.bf16.msra.mxu0 0
        %2050 = vmatprep.subr.bf16.mxu0 0
        %2051 = vmatpush1.bf16.msra.mxu0 0
        %2052 = vmatprep.subr.bf16.mxu0 0
        %2053 = vmatpush1.bf16.msra.mxu0 0
        %2054 = vmatprep.subr.bf16.mxu0 0
        %2055 = vmatpush1.bf16.msra.mxu0 0
        %2056 = vmatprep.subr.bf16.mxu0 0
        %2057 = vmatpush1.bf16.msra.mxu0 0
        %2058 = vmatprep.mubr.bf16.mxu0 0
        %2059 = vmatmul.mubr.bf16.gmra.mrb[0].mxu0 %v1969
        %v2060 = vpop.f32.mrb[0].mxu0
        %v2061 = vadd.f32 0.0, %v2060
        %v2062 = vpop.f32.mrb[0].mxu0
        %v2063 = vpop.f32.mrb[0].mxu0
        %v2064 = vadd.f32 0.0, %v2063
        %v2065 = vpop.f32.mrb[0].mxu0
        %2066 = vmatprep.mubr.bf16.mxu0 0
        %2067 = vmatmul.mubr.bf16.gmra.mrb[0].mxu0 %v1972
        %v2068 = vpop.f32.mrb[0].mxu0
        %v2069 = vadd.f32 0.0, %v2068
        %v2070 = vpop.f32.mrb[0].mxu0
        %v2071 = vpop.f32.mrb[0].mxu0
        %v2072 = vadd.f32 0.0, %v2071
        %v2073 = vpop.f32.mrb[0].mxu0
        %2074 = vmatprep.mubr.bf16.mxu0 0
        %2075 = vmatmul.mubr.bf16.gmra.mrb[0].mxu0 %v1975
        %v2076 = vpop.f32.mrb[0].mxu0
        %v2077 = vadd.f32 0.0, %v2076
        %v2078 = vpop.f32.mrb[0].mxu0
        %v2079 = vpop.f32.mrb[0].mxu0
        %v2080 = vadd.f32 0.0, %v2079
        %v2081 = vpop.f32.mrb[0].mxu0
        %2082 = vmatprep.mubr.bf16.mxu0 0
        %2083 = vmatmul.mubr.bf16.gmra.mrb[0].mxu0 %v1978
        %v2084 = vpop.f32.mrb[0].mxu0
        %v2085 = vadd.f32 0.0, %v2084
        %v2086 = vpop.f32.mrb[0].mxu0
        %v2087 = vpop.f32.mrb[0].mxu0
        %v2088 = vadd.f32 0.0, %v2087
        %v2089 = vpop.f32.mrb[0].mxu0
        %2090 = vmatprep.mubr.bf16.mxu0 0
        %2091 = vmatmul.mubr.bf16.gmra.mrb[0].mxu0 %v1981
        %v2092 = vpop.f32.mrb[0].mxu0
        %v2093 = vadd.f32 0.0, %v2092
        %v2094 = vpop.f32.mrb[0].mxu0
        %v2095 = vpop.f32.mrb[0].mxu0
        %v2096 = vadd.f32 0.0, %v2095
        %v2097 = vpop.f32.mrb[0].mxu0
        %2098 = vmatprep.mubr.bf16.mxu0 0
        %2099 = vmatmul.mubr.bf16.gmra.mrb[0].mxu0 %v1984
        %v2100 = vpop.f32.mrb[0].mxu0
        %v2101 = vadd.f32 0.0, %v2100
        %v2102 = vpop.f32.mrb[0].mxu0
        %v2103 = vpop.f32.mrb[0].mxu0
        %v2104 = vadd.f32 0.0, %v2103
        %v2105 = vpop.f32.mrb[0].mxu0
        %2106 = vmatprep.mubr.bf16.mxu0 0
        %2107 = vmatmul.mubr.bf16.gmra.mrb[0].mxu0 %v1987
        %v2108 = vpop.f32.mrb[0].mxu0
        %v2109 = vadd.f32 0.0, %v2108
        %v2110 = vpop.f32.mrb[0].mxu0
        %v2111 = vpop.f32.mrb[0].mxu0
        %v2112 = vadd.f32 0.0, %v2111
        %v2113 = vpop.f32.mrb[0].mxu0
        %2114 = vmatprep.mubr.bf16.mxu0 0
        %2115 = vmatmul.mubr.bf16.gmra.mrb[0].mxu0 %v1990
        %v2116 = vpop.f32.mrb[0].mxu0
        %v2117 = vadd.f32 0.0, %v2116
        %v2118 = vpop.f32.mrb[0].mxu0
        %v2119 = vpop.f32.mrb[0].mxu0
        %v2120 = vadd.f32 0.0, %v2119
        %v2121 = vpop.f32.mrb[0].mxu0
        %2122 = vmatprep.mubr.bf16.mxu0 0
        %2123 = vmatmul.mubr.bf16.gmra.mrb[0].mxu0 %v1993
        %v2124 = vpop.f32.mrb[0].mxu0
        %v2125 = vadd.f32 0.0, %v2124
        %v2126 = vpop.f32.mrb[0].mxu0
        %v2127 = vpop.f32.mrb[0].mxu0
        %v2128 = vadd.f32 0.0, %v2127
        %v2129 = vpop.f32.mrb[0].mxu0
        %2130 = vmatprep.mubr.bf16.mxu0 0
        %2131 = vmatmul.mubr.bf16.gmra.mrb[0].mxu0 %v1996
        %v2132 = vpop.f32.mrb[0].mxu0
        %v2133 = vadd.f32 0.0, %v2132
        %v2134 = vpop.f32.mrb[0].mxu0
        %v2135 = vpop.f32.mrb[0].mxu0
        %v2136 = vadd.f32 0.0, %v2135
        %v2137 = vpop.f32.mrb[0].mxu0
        %2138 = vmatprep.mubr.bf16.mxu0 0
        %2139 = vmatmul.mubr.bf16.gmra.mrb[0].mxu0 %v1999
        %v2140 = vpop.f32.mrb[0].mxu0
        %v2141 = vadd.f32 0.0, %v2140
        %v2142 = vpop.f32.mrb[0].mxu0
        %v2143 = vpop.f32.mrb[0].mxu0
        %v2144 = vadd.f32 0.0, %v2143
        %v2145 = vpop.f32.mrb[0].mxu0
        %2146 = vmatprep.mubr.bf16.mxu0 0
        %2147 = vmatmul.mubr.bf16.gmra.mrb[0].mxu0 %v2002
        %v2148 = vpop.f32.mrb[0].mxu0
        %v2149 = vadd.f32 0.0, %v2148
        %v2150 = vpop.f32.mrb[0].mxu0
        %v2151 = vpop.f32.mrb[0].mxu0
        %v2152 = vadd.f32 0.0, %v2151
        %v2153 = vpop.f32.mrb[0].mxu0
        %2154 = vmatprep.mubr.bf16.mxu0 0
        %2155 = vmatmul.mubr.bf16.gmra.mrb[0].mxu0 %v2005
        %v2156 = vpop.f32.mrb[0].mxu0
        %v2157 = vadd.f32 0.0, %v2156
        %v2158 = vpop.f32.mrb[0].mxu0
        %v2159 = vpop.f32.mrb[0].mxu0
        %v2160 = vadd.f32 0.0, %v2159
        %v2161 = vpop.f32.mrb[0].mxu0
        %2162 = vmatprep.mubr.bf16.mxu0 0
        %2163 = vmatmul.mubr.bf16.gmra.mrb[0].mxu0 %v2008
        %v2164 = vpop.f32.mrb[0].mxu0
        %v2165 = vadd.f32 0.0, %v2164
        %v2166 = vpop.f32.mrb[0].mxu0
        %v2167 = vpop.f32.mrb[0].mxu0
        %v2168 = vadd.f32 0.0, %v2167
        %v2169 = vpop.f32.mrb[0].mxu0
        %2170 = vmatprep.mubr.bf16.mxu0 0
        %2171 = vmatmul.mubr.bf16.gmra.mrb[0].mxu0 %v2011
        %v2172 = vpop.f32.mrb[0].mxu0
        %v2173 = vadd.f32 0.0, %v2172
        %v2174 = vpop.f32.mrb[0].mxu0
        %v2175 = vpop.f32.mrb[0].mxu0
        %v2176 = vadd.f32 0.0, %v2175
        %v2177 = vpop.f32.mrb[0].mxu0
        %2178 = vmatprep.mubr.bf16.mxu0 0
        %2179 = vmatmul.mubr.bf16.gmra.mrb[0].mxu0 %v2014
        %v2180 = vpop.f32.mrb[0].mxu0
        %v2181 = vadd.f32 0.0, %v2180
        %v2182 = vpop.f32.mrb[0].mxu0
        %v2183 = vpop.f32.mrb[0].mxu0
        %v2184 = vadd.f32 0.0, %v2183
        %v2185 = vpop.f32.mrb[0].mxu0
        %2186 = vmatprep.mubr.bf16.mxu0 0
        %2187 = vmatmul.mubr.bf16.gmra.mrb[0].mxu0 %v2017
        %v2188 = vpop.f32.mrb[0].mxu0
        %v2189 = vadd.f32 0.0, %v2188
        %v2190 = vpop.f32.mrb[0].mxu0
        %v2191 = vpop.f32.mrb[0].mxu0
        %v2192 = vadd.f32 0.0, %v2191
        %v2193 = vpop.f32.mrb[0].mxu0
        %2194 = vmatprep.mubr.bf16.mxu0 0
        %2195 = vmatmul.mubr.bf16.gmra.mrb[0].mxu0 %v2020
        %v2196 = vpop.f32.mrb[0].mxu0
        %v2197 = vadd.f32 0.0, %v2196
        %v2198 = vpop.f32.mrb[0].mxu0
        %v2199 = vpop.f32.mrb[0].mxu0
        %v2200 = vadd.f32 0.0, %v2199
        %v2201 = vpop.f32.mrb[0].mxu0
        %2202 = vdwg.mxu0
        %v2206 = vunpack.c.l.b16 %v1932
        %v2207 = vunpack.c.l.b16 %v1933
        %v2208 = vunpack.c.l.b16 %v1934
        %v2209 = vpack.c.b16 %v2207, %v2206
        %v2210 = vpack.c.b16 %v2208, %v2208
        %v2213 = vsel %vm1967, %v1914, 0
        %v2216 = vsel %vm1967, %v1915, 0
        %v2219 = vsel %vm1967, %v1916, 0
        %v2222 = vsel %vm1967, %v1917, 0
        %v2225 = vsel %vm1967, %v1918, 0
        %v2228 = vsel %vm1967, %v1919, 0
        %v2231 = vsel %vm1967, %v1920, 0
        %v2234 = vsel %vm1967, %v1921, 0
        %v2237 = vsel %vm1967, %v1922, 0
        %v2240 = vsel %vm1967, %v1923, 0
        %v2243 = vsel %vm1967, %v1924, 0
        %v2246 = vsel %vm1967, %v1925, 0
        %v2249 = vsel %vm1967, %v1926, 0
        %v2252 = vsel %vm1967, %v1927, 0
        %v2255 = vsel %vm1967, %v1928, 0
        %v2258 = vsel %vm1967, %v1929, 0
        %v2261 = vsel %vm1967, %v1930, 0
        %v2264 = vsel %vm1967, %v1931, 0
        %v2267 = vsel %vm2022, %v2210, 0
        %2269 = vmatprep.subr.bf16.mxu0 0
        %2270 = vmatpush1.bf16.msra.mxu0 %v2209
        %2271 = vmatprep.subr.bf16.mxu0 0
        %2272 = vmatpush1.bf16.msra.mxu0 %v2267
        %2273 = vmatprep.subr.bf16.mxu0 0
        %2274 = vmatpush1.bf16.msra.mxu0 0
        %2275 = vmatprep.subr.bf16.mxu0 0
        %2276 = vmatpush1.bf16.msra.mxu0 0
        %2277 = vmatprep.subr.bf16.mxu0 0
        %2278 = vmatpush1.bf16.msra.mxu0 0
        %2279 = vmatprep.subr.bf16.mxu0 0
        %2280 = vmatpush1.bf16.msra.mxu0 0
        %2281 = vmatprep.subr.bf16.mxu0 0
        %2282 = vmatpush1.bf16.msra.mxu0 0
        %2283 = vmatprep.subr.bf16.mxu0 0
        %2284 = vmatpush1.bf16.msra.mxu0 0
        %2285 = vmatprep.subr.bf16.mxu0 0
        %2286 = vmatpush1.bf16.msra.mxu0 0
        %2287 = vmatprep.subr.bf16.mxu0 0
        %2288 = vmatpush1.bf16.msra.mxu0 0
        %2289 = vmatprep.subr.bf16.mxu0 0
        %2290 = vmatpush1.bf16.msra.mxu0 0
        %2291 = vmatprep.subr.bf16.mxu0 0
        %2292 = vmatpush1.bf16.msra.mxu0 0
        %2293 = vmatprep.subr.bf16.mxu0 0
        %2294 = vmatpush1.bf16.msra.mxu0 0
        %2295 = vmatprep.subr.bf16.mxu0 0
        %2296 = vmatpush1.bf16.msra.mxu0 0
        %2297 = vmatprep.subr.bf16.mxu0 0
        %2298 = vmatpush1.bf16.msra.mxu0 0
        %2299 = vmatprep.subr.bf16.mxu0 0
        %2300 = vmatpush1.bf16.msra.mxu0 0
        %2301 = vmatprep.mubr.bf16.mxu0 0
        %2302 = vmatmul.mubr.bf16.gmra.mrb[0].mxu0 %v2213
        %v2303 = vpop.f32.mrb[0].mxu0
        %v2304 = vadd.f32 %v2061, %v2303
        %v2305 = vpop.f32.mrb[0].mxu0
        %v2306 = vpop.f32.mrb[0].mxu0
        %v2307 = vadd.f32 %v2064, %v2306
        %v2308 = vpop.f32.mrb[0].mxu0
        %2309 = vmatprep.mubr.bf16.mxu0 0
        %2310 = vmatmul.mubr.bf16.gmra.mrb[0].mxu0 %v2216
        %v2311 = vpop.f32.mrb[0].mxu0
        %v2312 = vadd.f32 %v2069, %v2311
        %v2313 = vpop.f32.mrb[0].mxu0
        %v2314 = vpop.f32.mrb[0].mxu0
        %v2315 = vadd.f32 %v2072, %v2314
        %v2316 = vpop.f32.mrb[0].mxu0
        %2317 = vmatprep.mubr.bf16.mxu0 0
        %2318 = vmatmul.mubr.bf16.gmra.mrb[0].mxu0 %v2219
        %v2319 = vpop.f32.mrb[0].mxu0
        %v2320 = vadd.f32 %v2077, %v2319
        %v2321 = vpop.f32.mrb[0].mxu0
        %v2322 = vpop.f32.mrb[0].mxu0
        %v2323 = vadd.f32 %v2080, %v2322
        %v2324 = vpop.f32.mrb[0].mxu0
        %2325 = vmatprep.mubr.bf16.mxu0 0
        %2326 = vmatmul.mubr.bf16.gmra.mrb[0].mxu0 %v2222
        %v2327 = vpop.f32.mrb[0].mxu0
        %v2328 = vadd.f32 %v2085, %v2327
        %v2329 = vpop.f32.mrb[0].mxu0
        %v2330 = vpop.f32.mrb[0].mxu0
        %v2331 = vadd.f32 %v2088, %v2330
        %v2332 = vpop.f32.mrb[0].mxu0
        %2333 = vmatprep.mubr.bf16.mxu0 0
        %2334 = vmatmul.mubr.bf16.gmra.mrb[0].mxu0 %v2225
        %v2335 = vpop.f32.mrb[0].mxu0
        %v2336 = vadd.f32 %v2093, %v2335
        %v2337 = vpop.f32.mrb[0].mxu0
        %v2338 = vpop.f32.mrb[0].mxu0
        %v2339 = vadd.f32 %v2096, %v2338
        %v2340 = vpop.f32.mrb[0].mxu0
        %2341 = vmatprep.mubr.bf16.mxu0 0
        %2342 = vmatmul.mubr.bf16.gmra.mrb[0].mxu0 %v2228
        %v2343 = vpop.f32.mrb[0].mxu0
        %v2344 = vadd.f32 %v2101, %v2343
        %v2345 = vpop.f32.mrb[0].mxu0
        %v2346 = vpop.f32.mrb[0].mxu0
        %v2347 = vadd.f32 %v2104, %v2346
        %v2348 = vpop.f32.mrb[0].mxu0
        %2349 = vmatprep.mubr.bf16.mxu0 0
        %2350 = vmatmul.mubr.bf16.gmra.mrb[0].mxu0 %v2231
        %v2351 = vpop.f32.mrb[0].mxu0
        %v2352 = vadd.f32 %v2109, %v2351
        %v2353 = vpop.f32.mrb[0].mxu0
        %v2354 = vpop.f32.mrb[0].mxu0
        %v2355 = vadd.f32 %v2112, %v2354
        %v2356 = vpop.f32.mrb[0].mxu0
        %2357 = vmatprep.mubr.bf16.mxu0 0
        %2358 = vmatmul.mubr.bf16.gmra.mrb[0].mxu0 %v2234
        %v2359 = vpop.f32.mrb[0].mxu0
        %v2360 = vadd.f32 %v2117, %v2359
        %v2361 = vpop.f32.mrb[0].mxu0
        %v2362 = vpop.f32.mrb[0].mxu0
        %v2363 = vadd.f32 %v2120, %v2362
        %v2364 = vpop.f32.mrb[0].mxu0
        %2365 = vmatprep.mubr.bf16.mxu0 0
        %2366 = vmatmul.mubr.bf16.gmra.mrb[0].mxu0 %v2237
        %v2367 = vpop.f32.mrb[0].mxu0
        %v2368 = vadd.f32 %v2125, %v2367
        %v2369 = vpop.f32.mrb[0].mxu0
        %v2370 = vpop.f32.mrb[0].mxu0
        %v2371 = vadd.f32 %v2128, %v2370
        %v2372 = vpop.f32.mrb[0].mxu0
        %2373 = vmatprep.mubr.bf16.mxu0 0
        %2374 = vmatmul.mubr.bf16.gmra.mrb[0].mxu0 %v2240
        %v2375 = vpop.f32.mrb[0].mxu0
        %v2376 = vadd.f32 %v2133, %v2375
        %v2377 = vpop.f32.mrb[0].mxu0
        %v2378 = vpop.f32.mrb[0].mxu0
        %v2379 = vadd.f32 %v2136, %v2378
        %v2380 = vpop.f32.mrb[0].mxu0
        %2381 = vmatprep.mubr.bf16.mxu0 0
        %2382 = vmatmul.mubr.bf16.gmra.mrb[0].mxu0 %v2243
        %v2383 = vpop.f32.mrb[0].mxu0
        %v2384 = vadd.f32 %v2141, %v2383
        %v2385 = vpop.f32.mrb[0].mxu0
        %v2386 = vpop.f32.mrb[0].mxu0
        %v2387 = vadd.f32 %v2144, %v2386
        %v2388 = vpop.f32.mrb[0].mxu0
        %2389 = vmatprep.mubr.bf16.mxu0 0
        %2390 = vmatmul.mubr.bf16.gmra.mrb[0].mxu0 %v2246
        %v2391 = vpop.f32.mrb[0].mxu0
        %v2392 = vadd.f32 %v2149, %v2391
        %v2393 = vpop.f32.mrb[0].mxu0
        %v2394 = vpop.f32.mrb[0].mxu0
        %v2395 = vadd.f32 %v2152, %v2394
        %v2396 = vpop.f32.mrb[0].mxu0
        %2397 = vmatprep.mubr.bf16.mxu0 0
        %2398 = vmatmul.mubr.bf16.gmra.mrb[0].mxu0 %v2249
        %v2399 = vpop.f32.mrb[0].mxu0
        %v2400 = vadd.f32 %v2157, %v2399
        %v2401 = vpop.f32.mrb[0].mxu0
        %v2402 = vpop.f32.mrb[0].mxu0
        %v2403 = vadd.f32 %v2160, %v2402
        %v2404 = vpop.f32.mrb[0].mxu0
        %2405 = vmatprep.mubr.bf16.mxu0 0
        %2406 = vmatmul.mubr.bf16.gmra.mrb[0].mxu0 %v2252
        %v2407 = vpop.f32.mrb[0].mxu0
        %v2408 = vadd.f32 %v2165, %v2407
        %v2409 = vpop.f32.mrb[0].mxu0
        %v2410 = vpop.f32.mrb[0].mxu0
        %v2411 = vadd.f32 %v2168, %v2410
        %v2412 = vpop.f32.mrb[0].mxu0
        %2413 = vmatprep.mubr.bf16.mxu0 0
        %2414 = vmatmul.mubr.bf16.gmra.mrb[0].mxu0 %v2255
        %v2415 = vpop.f32.mrb[0].mxu0
        %v2416 = vadd.f32 %v2173, %v2415
        %v2417 = vpop.f32.mrb[0].mxu0
        %v2418 = vpop.f32.mrb[0].mxu0
        %v2419 = vadd.f32 %v2176, %v2418
        %v2420 = vpop.f32.mrb[0].mxu0
        %2421 = vmatprep.mubr.bf16.mxu0 0
        %2422 = vmatmul.mubr.bf16.gmra.mrb[0].mxu0 %v2258
        %v2423 = vpop.f32.mrb[0].mxu0
        %v2424 = vadd.f32 %v2181, %v2423
        %v2425 = vpop.f32.mrb[0].mxu0
        %v2426 = vpop.f32.mrb[0].mxu0
        %v2427 = vadd.f32 %v2184, %v2426
        %v2428 = vpop.f32.mrb[0].mxu0
        %2429 = vmatprep.mubr.bf16.mxu0 0
        %2430 = vmatmul.mubr.bf16.gmra.mrb[0].mxu0 %v2261
        %v2431 = vpop.f32.mrb[0].mxu0
        %v2432 = vadd.f32 %v2189, %v2431
        %v2433 = vpop.f32.mrb[0].mxu0
        %v2434 = vpop.f32.mrb[0].mxu0
        %v2435 = vadd.f32 %v2192, %v2434
        %v2436 = vpop.f32.mrb[0].mxu0
        %2437 = vmatprep.mubr.bf16.mxu0 0
        %2438 = vmatmul.mubr.bf16.gmra.mrb[0].mxu0 %v2264
        %v2439 = vpop.f32.mrb[0].mxu0
        %v2440 = vadd.f32 %v2197, %v2439
        %v2441 = vpop.f32.mrb[0].mxu0
        %v2442 = vpop.f32.mrb[0].mxu0
        %v2443 = vadd.f32 %v2200, %v2442
        %v2444 = vpop.f32.mrb[0].mxu0
        %2445 = vdwg.mxu0
        %v2446 = vld [vmem:[%s673] sm:$0xff]
        %v2447 = vld [vmem:[%s673 + $0x8] sm:$0xff]
        %v2448 = vld [vmem:[%s673 + $0x10] sm:$0xff]
        %v2449 = vld [vmem:[%s673 + $0x18] sm:$0xff]
        %v2450 = vld [vmem:[%s673 + $0x20] sm:$0xff]
        %v2451 = vld [vmem:[%s673 + $0x28] sm:$0xff]
        %v2452 = vld [vmem:[%s673 + $0x30] sm:$0xff]
        %v2453 = vld [vmem:[%s673 + $0x38] sm:$0xff]
        %v2454 = vld [vmem:[%s673 + $0x40] sm:$0xff]
        %v2455 = vld [vmem:[%s673 + $0x48] sm:$0xff]
        %v2456 = vld [vmem:[%s673 + $0x50] sm:$0xff]
        %v2457 = vld [vmem:[%s673 + $0x58] sm:$0xff]
        %v2458 = vld [vmem:[%s673 + $0x60] sm:$0xff]
        %v2459 = vld [vmem:[%s673 + $0x68] sm:$0xff]
        %v2460 = vld [vmem:[%s673 + $0x70] sm:$0xff]
        %v2461 = vld [vmem:[%s673 + $0x78] sm:$0xff]
        %v2462 = vld [vmem:[%s673 + $0x80] sm:$0xff]
        %v2463 = vld [vmem:[%s673 + $0x88] sm:$0xff]
        %s2464 = scalar_lea.vmem %s6, 24
        %v2465 = vld [vmem:[%s2464] sm:$0xf]
        %v2466 = vld [vmem:[%s2464 + $0x4] sm:$0xf]
        %v2467 = vld [vmem:[%s2464 + $0x8] sm:$0xf]
        %v2471 = vunpack.c.l.b16 %v2465
        %v2472 = vunpack.c.l.b16 %v2466
        %v2473 = vunpack.c.l.b16 %v2467
        %v2474 = vpack.c.b16 %v2472, %v2471
        %v2475 = vpack.c.b16 %v2473, %v2473
        %v2478 = vsel %vm1967, %v2446, 0
        %v2481 = vsel %vm1967, %v2447, 0
        %v2484 = vsel %vm1967, %v2448, 0
        %v2487 = vsel %vm1967, %v2449, 0
        %v2490 = vsel %vm1967, %v2450, 0
        %v2493 = vsel %vm1967, %v2451, 0
        %v2496 = vsel %vm1967, %v2452, 0
        %v2499 = vsel %vm1967, %v2453, 0
        %v2502 = vsel %vm1967, %v2454, 0
        %v2505 = vsel %vm1967, %v2455, 0
        %v2508 = vsel %vm1967, %v2456, 0
        %v2511 = vsel %vm1967, %v2457, 0
        %v2514 = vsel %vm1967, %v2458, 0
        %v2517 = vsel %vm1967, %v2459, 0
        %v2520 = vsel %vm1967, %v2460, 0
        %v2523 = vsel %vm1967, %v2461, 0
        %v2526 = vsel %vm1967, %v2462, 0
        %v2529 = vsel %vm1967, %v2463, 0
        %v2532 = vsel %vm2022, %v2475, 0
        %2534 = vmatprep.subr.bf16.mxu0 0
        %2535 = vmatpush1.bf16.msra.mxu0 %v2474
        %2536 = vmatprep.subr.bf16.mxu0 0
        %2537 = vmatpush1.bf16.msra.mxu0 %v2532
        %2538 = vmatprep.subr.bf16.mxu0 0
        %2539 = vmatpush1.bf16.msra.mxu0 0
        %2540 = vmatprep.subr.bf16.mxu0 0
        %2541 = vmatpush1.bf16.msra.mxu0 0
        %2542 = vmatprep.subr.bf16.mxu0 0
        %2543 = vmatpush1.bf16.msra.mxu0 0
        %2544 = vmatprep.subr.bf16.mxu0 0
        %2545 = vmatpush1.bf16.msra.mxu0 0
        %2546 = vmatprep.subr.bf16.mxu0 0
        %2547 = vmatpush1.bf16.msra.mxu0 0
        %2548 = vmatprep.subr.bf16.mxu0 0
        %2549 = vmatpush1.bf16.msra.mxu0 0
        %2550 = vmatprep.subr.bf16.mxu0 0
        %2551 = vmatpush1.bf16.msra.mxu0 0
        %2552 = vmatprep.subr.bf16.mxu0 0
        %2553 = vmatpush1.bf16.msra.mxu0 0
        %2554 = vmatprep.subr.bf16.mxu0 0
        %2555 = vmatpush1.bf16.msra.mxu0 0
        %2556 = vmatprep.subr.bf16.mxu0 0
        %2557 = vmatpush1.bf16.msra.mxu0 0
        %2558 = vmatprep.subr.bf16.mxu0 0
        %2559 = vmatpush1.bf16.msra.mxu0 0
        %2560 = vmatprep.subr.bf16.mxu0 0
        %2561 = vmatpush1.bf16.msra.mxu0 0
        %2562 = vmatprep.subr.bf16.mxu0 0
        %2563 = vmatpush1.bf16.msra.mxu0 0
        %2564 = vmatprep.subr.bf16.mxu0 0
        %2565 = vmatpush1.bf16.msra.mxu0 0
        %2566 = vmatprep.mubr.bf16.mxu0 0
        %2567 = vmatmul.mubr.bf16.gmra.mrb[0].mxu0 %v2478
        %v2568 = vpop.f32.mrb[0].mxu0
        %v2569 = vadd.f32 0.0, %v2568
        %v2570 = vpop.f32.mrb[0].mxu0
        %v2571 = vpop.f32.mrb[0].mxu0
        %v2572 = vadd.f32 0.0, %v2571
        %v2573 = vpop.f32.mrb[0].mxu0
        %2574 = vmatprep.mubr.bf16.mxu0 0
        %2575 = vmatmul.mubr.bf16.gmra.mrb[0].mxu0 %v2481
        %v2576 = vpop.f32.mrb[0].mxu0
        %v2577 = vadd.f32 0.0, %v2576
        %v2578 = vpop.f32.mrb[0].mxu0
        %v2579 = vpop.f32.mrb[0].mxu0
        %v2580 = vadd.f32 0.0, %v2579
        %v2581 = vpop.f32.mrb[0].mxu0
        %2582 = vmatprep.mubr.bf16.mxu0 0
        %2583 = vmatmul.mubr.bf16.gmra.mrb[0].mxu0 %v2484
        %v2584 = vpop.f32.mrb[0].mxu0
        %v2585 = vadd.f32 0.0, %v2584
        %v2586 = vpop.f32.mrb[0].mxu0
        %v2587 = vpop.f32.mrb[0].mxu0
        %v2588 = vadd.f32 0.0, %v2587
        %v2589 = vpop.f32.mrb[0].mxu0
        %2590 = vmatprep.mubr.bf16.mxu0 0
        %2591 = vmatmul.mubr.bf16.gmra.mrb[0].mxu0 %v2487
        %v2592 = vpop.f32.mrb[0].mxu0
        %v2593 = vadd.f32 0.0, %v2592
        %v2594 = vpop.f32.mrb[0].mxu0
        %v2595 = vpop.f32.mrb[0].mxu0
        %v2596 = vadd.f32 0.0, %v2595
        %v2597 = vpop.f32.mrb[0].mxu0
        %2598 = vmatprep.mubr.bf16.mxu0 0
        %2599 = vmatmul.mubr.bf16.gmra.mrb[0].mxu0 %v2490
        %v2600 = vpop.f32.mrb[0].mxu0
        %v2601 = vadd.f32 0.0, %v2600
        %v2602 = vpop.f32.mrb[0].mxu0
        %v2603 = vpop.f32.mrb[0].mxu0
        %v2604 = vadd.f32 0.0, %v2603
        %v2605 = vpop.f32.mrb[0].mxu0
        %2606 = vmatprep.mubr.bf16.mxu0 0
        %2607 = vmatmul.mubr.bf16.gmra.mrb[0].mxu0 %v2493
        %v2608 = vpop.f32.mrb[0].mxu0
        %v2609 = vadd.f32 0.0, %v2608
        %v2610 = vpop.f32.mrb[0].mxu0
        %v2611 = vpop.f32.mrb[0].mxu0
        %v2612 = vadd.f32 0.0, %v2611
        %v2613 = vpop.f32.mrb[0].mxu0
        %2614 = vmatprep.mubr.bf16.mxu0 0
        %2615 = vmatmul.mubr.bf16.gmra.mrb[0].mxu0 %v2496
        %v2616 = vpop.f32.mrb[0].mxu0
        %v2617 = vadd.f32 0.0, %v2616
        %v2618 = vpop.f32.mrb[0].mxu0
        %v2619 = vpop.f32.mrb[0].mxu0
        %v2620 = vadd.f32 0.0, %v2619
        %v2621 = vpop.f32.mrb[0].mxu0
        %2622 = vmatprep.mubr.bf16.mxu0 0
        %2623 = vmatmul.mubr.bf16.gmra.mrb[0].mxu0 %v2499
        %v2624 = vpop.f32.mrb[0].mxu0
        %v2625 = vadd.f32 0.0, %v2624
        %v2626 = vpop.f32.mrb[0].mxu0
        %v2627 = vpop.f32.mrb[0].mxu0
        %v2628 = vadd.f32 0.0, %v2627
        %v2629 = vpop.f32.mrb[0].mxu0
        %2630 = vmatprep.mubr.bf16.mxu0 0
        %2631 = vmatmul.mubr.bf16.gmra.mrb[0].mxu0 %v2502
        %v2632 = vpop.f32.mrb[0].mxu0
        %v2633 = vadd.f32 0.0, %v2632
        %v2634 = vpop.f32.mrb[0].mxu0
        %v2635 = vpop.f32.mrb[0].mxu0
        %v2636 = vadd.f32 0.0, %v2635
        %v2637 = vpop.f32.mrb[0].mxu0
        %2638 = vmatprep.mubr.bf16.mxu0 0
        %2639 = vmatmul.mubr.bf16.gmra.mrb[0].mxu0 %v2505
        %v2640 = vpop.f32.mrb[0].mxu0
        %v2641 = vadd.f32 0.0, %v2640
        %v2642 = vpop.f32.mrb[0].mxu0
        %v2643 = vpop.f32.mrb[0].mxu0
        %v2644 = vadd.f32 0.0, %v2643
        %v2645 = vpop.f32.mrb[0].mxu0
        %2646 = vmatprep.mubr.bf16.mxu0 0
        %2647 = vmatmul.mubr.bf16.gmra.mrb[0].mxu0 %v2508
        %v2648 = vpop.f32.mrb[0].mxu0
        %v2649 = vadd.f32 0.0, %v2648
        %v2650 = vpop.f32.mrb[0].mxu0
        %v2651 = vpop.f32.mrb[0].mxu0
        %v2652 = vadd.f32 0.0, %v2651
        %v2653 = vpop.f32.mrb[0].mxu0
        %2654 = vmatprep.mubr.bf16.mxu0 0
        %2655 = vmatmul.mubr.bf16.gmra.mrb[0].mxu0 %v2511
        %v2656 = vpop.f32.mrb[0].mxu0
        %v2657 = vadd.f32 0.0, %v2656
        %v2658 = vpop.f32.mrb[0].mxu0
        %v2659 = vpop.f32.mrb[0].mxu0
        %v2660 = vadd.f32 0.0, %v2659
        %v2661 = vpop.f32.mrb[0].mxu0
        %2662 = vmatprep.mubr.bf16.mxu0 0
        %2663 = vmatmul.mubr.bf16.gmra.mrb[0].mxu0 %v2514
        %v2664 = vpop.f32.mrb[0].mxu0
        %v2665 = vadd.f32 0.0, %v2664
        %v2666 = vpop.f32.mrb[0].mxu0
        %v2667 = vpop.f32.mrb[0].mxu0
        %v2668 = vadd.f32 0.0, %v2667
        %v2669 = vpop.f32.mrb[0].mxu0
        %2670 = vmatprep.mubr.bf16.mxu0 0
        %2671 = vmatmul.mubr.bf16.gmra.mrb[0].mxu0 %v2517
        %v2672 = vpop.f32.mrb[0].mxu0
        %v2673 = vadd.f32 0.0, %v2672
        %v2674 = vpop.f32.mrb[0].mxu0
        %v2675 = vpop.f32.mrb[0].mxu0
        %v2676 = vadd.f32 0.0, %v2675
        %v2677 = vpop.f32.mrb[0].mxu0
        %2678 = vmatprep.mubr.bf16.mxu0 0
        %2679 = vmatmul.mubr.bf16.gmra.mrb[0].mxu0 %v2520
        %v2680 = vpop.f32.mrb[0].mxu0
        %v2681 = vadd.f32 0.0, %v2680
        %v2682 = vpop.f32.mrb[0].mxu0
        %v2683 = vpop.f32.mrb[0].mxu0
        %v2684 = vadd.f32 0.0, %v2683
        %v2685 = vpop.f32.mrb[0].mxu0
        %2686 = vmatprep.mubr.bf16.mxu0 0
        %2687 = vmatmul.mubr.bf16.gmra.mrb[0].mxu0 %v2523
        %v2688 = vpop.f32.mrb[0].mxu0
        %v2689 = vadd.f32 0.0, %v2688
        %v2690 = vpop.f32.mrb[0].mxu0
        %v2691 = vpop.f32.mrb[0].mxu0
        %v2692 = vadd.f32 0.0, %v2691
        %v2693 = vpop.f32.mrb[0].mxu0
        %2694 = vmatprep.mubr.bf16.mxu0 0
        %2695 = vmatmul.mubr.bf16.gmra.mrb[0].mxu0 %v2526
        %v2696 = vpop.f32.mrb[0].mxu0
        %v2697 = vadd.f32 0.0, %v2696
        %v2698 = vpop.f32.mrb[0].mxu0
        %v2699 = vpop.f32.mrb[0].mxu0
        %v2700 = vadd.f32 0.0, %v2699
        %v2701 = vpop.f32.mrb[0].mxu0
        %2702 = vmatprep.mubr.bf16.mxu0 0
        %2703 = vmatmul.mubr.bf16.gmra.mrb[0].mxu0 %v2529
        %v2704 = vpop.f32.mrb[0].mxu0
        %v2705 = vadd.f32 0.0, %v2704
        %v2706 = vpop.f32.mrb[0].mxu0
        %v2707 = vpop.f32.mrb[0].mxu0
        %v2708 = vadd.f32 0.0, %v2707
        %v2709 = vpop.f32.mrb[0].mxu0
        %2710 = vdwg.mxu0
        %v2711 = vadd.f32 %v2304, %v2569
        %v2712 = vadd.f32 %v2307, %v2572
        %v2713 = vadd.f32 %v2312, %v2577
        %v2714 = vadd.f32 %v2315, %v2580
        %v2715 = vadd.f32 %v2320, %v2585
        %v2716 = vadd.f32 %v2323, %v2588
        %v2717 = vadd.f32 %v2328, %v2593
        %v2718 = vadd.f32 %v2331, %v2596
        %v2719 = vadd.f32 %v2336, %v2601
        %v2720 = vadd.f32 %v2339, %v2604
        %v2721 = vadd.f32 %v2344, %v2609
        %v2722 = vadd.f32 %v2347, %v2612
        %v2723 = vadd.f32 %v2352, %v2617
        %v2724 = vadd.f32 %v2355, %v2620
        %v2725 = vadd.f32 %v2360, %v2625
        %v2726 = vadd.f32 %v2363, %v2628
        %v2727 = vadd.f32 %v2368, %v2633
        %v2728 = vadd.f32 %v2371, %v2636
        %v2729 = vadd.f32 %v2376, %v2641
        %v2730 = vadd.f32 %v2379, %v2644
        %v2731 = vadd.f32 %v2384, %v2649
        %v2732 = vadd.f32 %v2387, %v2652
        %v2733 = vadd.f32 %v2392, %v2657
        %v2734 = vadd.f32 %v2395, %v2660
        %v2735 = vadd.f32 %v2400, %v2665
        %v2736 = vadd.f32 %v2403, %v2668
        %v2737 = vadd.f32 %v2408, %v2673
        %v2738 = vadd.f32 %v2411, %v2676
        %v2739 = vadd.f32 %v2416, %v2681
        %v2740 = vadd.f32 %v2419, %v2684
        %v2741 = vadd.f32 %v2424, %v2689
        %v2742 = vadd.f32 %v2427, %v2692
        %v2743 = vadd.f32 %v2432, %v2697
        %v2744 = vadd.f32 %v2435, %v2700
        %v2745 = vadd.f32 %v2440, %v2705
        %v2746 = vadd.f32 %v2443, %v2708
        %v2747 = vld [vmem:[%s7] sm:$0x1]
        %v2749 = vlaneseq
        %v2750 = vshrl.u32 %v2749, 7
        %v2751 = vsub.s32 0, %v2750
        %v2752 = vrot.slane %v2747, %v2751
        %v2754 = vadd.f32 %v2711, %v2752
        %v2755 = vadd.f32 %v2712, %v2752
        %v2756 = vadd.f32 %v2713, %v2752
        %v2757 = vadd.f32 %v2714, %v2752
        %v2758 = vadd.f32 %v2715, %v2752
        %v2759 = vadd.f32 %v2716, %v2752
        %v2760 = vadd.f32 %v2717, %v2752
        %v2761 = vadd.f32 %v2718, %v2752
        %v2762 = vadd.f32 %v2719, %v2752
        %v2763 = vadd.f32 %v2720, %v2752
        %v2764 = vadd.f32 %v2721, %v2752
        %v2765 = vadd.f32 %v2722, %v2752
        %v2766 = vadd.f32 %v2723, %v2752
        %v2767 = vadd.f32 %v2724, %v2752
        %v2768 = vadd.f32 %v2725, %v2752
        %v2769 = vadd.f32 %v2726, %v2752
        %v2770 = vadd.f32 %v2727, %v2752
        %v2771 = vadd.f32 %v2728, %v2752
        %v2772 = vadd.f32 %v2729, %v2752
        %v2773 = vadd.f32 %v2730, %v2752
        %v2774 = vadd.f32 %v2731, %v2752
        %v2775 = vadd.f32 %v2732, %v2752
        %v2776 = vadd.f32 %v2733, %v2752
        %v2777 = vadd.f32 %v2734, %v2752
        %v2778 = vadd.f32 %v2735, %v2752
        %v2779 = vadd.f32 %v2736, %v2752
        %v2780 = vadd.f32 %v2737, %v2752
        %v2781 = vadd.f32 %v2738, %v2752
        %v2782 = vadd.f32 %v2739, %v2752
        %v2783 = vadd.f32 %v2740, %v2752
        %v2784 = vadd.f32 %v2741, %v2752
        %v2785 = vadd.f32 %v2742, %v2752
        %v2786 = vadd.f32 %v2743, %v2752
        %v2787 = vadd.f32 %v2744, %v2752
        %v2788 = vadd.f32 %v2745, %v2752
        %v2789 = vadd.f32 %v2746, %v2752
        %v2790 = vmax.f32 %v2754, 0.0
        %v2791 = vmax.f32 %v2755, 0.0
        %v2792 = vmax.f32 %v2756, 0.0
        %v2793 = vmax.f32 %v2757, 0.0
        %v2794 = vmax.f32 %v2758, 0.0
        %v2795 = vmax.f32 %v2759, 0.0
        %v2796 = vmax.f32 %v2760, 0.0
        %v2797 = vmax.f32 %v2761, 0.0
        %v2798 = vmax.f32 %v2762, 0.0
        %v2799 = vmax.f32 %v2763, 0.0
        %v2800 = vmax.f32 %v2764, 0.0
        %v2801 = vmax.f32 %v2765, 0.0
        %v2802 = vmax.f32 %v2766, 0.0
        %v2803 = vmax.f32 %v2767, 0.0
        %v2804 = vmax.f32 %v2768, 0.0
        %v2805 = vmax.f32 %v2769, 0.0
        %v2806 = vmax.f32 %v2770, 0.0
        %v2807 = vmax.f32 %v2771, 0.0
        %v2808 = vmax.f32 %v2772, 0.0
        %v2809 = vmax.f32 %v2773, 0.0
        %v2810 = vmax.f32 %v2774, 0.0
        %v2811 = vmax.f32 %v2775, 0.0
        %v2812 = vmax.f32 %v2776, 0.0
        %v2813 = vmax.f32 %v2777, 0.0
        %v2814 = vmax.f32 %v2778, 0.0
        %v2815 = vmax.f32 %v2779, 0.0
        %v2816 = vmax.f32 %v2780, 0.0
        %v2817 = vmax.f32 %v2781, 0.0
        %v2818 = vmax.f32 %v2782, 0.0
        %v2819 = vmax.f32 %v2783, 0.0
        %v2820 = vmax.f32 %v2784, 0.0
        %v2821 = vmax.f32 %v2785, 0.0
        %v2822 = vmax.f32 %v2786, 0.0
        %v2823 = vmax.f32 %v2787, 0.0
        %v2824 = vmax.f32 %v2788, 0.0
        %v2825 = vmax.f32 %v2789, 0.0
        %v2826 = vpack.c.bf16 %v2791, %v2790
        %v2827 = vpack.c.bf16 %v2793, %v2792
        %v2828 = vpack.c.bf16 %v2795, %v2794
        %v2829 = vpack.c.bf16 %v2797, %v2796
        %v2830 = vpack.c.bf16 %v2799, %v2798
        %v2831 = vpack.c.bf16 %v2801, %v2800
        %v2832 = vpack.c.bf16 %v2803, %v2802
        %v2833 = vpack.c.bf16 %v2805, %v2804
        %v2834 = vpack.c.bf16 %v2807, %v2806
        %v2835 = vpack.c.bf16 %v2809, %v2808
        %v2836 = vpack.c.bf16 %v2811, %v2810
        %v2837 = vpack.c.bf16 %v2813, %v2812
        %v2838 = vpack.c.bf16 %v2815, %v2814
        %v2839 = vpack.c.bf16 %v2817, %v2816
        %v2840 = vpack.c.bf16 %v2819, %v2818
        %v2841 = vpack.c.bf16 %v2821, %v2820
        %v2842 = vpack.c.bf16 %v2823, %v2822
        %v2843 = vpack.c.bf16 %v2825, %v2824
        %2844 = vst [vmem:[#allocation3 + $0x8] sm:$0xff] %v2826
        %2845 = vst [vmem:[#allocation3 + $0x20] sm:$0xff] %v2827
        %2846 = vst [vmem:[#allocation3 + $0x38] sm:$0xff] %v2828
        %2847 = vst [vmem:[#allocation3 + $0x50] sm:$0xff] %v2829
        %2848 = vst [vmem:[#allocation3 + $0x68] sm:$0xff] %v2830
        %2849 = vst [vmem:[#allocation3 + $0x80] sm:$0xff] %v2831
        %2850 = vst [vmem:[#allocation3 + $0x98] sm:$0xff] %v2832
        %2851 = vst [vmem:[#allocation3 + $0xb0] sm:$0xff] %v2833
        %2852 = vst [vmem:[#allocation3 + $0xc8] sm:$0xff] %v2834
        %2853 = vst [vmem:[#allocation3 + $0xe0] sm:$0xff] %v2835
        %2854 = vst [vmem:[#allocation3 + $0xf8] sm:$0xff] %v2836
        %2855 = vst [vmem:[#allocation3 + $0x110] sm:$0xff] %v2837
        %2856 = vst [vmem:[#allocation3 + $0x128] sm:$0xff] %v2838
        %2857 = vst [vmem:[#allocation3 + $0x140] sm:$0xff] %v2839
        %2858 = vst [vmem:[#allocation3 + $0x158] sm:$0xff] %v2840
        %2859 = vst [vmem:[#allocation3 + $0x170] sm:$0xff] %v2841
        %2860 = vst [vmem:[#allocation3 + $0x188] sm:$0xff] %v2842
        %2861 = vst [vmem:[#allocation3 + $0x1a0] sm:$0xff] %v2843
        %2862 = vst [vmem:[#allocation3 + $0x8] sm:$0xff] 0
        %s2863 = scalar_lea.vmem [#allocation3], 408
        %2864 = vst [vmem:[%s2863 + $0x8] sm:$0xff] 0
        %v2865 = vld [vmem:[#allocation3 + $0x8] sm:$0xff]
        %v2866 = vld [vmem:[#allocation3 + $0x20] sm:$0xff]
        %v2867 = vld [vmem:[#allocation3 + $0x38] sm:$0xff]
        %v2868 = vld [vmem:[#allocation3 + $0x50] sm:$0xff]
        %v2869 = vld [vmem:[#allocation3 + $0x68] sm:$0xff]
        %v2870 = vld [vmem:[#allocation3 + $0x80] sm:$0xff]
        %v2871 = vld [vmem:[#allocation3 + $0x98] sm:$0xff]
        %v2872 = vld [vmem:[#allocation3 + $0xb0] sm:$0xff]
        %v2873 = vld [vmem:[#allocation3 + $0xc8] sm:$0xff]
        %v2874 = vld [vmem:[#allocation3 + $0xe0] sm:$0xff]
        %v2875 = vld [vmem:[#allocation3 + $0xf8] sm:$0xff]
        %v2876 = vld [vmem:[#allocation3 + $0x110] sm:$0xff]
        %v2877 = vld [vmem:[#allocation3 + $0x128] sm:$0xff]
        %v2878 = vld [vmem:[#allocation3 + $0x140] sm:$0xff]
        %v2879 = vld [vmem:[#allocation3 + $0x158] sm:$0xff]
        %v2880 = vld [vmem:[#allocation3 + $0x170] sm:$0xff]
        %v2881 = vld [vmem:[#allocation3 + $0x188] sm:$0xff]
        %v2882 = vld [vmem:[#allocation3 + $0x1a0] sm:$0xff]
        %vm2883 = vcmask 1040384
        %vm2884 = vmand %vm2883, %vm603
        %v2885 = vld [vmem:[#allocation3] sm:$0x1]
        %v2886 = vsel %vm2884, 0, %v2885
        %2887 = vst [vmem:[#allocation3] sm:$0x1] %v2886
        %v2888 = vld [vmem:[#allocation3 + $0x18] sm:$0x1]
        %v2889 = vsel %vm2884, 0, %v2888
        %2890 = vst [vmem:[#allocation3 + $0x18] sm:$0x1] %v2889
        %v2891 = vld [vmem:[#allocation3 + $0x30] sm:$0x1]
        %v2892 = vsel %vm2884, 0, %v2891
        %2893 = vst [vmem:[#allocation3 + $0x30] sm:$0x1] %v2892
        %v2894 = vld [vmem:[#allocation3 + $0x48] sm:$0x1]
        %v2895 = vsel %vm2884, 0, %v2894
        %2896 = vst [vmem:[#allocation3 + $0x48] sm:$0x1] %v2895
        %v2897 = vld [vmem:[#allocation3 + $0x60] sm:$0x1]
        %v2898 = vsel %vm2884, 0, %v2897
        %2899 = vst [vmem:[#allocation3 + $0x60] sm:$0x1] %v2898
        %v2900 = vld [vmem:[#allocation3 + $0x78] sm:$0x1]
        %v2901 = vsel %vm2884, 0, %v2900
        %2902 = vst [vmem:[#allocation3 + $0x78] sm:$0x1] %v2901
        %v2903 = vld [vmem:[#allocation3 + $0x90] sm:$0x1]
        %v2904 = vsel %vm2884, 0, %v2903
        %2905 = vst [vmem:[#allocation3 + $0x90] sm:$0x1] %v2904
        %v2906 = vld [vmem:[#allocation3 + $0xa8] sm:$0x1]
        %v2907 = vsel %vm2884, 0, %v2906
        %2908 = vst [vmem:[#allocation3 + $0xa8] sm:$0x1] %v2907
        %v2909 = vld [vmem:[#allocation3 + $0xc0] sm:$0x1]
        %v2910 = vsel %vm2884, 0, %v2909
        %2911 = vst [vmem:[#allocation3 + $0xc0] sm:$0x1] %v2910
        %v2912 = vld [vmem:[#allocation3 + $0xd8] sm:$0x1]
        %v2913 = vsel %vm2884, 0, %v2912
        %2914 = vst [vmem:[#allocation3 + $0xd8] sm:$0x1] %v2913
        %v2915 = vld [vmem:[#allocation3 + $0xf0] sm:$0x1]
        %v2916 = vsel %vm2884, 0, %v2915
        %2917 = vst [vmem:[#allocation3 + $0xf0] sm:$0x1] %v2916
        %v2918 = vld [vmem:[#allocation3 + $0x108] sm:$0x1]
        %v2919 = vsel %vm2884, 0, %v2918
        %2920 = vst [vmem:[#allocation3 + $0x108] sm:$0x1] %v2919
        %v2921 = vld [vmem:[#allocation3 + $0x120] sm:$0x1]
        %v2922 = vsel %vm2884, 0, %v2921
        %2923 = vst [vmem:[#allocation3 + $0x120] sm:$0x1] %v2922
        %v2924 = vld [vmem:[#allocation3 + $0x138] sm:$0x1]
        %v2925 = vsel %vm2884, 0, %v2924
        %2926 = vst [vmem:[#allocation3 + $0x138] sm:$0x1] %v2925
        %v2927 = vld [vmem:[#allocation3 + $0x150] sm:$0x1]
        %v2928 = vsel %vm2884, 0, %v2927
        %2929 = vst [vmem:[#allocation3 + $0x150] sm:$0x1] %v2928
        %v2930 = vld [vmem:[#allocation3 + $0x168] sm:$0x1]
        %v2931 = vsel %vm2884, 0, %v2930
        %2932 = vst [vmem:[#allocation3 + $0x168] sm:$0x1] %v2931
        %v2933 = vld [vmem:[#allocation3 + $0x180] sm:$0x1]
        %v2934 = vsel %vm2884, 0, %v2933
        %2935 = vst [vmem:[#allocation3 + $0x180] sm:$0x1] %v2934
        %v2936 = vld [vmem:[#allocation3 + $0x198] sm:$0x1]
        %v2937 = vsel %vm2884, 0, %v2936
        %2938 = vst [vmem:[#allocation3 + $0x198] sm:$0x1] %v2937
        %v2940 = vshrl.u32 %v2865, 16
        %v2942 = vrot.slane %v2940, 7
        %v2943 = vshll.u32 %v2865, 16
        %v2945 = vor.u32 %v2942, %v2943
        %v2947 = vshrl.u32 %v2866, 16
        %v2949 = vrot.slane %v2947, 7
        %v2950 = vshll.u32 %v2866, 16
        %v2952 = vor.u32 %v2949, %v2950
        %v2954 = vshrl.u32 %v2867, 16
        %v2956 = vrot.slane %v2954, 7
        %v2957 = vshll.u32 %v2867, 16
        %v2959 = vor.u32 %v2956, %v2957
        %v2961 = vshrl.u32 %v2868, 16
        %v2963 = vrot.slane %v2961, 7
        %v2964 = vshll.u32 %v2868, 16
        %v2966 = vor.u32 %v2963, %v2964
        %v2968 = vshrl.u32 %v2869, 16
        %v2970 = vrot.slane %v2968, 7
        %v2971 = vshll.u32 %v2869, 16
        %v2973 = vor.u32 %v2970, %v2971
        %v2975 = vshrl.u32 %v2870, 16
        %v2977 = vrot.slane %v2975, 7
        %v2978 = vshll.u32 %v2870, 16
        %v2980 = vor.u32 %v2977, %v2978
        %v2982 = vshrl.u32 %v2871, 16
        %v2984 = vrot.slane %v2982, 7
        %v2985 = vshll.u32 %v2871, 16
        %v2987 = vor.u32 %v2984, %v2985
        %v2989 = vshrl.u32 %v2872, 16
        %v2991 = vrot.slane %v2989, 7
        %v2992 = vshll.u32 %v2872, 16
        %v2994 = vor.u32 %v2991, %v2992
        %v2996 = vshrl.u32 %v2873, 16
        %v2998 = vrot.slane %v2996, 7
        %v2999 = vshll.u32 %v2873, 16
        %v3001 = vor.u32 %v2998, %v2999
        %v3003 = vshrl.u32 %v2874, 16
        %v3005 = vrot.slane %v3003, 7
        %v3006 = vshll.u32 %v2874, 16
        %v3008 = vor.u32 %v3005, %v3006
        %v3010 = vshrl.u32 %v2875, 16
        %v3012 = vrot.slane %v3010, 7
        %v3013 = vshll.u32 %v2875, 16
        %v3015 = vor.u32 %v3012, %v3013
        %v3017 = vshrl.u32 %v2876, 16
        %v3019 = vrot.slane %v3017, 7
        %v3020 = vshll.u32 %v2876, 16
        %v3022 = vor.u32 %v3019, %v3020
        %v3024 = vshrl.u32 %v2877, 16
        %v3026 = vrot.slane %v3024, 7
        %v3027 = vshll.u32 %v2877, 16
        %v3029 = vor.u32 %v3026, %v3027
        %v3031 = vshrl.u32 %v2878, 16
        %v3033 = vrot.slane %v3031, 7
        %v3034 = vshll.u32 %v2878, 16
        %v3036 = vor.u32 %v3033, %v3034
        %v3038 = vshrl.u32 %v2879, 16
        %v3040 = vrot.slane %v3038, 7
        %v3041 = vshll.u32 %v2879, 16
        %v3043 = vor.u32 %v3040, %v3041
        %v3045 = vshrl.u32 %v2880, 16
        %v3047 = vrot.slane %v3045, 7
        %v3048 = vshll.u32 %v2880, 16
        %v3050 = vor.u32 %v3047, %v3048
        %v3052 = vshrl.u32 %v2881, 16
        %v3054 = vrot.slane %v3052, 7
        %v3055 = vshll.u32 %v2881, 16
        %v3057 = vor.u32 %v3054, %v3055
        %v3059 = vshrl.u32 %v2882, 16
        %v3061 = vrot.slane %v3059, 7
        %v3062 = vshll.u32 %v2882, 16
        %v3064 = vor.u32 %v3061, %v3062
        %vm3083 = vcmask 1047552
        %vm3084 = vmand %vm3083, %vm612
        %v3085 = vld [vmem:[#allocation3] sm:$0xff]
        %v3086 = vsel %vm3084, %v2945, %v3085
        %3087 = vst [vmem:[#allocation3] sm:$0xff] %v3086
        %v3088 = vld [vmem:[#allocation3 + $0x18] sm:$0xff]
        %v3089 = vsel %vm3084, %v2952, %v3088
        %3090 = vst [vmem:[#allocation3 + $0x18] sm:$0xff] %v3089
        %v3091 = vld [vmem:[#allocation3 + $0x30] sm:$0xff]
        %v3092 = vsel %vm3084, %v2959, %v3091
        %3093 = vst [vmem:[#allocation3 + $0x30] sm:$0xff] %v3092
        %v3094 = vld [vmem:[#allocation3 + $0x48] sm:$0xff]
        %v3095 = vsel %vm3084, %v2966, %v3094
        %3096 = vst [vmem:[#allocation3 + $0x48] sm:$0xff] %v3095
        %v3097 = vld [vmem:[#allocation3 + $0x60] sm:$0xff]
        %v3098 = vsel %vm3084, %v2973, %v3097
        %3099 = vst [vmem:[#allocation3 + $0x60] sm:$0xff] %v3098
        %v3100 = vld [vmem:[#allocation3 + $0x78] sm:$0xff]
        %v3101 = vsel %vm3084, %v2980, %v3100
        %3102 = vst [vmem:[#allocation3 + $0x78] sm:$0xff] %v3101
        %v3103 = vld [vmem:[#allocation3 + $0x90] sm:$0xff]
        %v3104 = vsel %vm3084, %v2987, %v3103
        %3105 = vst [vmem:[#allocation3 + $0x90] sm:$0xff] %v3104
        %v3106 = vld [vmem:[#allocation3 + $0xa8] sm:$0xff]
        %v3107 = vsel %vm3084, %v2994, %v3106
        %3108 = vst [vmem:[#allocation3 + $0xa8] sm:$0xff] %v3107
        %v3109 = vld [vmem:[#allocation3 + $0xc0] sm:$0xff]
        %v3110 = vsel %vm3084, %v3001, %v3109
        %3111 = vst [vmem:[#allocation3 + $0xc0] sm:$0xff] %v3110
        %v3112 = vld [vmem:[#allocation3 + $0xd8] sm:$0xff]
        %v3113 = vsel %vm3084, %v3008, %v3112
        %3114 = vst [vmem:[#allocation3 + $0xd8] sm:$0xff] %v3113
        %v3115 = vld [vmem:[#allocation3 + $0xf0] sm:$0xff]
        %v3116 = vsel %vm3084, %v3015, %v3115
        %3117 = vst [vmem:[#allocation3 + $0xf0] sm:$0xff] %v3116
        %v3118 = vld [vmem:[#allocation3 + $0x108] sm:$0xff]
        %v3119 = vsel %vm3084, %v3022, %v3118
        %3120 = vst [vmem:[#allocation3 + $0x108] sm:$0xff] %v3119
        %v3121 = vld [vmem:[#allocation3 + $0x120] sm:$0xff]
        %v3122 = vsel %vm3084, %v3029, %v3121
        %3123 = vst [vmem:[#allocation3 + $0x120] sm:$0xff] %v3122
        %v3124 = vld [vmem:[#allocation3 + $0x138] sm:$0xff]
        %v3125 = vsel %vm3084, %v3036, %v3124
        %3126 = vst [vmem:[#allocation3 + $0x138] sm:$0xff] %v3125
        %v3127 = vld [vmem:[#allocation3 + $0x150] sm:$0xff]
        %v3128 = vsel %vm3084, %v3043, %v3127
        %3129 = vst [vmem:[#allocation3 + $0x150] sm:$0xff] %v3128
        %v3130 = vld [vmem:[#allocation3 + $0x168] sm:$0xff]
        %v3131 = vsel %vm3084, %v3050, %v3130
        %3132 = vst [vmem:[#allocation3 + $0x168] sm:$0xff] %v3131
        %v3133 = vld [vmem:[#allocation3 + $0x180] sm:$0xff]
        %v3134 = vsel %vm3084, %v3057, %v3133
        %3135 = vst [vmem:[#allocation3 + $0x180] sm:$0xff] %v3134
        %v3136 = vld [vmem:[#allocation3 + $0x198] sm:$0xff]
        %v3137 = vsel %vm3084, %v3064, %v3136
        %3138 = vst [vmem:[#allocation3 + $0x198] sm:$0xff] %v3137
        %v3139 = vrot.slane %v2943, 1
        %v3140 = vor.u32 %v2940, %v3139
        %v3141 = vrot.slane %v2950, 1
        %v3142 = vor.u32 %v2947, %v3141
        %v3143 = vrot.slane %v2957, 1
        %v3144 = vor.u32 %v2954, %v3143
        %v3145 = vrot.slane %v2964, 1
        %v3146 = vor.u32 %v2961, %v3145
        %v3147 = vrot.slane %v2971, 1
        %v3148 = vor.u32 %v2968, %v3147
        %v3149 = vrot.slane %v2978, 1
        %v3150 = vor.u32 %v2975, %v3149
        %v3151 = vrot.slane %v2985, 1
        %v3152 = vor.u32 %v2982, %v3151
        %v3153 = vrot.slane %v2992, 1
        %v3154 = vor.u32 %v2989, %v3153
        %v3155 = vrot.slane %v2999, 1
        %v3156 = vor.u32 %v2996, %v3155
        %v3157 = vrot.slane %v3006, 1
        %v3158 = vor.u32 %v3003, %v3157
        %v3159 = vrot.slane %v3013, 1
        %v3160 = vor.u32 %v3010, %v3159
        %v3161 = vrot.slane %v3020, 1
        %v3162 = vor.u32 %v3017, %v3161
        %v3163 = vrot.slane %v3027, 1
        %v3164 = vor.u32 %v3024, %v3163
        %v3165 = vrot.slane %v3034, 1
        %v3166 = vor.u32 %v3031, %v3165
        %v3167 = vrot.slane %v3041, 1
        %v3168 = vor.u32 %v3038, %v3167
        %v3169 = vrot.slane %v3048, 1
        %v3170 = vor.u32 %v3045, %v3169
        %v3171 = vrot.slane %v3055, 1
        %v3172 = vor.u32 %v3052, %v3171
        %v3173 = vrot.slane %v3062, 1
        %v3174 = vor.u32 %v3059, %v3173
        %vm3193 = vmand %vm3083, %vm624
        %v3194 = vld [vmem:[#allocation3 + $0x10] sm:$0xff]
        %v3195 = vsel %vm3193, %v3140, %v3194
        %3196 = vst [vmem:[#allocation3 + $0x10] sm:$0xff] %v3195
        %v3197 = vld [vmem:[#allocation3 + $0x28] sm:$0xff]
        %v3198 = vsel %vm3193, %v3142, %v3197
        %3199 = vst [vmem:[#allocation3 + $0x28] sm:$0xff] %v3198
        %v3200 = vld [vmem:[#allocation3 + $0x40] sm:$0xff]
        %v3201 = vsel %vm3193, %v3144, %v3200
        %3202 = vst [vmem:[#allocation3 + $0x40] sm:$0xff] %v3201
        %v3203 = vld [vmem:[#allocation3 + $0x58] sm:$0xff]
        %v3204 = vsel %vm3193, %v3146, %v3203
        %3205 = vst [vmem:[#allocation3 + $0x58] sm:$0xff] %v3204
        %v3206 = vld [vmem:[#allocation3 + $0x70] sm:$0xff]
        %v3207 = vsel %vm3193, %v3148, %v3206
        %3208 = vst [vmem:[#allocation3 + $0x70] sm:$0xff] %v3207
        %v3209 = vld [vmem:[#allocation3 + $0x88] sm:$0xff]
        %v3210 = vsel %vm3193, %v3150, %v3209
        %3211 = vst [vmem:[#allocation3 + $0x88] sm:$0xff] %v3210
        %v3212 = vld [vmem:[#allocation3 + $0xa0] sm:$0xff]
        %v3213 = vsel %vm3193, %v3152, %v3212
        %3214 = vst [vmem:[#allocation3 + $0xa0] sm:$0xff] %v3213
        %v3215 = vld [vmem:[#allocation3 + $0xb8] sm:$0xff]
        %v3216 = vsel %vm3193, %v3154, %v3215
        %3217 = vst [vmem:[#allocation3 + $0xb8] sm:$0xff] %v3216
        %v3218 = vld [vmem:[#allocation3 + $0xd0] sm:$0xff]
        %v3219 = vsel %vm3193, %v3156, %v3218
        %3220 = vst [vmem:[#allocation3 + $0xd0] sm:$0xff] %v3219
        %v3221 = vld [vmem:[#allocation3 + $0xe8] sm:$0xff]
        %v3222 = vsel %vm3193, %v3158, %v3221
        %3223 = vst [vmem:[#allocation3 + $0xe8] sm:$0xff] %v3222
        %v3224 = vld [vmem:[#allocation3 + $0x100] sm:$0xff]
        %v3225 = vsel %vm3193, %v3160, %v3224
        %3226 = vst [vmem:[#allocation3 + $0x100] sm:$0xff] %v3225
        %v3227 = vld [vmem:[#allocation3 + $0x118] sm:$0xff]
        %v3228 = vsel %vm3193, %v3162, %v3227
        %3229 = vst [vmem:[#allocation3 + $0x118] sm:$0xff] %v3228
        %v3230 = vld [vmem:[#allocation3 + $0x130] sm:$0xff]
        %v3231 = vsel %vm3193, %v3164, %v3230
        %3232 = vst [vmem:[#allocation3 + $0x130] sm:$0xff] %v3231
        %v3233 = vld [vmem:[#allocation3 + $0x148] sm:$0xff]
        %v3234 = vsel %vm3193, %v3166, %v3233
        %3235 = vst [vmem:[#allocation3 + $0x148] sm:$0xff] %v3234
        %v3236 = vld [vmem:[#allocation3 + $0x160] sm:$0xff]
        %v3237 = vsel %vm3193, %v3168, %v3236
        %3238 = vst [vmem:[#allocation3 + $0x160] sm:$0xff] %v3237
        %v3239 = vld [vmem:[#allocation3 + $0x178] sm:$0xff]
        %v3240 = vsel %vm3193, %v3170, %v3239
        %3241 = vst [vmem:[#allocation3 + $0x178] sm:$0xff] %v3240
        %v3242 = vld [vmem:[#allocation3 + $0x190] sm:$0xff]
        %v3243 = vsel %vm3193, %v3172, %v3242
        %3244 = vst [vmem:[#allocation3 + $0x190] sm:$0xff] %v3243
        %v3245 = vld [vmem:[#allocation3 + $0x1a8] sm:$0xff]
        %v3246 = vsel %vm3193, %v3174, %v3245
        %3247 = vst [vmem:[#allocation3 + $0x1a8] sm:$0xff] %v3246
        %vm3248 = vcmask 1047559
        %vm3249 = vmand %vm3248, %vm633
        %v3250 = vld [vmem:[#allocation3 + $0x10] sm:$0x80]
        %v3251 = vsel %vm3249, 0, %v3250
        %3252 = vst [vmem:[#allocation3 + $0x10] sm:$0x80] %v3251
        %v3253 = vld [vmem:[#allocation3 + $0x28] sm:$0x80]
        %v3254 = vsel %vm3249, 0, %v3253
        %3255 = vst [vmem:[#allocation3 + $0x28] sm:$0x80] %v3254
        %v3256 = vld [vmem:[#allocation3 + $0x40] sm:$0x80]
        %v3257 = vsel %vm3249, 0, %v3256
        %3258 = vst [vmem:[#allocation3 + $0x40] sm:$0x80] %v3257
        %v3259 = vld [vmem:[#allocation3 + $0x58] sm:$0x80]
        %v3260 = vsel %vm3249, 0, %v3259
        %3261 = vst [vmem:[#allocation3 + $0x58] sm:$0x80] %v3260
        %v3262 = vld [vmem:[#allocation3 + $0x70] sm:$0x80]
        %v3263 = vsel %vm3249, 0, %v3262
        %3264 = vst [vmem:[#allocation3 + $0x70] sm:$0x80] %v3263
        %v3265 = vld [vmem:[#allocation3 + $0x88] sm:$0x80]
        %v3266 = vsel %vm3249, 0, %v3265
        %3267 = vst [vmem:[#allocation3 + $0x88] sm:$0x80] %v3266
        %v3268 = vld [vmem:[#allocation3 + $0xa0] sm:$0x80]
        %v3269 = vsel %vm3249, 0, %v3268
        %3270 = vst [vmem:[#allocation3 + $0xa0] sm:$0x80] %v3269
        %v3271 = vld [vmem:[#allocation3 + $0xb8] sm:$0x80]
        %v3272 = vsel %vm3249, 0, %v3271
        %3273 = vst [vmem:[#allocation3 + $0xb8] sm:$0x80] %v3272
        %v3274 = vld [vmem:[#allocation3 + $0xd0] sm:$0x80]
        %v3275 = vsel %vm3249, 0, %v3274
        %3276 = vst [vmem:[#allocation3 + $0xd0] sm:$0x80] %v3275
        %v3277 = vld [vmem:[#allocation3 + $0xe8] sm:$0x80]
        %v3278 = vsel %vm3249, 0, %v3277
        %3279 = vst [vmem:[#allocation3 + $0xe8] sm:$0x80] %v3278
        %v3280 = vld [vmem:[#allocation3 + $0x100] sm:$0x80]
        %v3281 = vsel %vm3249, 0, %v3280
        %3282 = vst [vmem:[#allocation3 + $0x100] sm:$0x80] %v3281
        %v3283 = vld [vmem:[#allocation3 + $0x118] sm:$0x80]
        %v3284 = vsel %vm3249, 0, %v3283
        %3285 = vst [vmem:[#allocation3 + $0x118] sm:$0x80] %v3284
        %v3286 = vld [vmem:[#allocation3 + $0x130] sm:$0x80]
        %v3287 = vsel %vm3249, 0, %v3286
        %3288 = vst [vmem:[#allocation3 + $0x130] sm:$0x80] %v3287
        %v3289 = vld [vmem:[#allocation3 + $0x148] sm:$0x80]
        %v3290 = vsel %vm3249, 0, %v3289
        %3291 = vst [vmem:[#allocation3 + $0x148] sm:$0x80] %v3290
        %v3292 = vld [vmem:[#allocation3 + $0x160] sm:$0x80]
        %v3293 = vsel %vm3249, 0, %v3292
        %3294 = vst [vmem:[#allocation3 + $0x160] sm:$0x80] %v3293
        %v3295 = vld [vmem:[#allocation3 + $0x178] sm:$0x80]
        %v3296 = vsel %vm3249, 0, %v3295
        %3297 = vst [vmem:[#allocation3 + $0x178] sm:$0x80] %v3296
        %v3298 = vld [vmem:[#allocation3 + $0x190] sm:$0x80]
        %v3299 = vsel %vm3249, 0, %v3298
        %3300 = vst [vmem:[#allocation3 + $0x190] sm:$0x80] %v3299
        %v3301 = vld [vmem:[#allocation3 + $0x1a8] sm:$0x80]
        %v3302 = vsel %vm3249, 0, %v3301
        %3303 = vst [vmem:[#allocation3 + $0x1a8] sm:$0x80] %v3302
        %v3304 = vld [vmem:[#allocation3] sm:$0xff]
        %v3305 = vld [vmem:[#allocation3 + $0x8] sm:$0xff]
        %v3306 = vld [vmem:[#allocation3 + $0x10] sm:$0xff]
        %v3307 = vld [vmem:[#allocation3 + $0x18] sm:$0xff]
        %v3308 = vld [vmem:[#allocation3 + $0x20] sm:$0xff]
        %v3309 = vld [vmem:[#allocation3 + $0x28] sm:$0xff]
        %v3310 = vld [vmem:[#allocation3 + $0x30] sm:$0xff]
        %v3311 = vld [vmem:[#allocation3 + $0x38] sm:$0xff]
        %v3312 = vld [vmem:[#allocation3 + $0x40] sm:$0xff]
        %v3313 = vld [vmem:[#allocation3 + $0x48] sm:$0xff]
        %v3314 = vld [vmem:[#allocation3 + $0x50] sm:$0xff]
        %v3315 = vld [vmem:[#allocation3 + $0x58] sm:$0xff]
        %v3316 = vld [vmem:[#allocation3 + $0x60] sm:$0xff]
        %v3317 = vld [vmem:[#allocation3 + $0x68] sm:$0xff]
        %v3318 = vld [vmem:[#allocation3 + $0x70] sm:$0xff]
        %v3319 = vld [vmem:[#allocation3 + $0x78] sm:$0xff]
        %v3320 = vld [vmem:[#allocation3 + $0x80] sm:$0xff]
        %v3321 = vld [vmem:[#allocation3 + $0x88] sm:$0xff]
        %v3322 = vld [vmem:[#allocation3 + $0x90] sm:$0xff]
        %v3323 = vld [vmem:[#allocation3 + $0x98] sm:$0xff]
        %v3324 = vld [vmem:[#allocation3 + $0xa0] sm:$0xff]
        %v3325 = vld [vmem:[#allocation3 + $0xa8] sm:$0xff]
        %v3326 = vld [vmem:[#allocation3 + $0xb0] sm:$0xff]
        %v3327 = vld [vmem:[#allocation3 + $0xb8] sm:$0xff]
        %v3328 = vld [vmem:[#allocation3 + $0xc0] sm:$0xff]
        %v3329 = vld [vmem:[#allocation3 + $0xc8] sm:$0xff]
        %v3330 = vld [vmem:[#allocation3 + $0xd0] sm:$0xff]
        %v3331 = vld [vmem:[#allocation3 + $0xd8] sm:$0xff]
        %v3332 = vld [vmem:[#allocation3 + $0xe0] sm:$0xff]
        %v3333 = vld [vmem:[#allocation3 + $0xe8] sm:$0xff]
        %v3334 = vld [vmem:[#allocation3 + $0xf0] sm:$0xff]
        %v3335 = vld [vmem:[#allocation3 + $0xf8] sm:$0xff]
        %v3336 = vld [vmem:[#allocation3 + $0x100] sm:$0xff]
        %v3337 = vld [vmem:[#allocation3 + $0x108] sm:$0xff]
        %v3338 = vld [vmem:[#allocation3 + $0x110] sm:$0xff]
        %v3339 = vld [vmem:[#allocation3 + $0x118] sm:$0xff]
        %v3340 = vld [vmem:[#allocation3 + $0x120] sm:$0xff]
        %v3341 = vld [vmem:[#allocation3 + $0x128] sm:$0xff]
        %v3342 = vld [vmem:[#allocation3 + $0x130] sm:$0xff]
        %v3343 = vld [vmem:[#allocation3 + $0x138] sm:$0xff]
        %v3344 = vld [vmem:[#allocation3 + $0x140] sm:$0xff]
        %v3345 = vld [vmem:[#allocation3 + $0x148] sm:$0xff]
        %v3346 = vld [vmem:[#allocation3 + $0x150] sm:$0xff]
        %v3347 = vld [vmem:[#allocation3 + $0x158] sm:$0xff]
        %v3348 = vld [vmem:[#allocation3 + $0x160] sm:$0xff]
        %v3349 = vld [vmem:[#allocation3 + $0x168] sm:$0xff]
        %v3350 = vld [vmem:[#allocation3 + $0x170] sm:$0xff]
        %v3351 = vld [vmem:[#allocation3 + $0x178] sm:$0xff]
        %v3352 = vld [vmem:[%s8] sm:$0xf]
        %v3353 = vld [vmem:[%s8 + $0x4] sm:$0xf]
        %v3354 = vld [vmem:[%s8 + $0x8] sm:$0xf]
        %v3355 = vld [vmem:[%s8 + $0xc] sm:$0xf]
        %v3356 = vld [vmem:[%s8 + $0x10] sm:$0xf]
        %v3357 = vld [vmem:[%s8 + $0x14] sm:$0xf]
        %v3358 = vld [vmem:[%s8 + $0x18] sm:$0xf]
        %v3359 = vld [vmem:[%s8 + $0x1c] sm:$0xf]
        %v3360 = vld [vmem:[%s8 + $0x20] sm:$0xf]
        %v3361 = vld [vmem:[%s8 + $0x24] sm:$0xf]
        %v3362 = vld [vmem:[%s8 + $0x28] sm:$0xf]
        %v3363 = vld [vmem:[%s8 + $0x2c] sm:$0xf]
        %v3364 = vld [vmem:[%s8 + $0x30] sm:$0xf]
        %v3365 = vld [vmem:[%s8 + $0x34] sm:$0xf]
        %v3366 = vld [vmem:[%s8 + $0x38] sm:$0xf]
        %v3367 = vld [vmem:[%s8 + $0x3c] sm:$0xf]
        %v3368 = vld [vmem:[%s8 + $0x40] sm:$0xf]
        %v3369 = vld [vmem:[%s8 + $0x44] sm:$0xf]
        %v3370 = vld [vmem:[%s8 + $0x48] sm:$0xf]
        %v3371 = vld [vmem:[%s8 + $0x4c] sm:$0xf]
        %v3372 = vld [vmem:[%s8 + $0x50] sm:$0xf]
        %v3373 = vld [vmem:[%s8 + $0x54] sm:$0xf]
        %v3374 = vld [vmem:[%s8 + $0x58] sm:$0xf]
        %v3375 = vld [vmem:[%s8 + $0x5c] sm:$0xf]
        %v3376 = vld [vmem:[%s8 + $0x60] sm:$0xf]
        %v3377 = vld [vmem:[%s8 + $0x64] sm:$0xf]
        %v3378 = vld [vmem:[%s8 + $0x68] sm:$0xf]
        %v3379 = vld [vmem:[%s8 + $0x6c] sm:$0xf]
        %v3380 = vld [vmem:[%s8 + $0x70] sm:$0xf]
        %v3381 = vld [vmem:[%s8 + $0x74] sm:$0xf]
        %v3382 = vld [vmem:[%s8 + $0x78] sm:$0xf]
        %v3383 = vld [vmem:[%s8 + $0x7c] sm:$0xf]
        %v3384 = vld [vmem:[%s8 + $0x80] sm:$0xf]
        %v3385 = vld [vmem:[%s8 + $0x84] sm:$0xf]
        %v3386 = vld [vmem:[%s8 + $0x88] sm:$0xf]
        %v3387 = vld [vmem:[%s8 + $0x8c] sm:$0xf]
        %v3388 = vld [vmem:[%s8 + $0x90] sm:$0xf]
        %v3389 = vld [vmem:[%s8 + $0x94] sm:$0xf]
        %v3390 = vld [vmem:[%s8 + $0x98] sm:$0xf]
        %v3391 = vld [vmem:[%s8 + $0x9c] sm:$0xf]
        %v3392 = vld [vmem:[%s8 + $0xa0] sm:$0xf]
        %v3393 = vld [vmem:[%s8 + $0xa4] sm:$0xf]
        %v3394 = vld [vmem:[%s8 + $0xa8] sm:$0xf]
        %v3395 = vld [vmem:[%s8 + $0xac] sm:$0xf]
        %v3396 = vld [vmem:[%s8 + $0xb0] sm:$0xf]
        %v3397 = vld [vmem:[%s8 + $0xb4] sm:$0xf]
        %v3398 = vld [vmem:[%s8 + $0xb8] sm:$0xf]
        %v3399 = vld [vmem:[%s8 + $0xbc] sm:$0xf]
        %s3400 = scalar_lea.vmem [#allocation3], 24
        %v3401 = vld [vmem:[%s3400] sm:$0xff]
        %v3402 = vld [vmem:[%s3400 + $0x8] sm:$0xff]
        %v3403 = vld [vmem:[%s3400 + $0x10] sm:$0xff]
        %v3404 = vld [vmem:[%s3400 + $0x18] sm:$0xff]
        %v3405 = vld [vmem:[%s3400 + $0x20] sm:$0xff]
        %v3406 = vld [vmem:[%s3400 + $0x28] sm:$0xff]
        %v3407 = vld [vmem:[%s3400 + $0x30] sm:$0xff]
        %v3408 = vld [vmem:[%s3400 + $0x38] sm:$0xff]
        %v3409 = vld [vmem:[%s3400 + $0x40] sm:$0xff]
        %v3410 = vld [vmem:[%s3400 + $0x48] sm:$0xff]
        %v3411 = vld [vmem:[%s3400 + $0x50] sm:$0xff]
        %v3412 = vld [vmem:[%s3400 + $0x58] sm:$0xff]
        %v3413 = vld [vmem:[%s3400 + $0x60] sm:$0xff]
        %v3414 = vld [vmem:[%s3400 + $0x68] sm:$0xff]
        %v3415 = vld [vmem:[%s3400 + $0x70] sm:$0xff]
        %v3416 = vld [vmem:[%s3400 + $0x78] sm:$0xff]
        %v3417 = vld [vmem:[%s3400 + $0x80] sm:$0xff]
        %v3418 = vld [vmem:[%s3400 + $0x88] sm:$0xff]
        %v3419 = vld [vmem:[%s3400 + $0x90] sm:$0xff]
        %v3420 = vld [vmem:[%s3400 + $0x98] sm:$0xff]
        %v3421 = vld [vmem:[%s3400 + $0xa0] sm:$0xff]
        %v3422 = vld [vmem:[%s3400 + $0xa8] sm:$0xff]
        %v3423 = vld [vmem:[%s3400 + $0xb0] sm:$0xff]
        %v3424 = vld [vmem:[%s3400 + $0xb8] sm:$0xff]
        %v3425 = vld [vmem:[%s3400 + $0xc0] sm:$0xff]
        %v3426 = vld [vmem:[%s3400 + $0xc8] sm:$0xff]
        %v3427 = vld [vmem:[%s3400 + $0xd0] sm:$0xff]
        %v3428 = vld [vmem:[%s3400 + $0xd8] sm:$0xff]
        %v3429 = vld [vmem:[%s3400 + $0xe0] sm:$0xff]
        %v3430 = vld [vmem:[%s3400 + $0xe8] sm:$0xff]
        %v3431 = vld [vmem:[%s3400 + $0xf0] sm:$0xff]
        %v3432 = vld [vmem:[%s3400 + $0xf8] sm:$0xff]
        %v3433 = vld [vmem:[%s3400 + $0x100] sm:$0xff]
        %v3434 = vld [vmem:[%s3400 + $0x108] sm:$0xff]
        %v3435 = vld [vmem:[%s3400 + $0x110] sm:$0xff]
        %v3436 = vld [vmem:[%s3400 + $0x118] sm:$0xff]
        %v3437 = vld [vmem:[%s3400 + $0x120] sm:$0xff]
        %v3438 = vld [vmem:[%s3400 + $0x128] sm:$0xff]
        %v3439 = vld [vmem:[%s3400 + $0x130] sm:$0xff]
        %v3440 = vld [vmem:[%s3400 + $0x138] sm:$0xff]
        %v3441 = vld [vmem:[%s3400 + $0x140] sm:$0xff]
        %v3442 = vld [vmem:[%s3400 + $0x148] sm:$0xff]
        %v3443 = vld [vmem:[%s3400 + $0x150] sm:$0xff]
        %v3444 = vld [vmem:[%s3400 + $0x158] sm:$0xff]
        %v3445 = vld [vmem:[%s3400 + $0x160] sm:$0xff]
        %v3446 = vld [vmem:[%s3400 + $0x168] sm:$0xff]
        %v3447 = vld [vmem:[%s3400 + $0x170] sm:$0xff]
        %v3448 = vld [vmem:[%s3400 + $0x178] sm:$0xff]
        %s3449 = scalar_lea.vmem %s8, 192
        %v3450 = vld [vmem:[%s3449] sm:$0xf]
        %v3451 = vld [vmem:[%s3449 + $0x4] sm:$0xf]
        %v3452 = vld [vmem:[%s3449 + $0x8] sm:$0xf]
        %v3453 = vld [vmem:[%s3449 + $0xc] sm:$0xf]
        %v3454 = vld [vmem:[%s3449 + $0x10] sm:$0xf]
        %v3455 = vld [vmem:[%s3449 + $0x14] sm:$0xf]
        %v3456 = vld [vmem:[%s3449 + $0x18] sm:$0xf]
        %v3457 = vld [vmem:[%s3449 + $0x1c] sm:$0xf]
        %v3458 = vld [vmem:[%s3449 + $0x20] sm:$0xf]
        %v3459 = vld [vmem:[%s3449 + $0x24] sm:$0xf]
        %v3460 = vld [vmem:[%s3449 + $0x28] sm:$0xf]
        %v3461 = vld [vmem:[%s3449 + $0x2c] sm:$0xf]
        %v3462 = vld [vmem:[%s3449 + $0x30] sm:$0xf]
        %v3463 = vld [vmem:[%s3449 + $0x34] sm:$0xf]
        %v3464 = vld [vmem:[%s3449 + $0x38] sm:$0xf]
        %v3465 = vld [vmem:[%s3449 + $0x3c] sm:$0xf]
        %v3466 = vld [vmem:[%s3449 + $0x40] sm:$0xf]
        %v3467 = vld [vmem:[%s3449 + $0x44] sm:$0xf]
        %v3468 = vld [vmem:[%s3449 + $0x48] sm:$0xf]
        %v3469 = vld [vmem:[%s3449 + $0x4c] sm:$0xf]
        %v3470 = vld [vmem:[%s3449 + $0x50] sm:$0xf]
        %v3471 = vld [vmem:[%s3449 + $0x54] sm:$0xf]
        %v3472 = vld [vmem:[%s3449 + $0x58] sm:$0xf]
        %v3473 = vld [vmem:[%s3449 + $0x5c] sm:$0xf]
        %v3474 = vld [vmem:[%s3449 + $0x60] sm:$0xf]
        %v3475 = vld [vmem:[%s3449 + $0x64] sm:$0xf]
        %v3476 = vld [vmem:[%s3449 + $0x68] sm:$0xf]
        %v3477 = vld [vmem:[%s3449 + $0x6c] sm:$0xf]
        %v3478 = vld [vmem:[%s3449 + $0x70] sm:$0xf]
        %v3479 = vld [vmem:[%s3449 + $0x74] sm:$0xf]
        %v3480 = vld [vmem:[%s3449 + $0x78] sm:$0xf]
        %v3481 = vld [vmem:[%s3449 + $0x7c] sm:$0xf]
        %v3482 = vld [vmem:[%s3449 + $0x80] sm:$0xf]
        %v3483 = vld [vmem:[%s3449 + $0x84] sm:$0xf]
        %v3484 = vld [vmem:[%s3449 + $0x88] sm:$0xf]
        %v3485 = vld [vmem:[%s3449 + $0x8c] sm:$0xf]
        %v3486 = vld [vmem:[%s3449 + $0x90] sm:$0xf]
        %v3487 = vld [vmem:[%s3449 + $0x94] sm:$0xf]
        %v3488 = vld [vmem:[%s3449 + $0x98] sm:$0xf]
        %v3489 = vld [vmem:[%s3449 + $0x9c] sm:$0xf]
        %v3490 = vld [vmem:[%s3449 + $0xa0] sm:$0xf]
        %v3491 = vld [vmem:[%s3449 + $0xa4] sm:$0xf]
        %v3492 = vld [vmem:[%s3449 + $0xa8] sm:$0xf]
        %v3493 = vld [vmem:[%s3449 + $0xac] sm:$0xf]
        %v3494 = vld [vmem:[%s3449 + $0xb0] sm:$0xf]
        %v3495 = vld [vmem:[%s3449 + $0xb4] sm:$0xf]
        %v3496 = vld [vmem:[%s3449 + $0xb8] sm:$0xf]
        %v3497 = vld [vmem:[%s3449 + $0xbc] sm:$0xf]
        %v3546 = vunpack.c.l.b16 %v3450
        %v3547 = vunpack.c.l.b16 %v3451
        %v3548 = vunpack.c.l.b16 %v3452
        %v3549 = vunpack.c.l.b16 %v3453
        %v3550 = vunpack.c.l.b16 %v3454
        %v3551 = vunpack.c.l.b16 %v3455
        %v3552 = vunpack.c.l.b16 %v3456
        %v3553 = vunpack.c.l.b16 %v3457
        %v3554 = vunpack.c.l.b16 %v3458
        %v3555 = vunpack.c.l.b16 %v3459
        %v3556 = vunpack.c.l.b16 %v3460
        %v3557 = vunpack.c.l.b16 %v3461
        %v3558 = vunpack.c.l.b16 %v3462
        %v3559 = vunpack.c.l.b16 %v3463
        %v3560 = vunpack.c.l.b16 %v3464
        %v3561 = vunpack.c.l.b16 %v3465
        %v3562 = vunpack.c.l.b16 %v3466
        %v3563 = vunpack.c.l.b16 %v3467
        %v3564 = vunpack.c.l.b16 %v3468
        %v3565 = vunpack.c.l.b16 %v3469
        %v3566 = vunpack.c.l.b16 %v3470
        %v3567 = vunpack.c.l.b16 %v3471
        %v3568 = vunpack.c.l.b16 %v3472
        %v3569 = vunpack.c.l.b16 %v3473
        %v3570 = vunpack.c.l.b16 %v3474
        %v3571 = vunpack.c.l.b16 %v3475
        %v3572 = vunpack.c.l.b16 %v3476
        %v3573 = vunpack.c.l.b16 %v3477
        %v3574 = vunpack.c.l.b16 %v3478
        %v3575 = vunpack.c.l.b16 %v3479
        %v3576 = vunpack.c.l.b16 %v3480
        %v3577 = vunpack.c.l.b16 %v3481
        %v3578 = vunpack.c.l.b16 %v3482
        %v3579 = vunpack.c.l.b16 %v3483
        %v3580 = vunpack.c.l.b16 %v3484
        %v3581 = vunpack.c.l.b16 %v3485
        %v3582 = vunpack.c.l.b16 %v3486
        %v3583 = vunpack.c.l.b16 %v3487
        %v3584 = vunpack.c.l.b16 %v3488
        %v3585 = vunpack.c.l.b16 %v3489
        %v3586 = vunpack.c.l.b16 %v3490
        %v3587 = vunpack.c.l.b16 %v3491
        %v3588 = vunpack.c.l.b16 %v3492
        %v3589 = vunpack.c.l.b16 %v3493
        %v3590 = vunpack.c.l.b16 %v3494
        %v3591 = vunpack.c.l.b16 %v3495
        %v3592 = vunpack.c.l.b16 %v3496
        %v3593 = vunpack.c.l.b16 %v3497
        %v3594 = vpack.c.b16 %v3547, %v3546
        %v3595 = vpack.c.b16 %v3549, %v3548
        %v3596 = vpack.c.b16 %v3551, %v3550
        %v3597 = vpack.c.b16 %v3553, %v3552
        %v3598 = vpack.c.b16 %v3555, %v3554
        %v3599 = vpack.c.b16 %v3557, %v3556
        %v3600 = vpack.c.b16 %v3559, %v3558
        %v3601 = vpack.c.b16 %v3561, %v3560
        %v3602 = vpack.c.b16 %v3563, %v3562
        %v3603 = vpack.c.b16 %v3565, %v3564
        %v3604 = vpack.c.b16 %v3567, %v3566
        %v3605 = vpack.c.b16 %v3569, %v3568
        %v3606 = vpack.c.b16 %v3571, %v3570
        %v3607 = vpack.c.b16 %v3573, %v3572
        %v3608 = vpack.c.b16 %v3575, %v3574
        %v3609 = vpack.c.b16 %v3577, %v3576
        %v3610 = vpack.c.b16 %v3579, %v3578
        %v3611 = vpack.c.b16 %v3581, %v3580
        %v3612 = vpack.c.b16 %v3583, %v3582
        %v3613 = vpack.c.b16 %v3585, %v3584
        %v3614 = vpack.c.b16 %v3587, %v3586
        %v3615 = vpack.c.b16 %v3589, %v3588
        %v3616 = vpack.c.b16 %v3591, %v3590
        %v3617 = vpack.c.b16 %v3593, %v3592
        %3642 = vmatprep.subr.bf16.mxu0 0
        %3643 = vmatpush1.bf16.msra.mxu0 %v3594
        %3644 = vmatprep.subr.bf16.mxu0 0
        %3645 = vmatpush1.bf16.msra.mxu0 %v3595
        %3646 = vmatprep.subr.bf16.mxu0 0
        %3647 = vmatpush1.bf16.msra.mxu0 %v3596
        %3648 = vmatprep.subr.bf16.mxu0 0
        %3649 = vmatpush1.bf16.msra.mxu0 %v3597
        %3650 = vmatprep.subr.bf16.mxu0 0
        %3651 = vmatpush1.bf16.msra.mxu0 %v3598
        %3652 = vmatprep.subr.bf16.mxu0 0
        %3653 = vmatpush1.bf16.msra.mxu0 %v3599
        %3654 = vmatprep.subr.bf16.mxu0 0
        %3655 = vmatpush1.bf16.msra.mxu0 %v3600
        %3656 = vmatprep.subr.bf16.mxu0 0
        %3657 = vmatpush1.bf16.msra.mxu0 %v3601
        %3658 = vmatprep.subr.bf16.mxu0 0
        %3659 = vmatpush1.bf16.msra.mxu0 %v3602
        %3660 = vmatprep.subr.bf16.mxu0 0
        %3661 = vmatpush1.bf16.msra.mxu0 %v3603
        %3662 = vmatprep.subr.bf16.mxu0 0
        %3663 = vmatpush1.bf16.msra.mxu0 %v3604
        %3664 = vmatprep.subr.bf16.mxu0 0
        %3665 = vmatpush1.bf16.msra.mxu0 %v3605
        %3666 = vmatprep.subr.bf16.mxu0 0
        %3667 = vmatpush1.bf16.msra.mxu0 %v3606
        %3668 = vmatprep.subr.bf16.mxu0 0
        %3669 = vmatpush1.bf16.msra.mxu0 %v3607
        %3670 = vmatprep.subr.bf16.mxu0 0
        %3671 = vmatpush1.bf16.msra.mxu0 %v3608
        %3672 = vmatprep.subr.bf16.mxu0 0
        %3673 = vmatpush1.bf16.msra.mxu0 %v3609
        %3674 = vmatprep.mubr.bf16.mxu0 %v3402
        %3675 = vmatmul.mubr.bf16.gmra.mrb[0].mxu0 %v3401
        %v3676 = vpop.f32.mrb[0].mxu0
        %v3677 = vadd.f32 0.0, %v3676
        %v3678 = vpop.f32.mrb[0].mxu0
        %v3679 = vpop.f32.mrb[0].mxu0
        %v3680 = vadd.f32 0.0, %v3679
        %v3681 = vpop.f32.mrb[0].mxu0
        %3682 = vmatprep.mubr.bf16.mxu0 %v3405
        %3683 = vmatmul.mubr.bf16.gmra.mrb[0].mxu0 %v3404
        %v3684 = vpop.f32.mrb[0].mxu0
        %v3685 = vadd.f32 0.0, %v3684
        %v3686 = vpop.f32.mrb[0].mxu0
        %v3687 = vpop.f32.mrb[0].mxu0
        %v3688 = vadd.f32 0.0, %v3687
        %v3689 = vpop.f32.mrb[0].mxu0
        %3690 = vmatprep.mubr.bf16.mxu0 %v3408
        %3691 = vmatmul.mubr.bf16.gmra.mrb[0].mxu0 %v3407
        %v3692 = vpop.f32.mrb[0].mxu0
        %v3693 = vadd.f32 0.0, %v3692
        %v3694 = vpop.f32.mrb[0].mxu0
        %v3695 = vpop.f32.mrb[0].mxu0
        %v3696 = vadd.f32 0.0, %v3695
        %v3697 = vpop.f32.mrb[0].mxu0
        %3698 = vmatprep.mubr.bf16.mxu0 %v3411
        %3699 = vmatmul.mubr.bf16.gmra.mrb[0].mxu0 %v3410
        %v3700 = vpop.f32.mrb[0].mxu0
        %v3701 = vadd.f32 0.0, %v3700
        %v3702 = vpop.f32.mrb[0].mxu0
        %v3703 = vpop.f32.mrb[0].mxu0
        %v3704 = vadd.f32 0.0, %v3703
        %v3705 = vpop.f32.mrb[0].mxu0
        %3706 = vmatprep.mubr.bf16.mxu0 %v3414
        %3707 = vmatmul.mubr.bf16.gmra.mrb[0].mxu0 %v3413
        %v3708 = vpop.f32.mrb[0].mxu0
        %v3709 = vadd.f32 0.0, %v3708
        %v3710 = vpop.f32.mrb[0].mxu0
        %v3711 = vpop.f32.mrb[0].mxu0
        %v3712 = vadd.f32 0.0, %v3711
        %v3713 = vpop.f32.mrb[0].mxu0
        %3714 = vmatprep.mubr.bf16.mxu0 %v3417
        %3715 = vmatmul.mubr.bf16.gmra.mrb[0].mxu0 %v3416
        %v3716 = vpop.f32.mrb[0].mxu0
        %v3717 = vadd.f32 0.0, %v3716
        %v3718 = vpop.f32.mrb[0].mxu0
        %v3719 = vpop.f32.mrb[0].mxu0
        %v3720 = vadd.f32 0.0, %v3719
        %v3721 = vpop.f32.mrb[0].mxu0
        %3722 = vmatprep.mubr.bf16.mxu0 %v3420
        %3723 = vmatmul.mubr.bf16.gmra.mrb[0].mxu0 %v3419
        %v3724 = vpop.f32.mrb[0].mxu0
        %v3725 = vadd.f32 0.0, %v3724
        %v3726 = vpop.f32.mrb[0].mxu0
        %v3727 = vpop.f32.mrb[0].mxu0
        %v3728 = vadd.f32 0.0, %v3727
        %v3729 = vpop.f32.mrb[0].mxu0
        %3730 = vmatprep.mubr.bf16.mxu0 %v3423
        %3731 = vmatmul.mubr.bf16.gmra.mrb[0].mxu0 %v3422
        %v3732 = vpop.f32.mrb[0].mxu0
        %v3733 = vadd.f32 0.0, %v3732
        %v3734 = vpop.f32.mrb[0].mxu0
        %v3735 = vpop.f32.mrb[0].mxu0
        %v3736 = vadd.f32 0.0, %v3735
        %v3737 = vpop.f32.mrb[0].mxu0
        %3738 = vmatprep.mubr.bf16.mxu0 %v3426
        %3739 = vmatmul.mubr.bf16.gmra.mrb[0].mxu0 %v3425
        %v3740 = vpop.f32.mrb[0].mxu0
        %v3741 = vadd.f32 0.0, %v3740
        %v3742 = vpop.f32.mrb[0].mxu0
        %v3743 = vpop.f32.mrb[0].mxu0
        %v3744 = vadd.f32 0.0, %v3743
        %v3745 = vpop.f32.mrb[0].mxu0
        %3746 = vmatprep.mubr.bf16.mxu0 %v3429
        %3747 = vmatmul.mubr.bf16.gmra.mrb[0].mxu0 %v3428
        %v3748 = vpop.f32.mrb[0].mxu0
        %v3749 = vadd.f32 0.0, %v3748
        %v3750 = vpop.f32.mrb[0].mxu0
        %v3751 = vpop.f32.mrb[0].mxu0
        %v3752 = vadd.f32 0.0, %v3751
        %v3753 = vpop.f32.mrb[0].mxu0
        %3754 = vmatprep.mubr.bf16.mxu0 %v3432
        %3755 = vmatmul.mubr.bf16.gmra.mrb[0].mxu0 %v3431
        %v3756 = vpop.f32.mrb[0].mxu0
        %v3757 = vadd.f32 0.0, %v3756
        %v3758 = vpop.f32.mrb[0].mxu0
        %v3759 = vpop.f32.mrb[0].mxu0
        %v3760 = vadd.f32 0.0, %v3759
        %v3761 = vpop.f32.mrb[0].mxu0
        %3762 = vmatprep.mubr.bf16.mxu0 %v3435
        %3763 = vmatmul.mubr.bf16.gmra.mrb[0].mxu0 %v3434
        %v3764 = vpop.f32.mrb[0].mxu0
        %v3765 = vadd.f32 0.0, %v3764
        %v3766 = vpop.f32.mrb[0].mxu0
        %v3767 = vpop.f32.mrb[0].mxu0
        %v3768 = vadd.f32 0.0, %v3767
        %v3769 = vpop.f32.mrb[0].mxu0
        %3770 = vmatprep.mubr.bf16.mxu0 %v3438
        %3771 = vmatmul.mubr.bf16.gmra.mrb[0].mxu0 %v3437
        %v3772 = vpop.f32.mrb[0].mxu0
        %v3773 = vadd.f32 0.0, %v3772
        %v3774 = vpop.f32.mrb[0].mxu0
        %v3775 = vpop.f32.mrb[0].mxu0
        %v3776 = vadd.f32 0.0, %v3775
        %v3777 = vpop.f32.mrb[0].mxu0
        %3778 = vmatprep.mubr.bf16.mxu0 %v3441
        %3779 = vmatmul.mubr.bf16.gmra.mrb[0].mxu0 %v3440
        %v3780 = vpop.f32.mrb[0].mxu0
        %v3781 = vadd.f32 0.0, %v3780
        %v3782 = vpop.f32.mrb[0].mxu0
        %v3783 = vpop.f32.mrb[0].mxu0
        %v3784 = vadd.f32 0.0, %v3783
        %v3785 = vpop.f32.mrb[0].mxu0
        %3786 = vmatprep.mubr.bf16.mxu0 %v3444
        %3787 = vmatmul.mubr.bf16.gmra.mrb[0].mxu0 %v3443
        %v3788 = vpop.f32.mrb[0].mxu0
        %v3789 = vadd.f32 0.0, %v3788
        %v3790 = vpop.f32.mrb[0].mxu0
        %v3791 = vpop.f32.mrb[0].mxu0
        %v3792 = vadd.f32 0.0, %v3791
        %v3793 = vpop.f32.mrb[0].mxu0
        %3794 = vmatprep.mubr.bf16.mxu0 %v3447
        %3795 = vmatmul.mubr.bf16.gmra.mrb[0].mxu0 %v3446
        %v3796 = vpop.f32.mrb[0].mxu0
        %v3797 = vadd.f32 0.0, %v3796
        %v3798 = vpop.f32.mrb[0].mxu0
        %v3799 = vpop.f32.mrb[0].mxu0
        %v3800 = vadd.f32 0.0, %v3799
        %v3801 = vpop.f32.mrb[0].mxu0
        %3802 = vdwg.mxu0
        %3803 = vmatprep.subr.bf16.mxu0 0
        %3804 = vmatpush1.bf16.msra.mxu0 %v3610
        %3805 = vmatprep.subr.bf16.mxu0 0
        %3806 = vmatpush1.bf16.msra.mxu0 %v3611
        %3807 = vmatprep.subr.bf16.mxu0 0
        %3808 = vmatpush1.bf16.msra.mxu0 %v3612
        %3809 = vmatprep.subr.bf16.mxu0 0
        %3810 = vmatpush1.bf16.msra.mxu0 %v3613
        %3811 = vmatprep.subr.bf16.mxu0 0
        %3812 = vmatpush1.bf16.msra.mxu0 %v3614
        %3813 = vmatprep.subr.bf16.mxu0 0
        %3814 = vmatpush1.bf16.msra.mxu0 %v3615
        %3815 = vmatprep.subr.bf16.mxu0 0
        %3816 = vmatpush1.bf16.msra.mxu0 %v3616
        %3817 = vmatprep.subr.bf16.mxu0 0
        %3818 = vmatpush1.bf16.msra.mxu0 %v3617
        %3819 = vmatprep.subr.bf16.mxu0 0
        %3820 = vmatpush1.bf16.msra.mxu0 0
        %3821 = vmatprep.subr.bf16.mxu0 0
        %3822 = vmatpush1.bf16.msra.mxu0 0
        %3823 = vmatprep.subr.bf16.mxu0 0
        %3824 = vmatpush1.bf16.msra.mxu0 0
        %3825 = vmatprep.subr.bf16.mxu0 0
        %3826 = vmatpush1.bf16.msra.mxu0 0
        %3827 = vmatprep.subr.bf16.mxu0 0
        %3828 = vmatpush1.bf16.msra.mxu0 0
        %3829 = vmatprep.subr.bf16.mxu0 0
        %3830 = vmatpush1.bf16.msra.mxu0 0
        %3831 = vmatprep.subr.bf16.mxu0 0
        %3832 = vmatpush1.bf16.msra.mxu0 0
        %3833 = vmatprep.subr.bf16.mxu0 0
        %3834 = vmatpush1.bf16.msra.mxu0 0
        %3835 = vmatprep.mubr.bf16.mxu0 0
        %3836 = vmatmul.mubr.bf16.gmra.mrb[0].mxu0 %v3403
        %v3837 = vpop.f32.mrb[0].mxu0
        %v3838 = vadd.f32 %v3677, %v3837
        %v3839 = vpop.f32.mrb[0].mxu0
        %v3840 = vpop.f32.mrb[0].mxu0
        %v3841 = vadd.f32 %v3680, %v3840
        %v3842 = vpop.f32.mrb[0].mxu0
        %3843 = vmatprep.mubr.bf16.mxu0 0
        %3844 = vmatmul.mubr.bf16.gmra.mrb[0].mxu0 %v3406
        %v3845 = vpop.f32.mrb[0].mxu0
        %v3846 = vadd.f32 %v3685, %v3845
        %v3847 = vpop.f32.mrb[0].mxu0
        %v3848 = vpop.f32.mrb[0].mxu0
        %v3849 = vadd.f32 %v3688, %v3848
        %v3850 = vpop.f32.mrb[0].mxu0
        %3851 = vmatprep.mubr.bf16.mxu0 0
        %3852 = vmatmul.mubr.bf16.gmra.mrb[0].mxu0 %v3409
        %v3853 = vpop.f32.mrb[0].mxu0
        %v3854 = vadd.f32 %v3693, %v3853
        %v3855 = vpop.f32.mrb[0].mxu0
        %v3856 = vpop.f32.mrb[0].mxu0
        %v3857 = vadd.f32 %v3696, %v3856
        %v3858 = vpop.f32.mrb[0].mxu0
        %3859 = vmatprep.mubr.bf16.mxu0 0
        %3860 = vmatmul.mubr.bf16.gmra.mrb[0].mxu0 %v3412
        %v3861 = vpop.f32.mrb[0].mxu0
        %v3862 = vadd.f32 %v3701, %v3861
        %v3863 = vpop.f32.mrb[0].mxu0
        %v3864 = vpop.f32.mrb[0].mxu0
        %v3865 = vadd.f32 %v3704, %v3864
        %v3866 = vpop.f32.mrb[0].mxu0
        %3867 = vmatprep.mubr.bf16.mxu0 0
        %3868 = vmatmul.mubr.bf16.gmra.mrb[0].mxu0 %v3415
        %v3869 = vpop.f32.mrb[0].mxu0
        %v3870 = vadd.f32 %v3709, %v3869
        %v3871 = vpop.f32.mrb[0].mxu0
        %v3872 = vpop.f32.mrb[0].mxu0
        %v3873 = vadd.f32 %v3712, %v3872
        %v3874 = vpop.f32.mrb[0].mxu0
        %3875 = vmatprep.mubr.bf16.mxu0 0
        %3876 = vmatmul.mubr.bf16.gmra.mrb[0].mxu0 %v3418
        %v3877 = vpop.f32.mrb[0].mxu0
        %v3878 = vadd.f32 %v3717, %v3877
        %v3879 = vpop.f32.mrb[0].mxu0
        %v3880 = vpop.f32.mrb[0].mxu0
        %v3881 = vadd.f32 %v3720, %v3880
        %v3882 = vpop.f32.mrb[0].mxu0
        %3883 = vmatprep.mubr.bf16.mxu0 0
        %3884 = vmatmul.mubr.bf16.gmra.mrb[0].mxu0 %v3421
        %v3885 = vpop.f32.mrb[0].mxu0
        %v3886 = vadd.f32 %v3725, %v3885
        %v3887 = vpop.f32.mrb[0].mxu0
        %v3888 = vpop.f32.mrb[0].mxu0
        %v3889 = vadd.f32 %v3728, %v3888
        %v3890 = vpop.f32.mrb[0].mxu0
        %3891 = vmatprep.mubr.bf16.mxu0 0
        %3892 = vmatmul.mubr.bf16.gmra.mrb[0].mxu0 %v3424
        %v3893 = vpop.f32.mrb[0].mxu0
        %v3894 = vadd.f32 %v3733, %v3893
        %v3895 = vpop.f32.mrb[0].mxu0
        %v3896 = vpop.f32.mrb[0].mxu0
        %v3897 = vadd.f32 %v3736, %v3896
        %v3898 = vpop.f32.mrb[0].mxu0
        %3899 = vmatprep.mubr.bf16.mxu0 0
        %3900 = vmatmul.mubr.bf16.gmra.mrb[0].mxu0 %v3427
        %v3901 = vpop.f32.mrb[0].mxu0
        %v3902 = vadd.f32 %v3741, %v3901
        %v3903 = vpop.f32.mrb[0].mxu0
        %v3904 = vpop.f32.mrb[0].mxu0
        %v3905 = vadd.f32 %v3744, %v3904
        %v3906 = vpop.f32.mrb[0].mxu0
        %3907 = vmatprep.mubr.bf16.mxu0 0
        %3908 = vmatmul.mubr.bf16.gmra.mrb[0].mxu0 %v3430
        %v3909 = vpop.f32.mrb[0].mxu0
        %v3910 = vadd.f32 %v3749, %v3909
        %v3911 = vpop.f32.mrb[0].mxu0
        %v3912 = vpop.f32.mrb[0].mxu0
        %v3913 = vadd.f32 %v3752, %v3912
        %v3914 = vpop.f32.mrb[0].mxu0
        %3915 = vmatprep.mubr.bf16.mxu0 0
        %3916 = vmatmul.mubr.bf16.gmra.mrb[0].mxu0 %v3433
        %v3917 = vpop.f32.mrb[0].mxu0
        %v3918 = vadd.f32 %v3757, %v3917
        %v3919 = vpop.f32.mrb[0].mxu0
        %v3920 = vpop.f32.mrb[0].mxu0
        %v3921 = vadd.f32 %v3760, %v3920
        %v3922 = vpop.f32.mrb[0].mxu0
        %3923 = vmatprep.mubr.bf16.mxu0 0
        %3924 = vmatmul.mubr.bf16.gmra.mrb[0].mxu0 %v3436
        %v3925 = vpop.f32.mrb[0].mxu0
        %v3926 = vadd.f32 %v3765, %v3925
        %v3927 = vpop.f32.mrb[0].mxu0
        %v3928 = vpop.f32.mrb[0].mxu0
        %v3929 = vadd.f32 %v3768, %v3928
        %v3930 = vpop.f32.mrb[0].mxu0
        %3931 = vmatprep.mubr.bf16.mxu0 0
        %3932 = vmatmul.mubr.bf16.gmra.mrb[0].mxu0 %v3439
        %v3933 = vpop.f32.mrb[0].mxu0
        %v3934 = vadd.f32 %v3773, %v3933
        %v3935 = vpop.f32.mrb[0].mxu0
        %v3936 = vpop.f32.mrb[0].mxu0
        %v3937 = vadd.f32 %v3776, %v3936
        %v3938 = vpop.f32.mrb[0].mxu0
        %3939 = vmatprep.mubr.bf16.mxu0 0
        %3940 = vmatmul.mubr.bf16.gmra.mrb[0].mxu0 %v3442
        %v3941 = vpop.f32.mrb[0].mxu0
        %v3942 = vadd.f32 %v3781, %v3941
        %v3943 = vpop.f32.mrb[0].mxu0
        %v3944 = vpop.f32.mrb[0].mxu0
        %v3945 = vadd.f32 %v3784, %v3944
        %v3946 = vpop.f32.mrb[0].mxu0
        %3947 = vmatprep.mubr.bf16.mxu0 0
        %3948 = vmatmul.mubr.bf16.gmra.mrb[0].mxu0 %v3445
        %v3949 = vpop.f32.mrb[0].mxu0
        %v3950 = vadd.f32 %v3789, %v3949
        %v3951 = vpop.f32.mrb[0].mxu0
        %v3952 = vpop.f32.mrb[0].mxu0
        %v3953 = vadd.f32 %v3792, %v3952
        %v3954 = vpop.f32.mrb[0].mxu0
        %3955 = vmatprep.mubr.bf16.mxu0 0
        %3956 = vmatmul.mubr.bf16.gmra.mrb[0].mxu0 %v3448
        %v3957 = vpop.f32.mrb[0].mxu0
        %v3958 = vadd.f32 %v3797, %v3957
        %v3959 = vpop.f32.mrb[0].mxu0
        %v3960 = vpop.f32.mrb[0].mxu0
        %v3961 = vadd.f32 %v3800, %v3960
        %v3962 = vpop.f32.mrb[0].mxu0
        %3963 = vdwg.mxu0
        %v4012 = vunpack.c.l.b16 %v3352
        %v4013 = vunpack.c.l.b16 %v3353
        %v4014 = vunpack.c.l.b16 %v3354
        %v4015 = vunpack.c.l.b16 %v3355
        %v4016 = vunpack.c.l.b16 %v3356
        %v4017 = vunpack.c.l.b16 %v3357
        %v4018 = vunpack.c.l.b16 %v3358
        %v4019 = vunpack.c.l.b16 %v3359
        %v4020 = vunpack.c.l.b16 %v3360
        %v4021 = vunpack.c.l.b16 %v3361
        %v4022 = vunpack.c.l.b16 %v3362
        %v4023 = vunpack.c.l.b16 %v3363
        %v4024 = vunpack.c.l.b16 %v3364
        %v4025 = vunpack.c.l.b16 %v3365
        %v4026 = vunpack.c.l.b16 %v3366
        %v4027 = vunpack.c.l.b16 %v3367
        %v4028 = vunpack.c.l.b16 %v3368
        %v4029 = vunpack.c.l.b16 %v3369
        %v4030 = vunpack.c.l.b16 %v3370
        %v4031 = vunpack.c.l.b16 %v3371
        %v4032 = vunpack.c.l.b16 %v3372
        %v4033 = vunpack.c.l.b16 %v3373
        %v4034 = vunpack.c.l.b16 %v3374
        %v4035 = vunpack.c.l.b16 %v3375
        %v4036 = vunpack.c.l.b16 %v3376
        %v4037 = vunpack.c.l.b16 %v3377
        %v4038 = vunpack.c.l.b16 %v3378
        %v4039 = vunpack.c.l.b16 %v3379
        %v4040 = vunpack.c.l.b16 %v3380
        %v4041 = vunpack.c.l.b16 %v3381
        %v4042 = vunpack.c.l.b16 %v3382
        %v4043 = vunpack.c.l.b16 %v3383
        %v4044 = vunpack.c.l.b16 %v3384
        %v4045 = vunpack.c.l.b16 %v3385
        %v4046 = vunpack.c.l.b16 %v3386
        %v4047 = vunpack.c.l.b16 %v3387
        %v4048 = vunpack.c.l.b16 %v3388
        %v4049 = vunpack.c.l.b16 %v3389
        %v4050 = vunpack.c.l.b16 %v3390
        %v4051 = vunpack.c.l.b16 %v3391
        %v4052 = vunpack.c.l.b16 %v3392
        %v4053 = vunpack.c.l.b16 %v3393
        %v4054 = vunpack.c.l.b16 %v3394
        %v4055 = vunpack.c.l.b16 %v3395
        %v4056 = vunpack.c.l.b16 %v3396
        %v4057 = vunpack.c.l.b16 %v3397
        %v4058 = vunpack.c.l.b16 %v3398
        %v4059 = vunpack.c.l.b16 %v3399
        %v4060 = vpack.c.b16 %v4013, %v4012
        %v4061 = vpack.c.b16 %v4015, %v4014
        %v4062 = vpack.c.b16 %v4017, %v4016
        %v4063 = vpack.c.b16 %v4019, %v4018
        %v4064 = vpack.c.b16 %v4021, %v4020
        %v4065 = vpack.c.b16 %v4023, %v4022
        %v4066 = vpack.c.b16 %v4025, %v4024
        %v4067 = vpack.c.b16 %v4027, %v4026
        %v4068 = vpack.c.b16 %v4029, %v4028
        %v4069 = vpack.c.b16 %v4031, %v4030
        %v4070 = vpack.c.b16 %v4033, %v4032
        %v4071 = vpack.c.b16 %v4035, %v4034
        %v4072 = vpack.c.b16 %v4037, %v4036
        %v4073 = vpack.c.b16 %v4039, %v4038
        %v4074 = vpack.c.b16 %v4041, %v4040
        %v4075 = vpack.c.b16 %v4043, %v4042
        %v4076 = vpack.c.b16 %v4045, %v4044
        %v4077 = vpack.c.b16 %v4047, %v4046
        %v4078 = vpack.c.b16 %v4049, %v4048
        %v4079 = vpack.c.b16 %v4051, %v4050
        %v4080 = vpack.c.b16 %v4053, %v4052
        %v4081 = vpack.c.b16 %v4055, %v4054
        %v4082 = vpack.c.b16 %v4057, %v4056
        %v4083 = vpack.c.b16 %v4059, %v4058
        %4108 = vmatprep.subr.bf16.mxu0 0
        %4109 = vmatpush1.bf16.msra.mxu0 %v4060
        %4110 = vmatprep.subr.bf16.mxu0 0
        %4111 = vmatpush1.bf16.msra.mxu0 %v4061
        %4112 = vmatprep.subr.bf16.mxu0 0
        %4113 = vmatpush1.bf16.msra.mxu0 %v4062
        %4114 = vmatprep.subr.bf16.mxu0 0
        %4115 = vmatpush1.bf16.msra.mxu0 %v4063
        %4116 = vmatprep.subr.bf16.mxu0 0
        %4117 = vmatpush1.bf16.msra.mxu0 %v4064
        %4118 = vmatprep.subr.bf16.mxu0 0
        %4119 = vmatpush1.bf16.msra.mxu0 %v4065
        %4120 = vmatprep.subr.bf16.mxu0 0
        %4121 = vmatpush1.bf16.msra.mxu0 %v4066
        %4122 = vmatprep.subr.bf16.mxu0 0
        %4123 = vmatpush1.bf16.msra.mxu0 %v4067
        %4124 = vmatprep.subr.bf16.mxu0 0
        %4125 = vmatpush1.bf16.msra.mxu0 %v4068
        %4126 = vmatprep.subr.bf16.mxu0 0
        %4127 = vmatpush1.bf16.msra.mxu0 %v4069
        %4128 = vmatprep.subr.bf16.mxu0 0
        %4129 = vmatpush1.bf16.msra.mxu0 %v4070
        %4130 = vmatprep.subr.bf16.mxu0 0
        %4131 = vmatpush1.bf16.msra.mxu0 %v4071
        %4132 = vmatprep.subr.bf16.mxu0 0
        %4133 = vmatpush1.bf16.msra.mxu0 %v4072
        %4134 = vmatprep.subr.bf16.mxu0 0
        %4135 = vmatpush1.bf16.msra.mxu0 %v4073
        %4136 = vmatprep.subr.bf16.mxu0 0
        %4137 = vmatpush1.bf16.msra.mxu0 %v4074
        %4138 = vmatprep.subr.bf16.mxu0 0
        %4139 = vmatpush1.bf16.msra.mxu0 %v4075
        %4140 = vmatprep.mubr.bf16.mxu0 %v3305
        %4141 = vmatmul.mubr.bf16.gmra.mrb[0].mxu0 %v3304
        %v4142 = vpop.f32.mrb[0].mxu0
        %v4143 = vadd.f32 %v3838, %v4142
        %v4144 = vpop.f32.mrb[0].mxu0
        %v4145 = vpop.f32.mrb[0].mxu0
        %v4146 = vadd.f32 %v3841, %v4145
        %v4147 = vpop.f32.mrb[0].mxu0
        %4148 = vmatprep.mubr.bf16.mxu0 %v3308
        %4149 = vmatmul.mubr.bf16.gmra.mrb[0].mxu0 %v3307
        %v4150 = vpop.f32.mrb[0].mxu0
        %v4151 = vadd.f32 %v3846, %v4150
        %v4152 = vpop.f32.mrb[0].mxu0
        %v4153 = vpop.f32.mrb[0].mxu0
        %v4154 = vadd.f32 %v3849, %v4153
        %v4155 = vpop.f32.mrb[0].mxu0
        %4156 = vmatprep.mubr.bf16.mxu0 %v3311
        %4157 = vmatmul.mubr.bf16.gmra.mrb[0].mxu0 %v3310
        %v4158 = vpop.f32.mrb[0].mxu0
        %v4159 = vadd.f32 %v3854, %v4158
        %v4160 = vpop.f32.mrb[0].mxu0
        %v4161 = vpop.f32.mrb[0].mxu0
        %v4162 = vadd.f32 %v3857, %v4161
        %v4163 = vpop.f32.mrb[0].mxu0
        %4164 = vmatprep.mubr.bf16.mxu0 %v3314
        %4165 = vmatmul.mubr.bf16.gmra.mrb[0].mxu0 %v3313
        %v4166 = vpop.f32.mrb[0].mxu0
        %v4167 = vadd.f32 %v3862, %v4166
        %v4168 = vpop.f32.mrb[0].mxu0
        %v4169 = vpop.f32.mrb[0].mxu0
        %v4170 = vadd.f32 %v3865, %v4169
        %v4171 = vpop.f32.mrb[0].mxu0
        %4172 = vmatprep.mubr.bf16.mxu0 %v3317
        %4173 = vmatmul.mubr.bf16.gmra.mrb[0].mxu0 %v3316
        %v4174 = vpop.f32.mrb[0].mxu0
        %v4175 = vadd.f32 %v3870, %v4174
        %v4176 = vpop.f32.mrb[0].mxu0
        %v4177 = vpop.f32.mrb[0].mxu0
        %v4178 = vadd.f32 %v3873, %v4177
        %v4179 = vpop.f32.mrb[0].mxu0
        %4180 = vmatprep.mubr.bf16.mxu0 %v3320
        %4181 = vmatmul.mubr.bf16.gmra.mrb[0].mxu0 %v3319
        %v4182 = vpop.f32.mrb[0].mxu0
        %v4183 = vadd.f32 %v3878, %v4182
        %v4184 = vpop.f32.mrb[0].mxu0
        %v4185 = vpop.f32.mrb[0].mxu0
        %v4186 = vadd.f32 %v3881, %v4185
        %v4187 = vpop.f32.mrb[0].mxu0
        %4188 = vmatprep.mubr.bf16.mxu0 %v3323
        %4189 = vmatmul.mubr.bf16.gmra.mrb[0].mxu0 %v3322
        %v4190 = vpop.f32.mrb[0].mxu0
        %v4191 = vadd.f32 %v3886, %v4190
        %v4192 = vpop.f32.mrb[0].mxu0
        %v4193 = vpop.f32.mrb[0].mxu0
        %v4194 = vadd.f32 %v3889, %v4193
        %v4195 = vpop.f32.mrb[0].mxu0
        %4196 = vmatprep.mubr.bf16.mxu0 %v3326
        %4197 = vmatmul.mubr.bf16.gmra.mrb[0].mxu0 %v3325
        %v4198 = vpop.f32.mrb[0].mxu0
        %v4199 = vadd.f32 %v3894, %v4198
        %v4200 = vpop.f32.mrb[0].mxu0
        %v4201 = vpop.f32.mrb[0].mxu0
        %v4202 = vadd.f32 %v3897, %v4201
        %v4203 = vpop.f32.mrb[0].mxu0
        %4204 = vmatprep.mubr.bf16.mxu0 %v3329
        %4205 = vmatmul.mubr.bf16.gmra.mrb[0].mxu0 %v3328
        %v4206 = vpop.f32.mrb[0].mxu0
        %v4207 = vadd.f32 %v3902, %v4206
        %v4208 = vpop.f32.mrb[0].mxu0
        %v4209 = vpop.f32.mrb[0].mxu0
        %v4210 = vadd.f32 %v3905, %v4209
        %v4211 = vpop.f32.mrb[0].mxu0
        %4212 = vmatprep.mubr.bf16.mxu0 %v3332
        %4213 = vmatmul.mubr.bf16.gmra.mrb[0].mxu0 %v3331
        %v4214 = vpop.f32.mrb[0].mxu0
        %v4215 = vadd.f32 %v3910, %v4214
        %v4216 = vpop.f32.mrb[0].mxu0
        %v4217 = vpop.f32.mrb[0].mxu0
        %v4218 = vadd.f32 %v3913, %v4217
        %v4219 = vpop.f32.mrb[0].mxu0
        %4220 = vmatprep.mubr.bf16.mxu0 %v3335
        %4221 = vmatmul.mubr.bf16.gmra.mrb[0].mxu0 %v3334
        %v4222 = vpop.f32.mrb[0].mxu0
        %v4223 = vadd.f32 %v3918, %v4222
        %v4224 = vpop.f32.mrb[0].mxu0
        %v4225 = vpop.f32.mrb[0].mxu0
        %v4226 = vadd.f32 %v3921, %v4225
        %v4227 = vpop.f32.mrb[0].mxu0
        %4228 = vmatprep.mubr.bf16.mxu0 %v3338
        %4229 = vmatmul.mubr.bf16.gmra.mrb[0].mxu0 %v3337
        %v4230 = vpop.f32.mrb[0].mxu0
        %v4231 = vadd.f32 %v3926, %v4230
        %v4232 = vpop.f32.mrb[0].mxu0
        %v4233 = vpop.f32.mrb[0].mxu0
        %v4234 = vadd.f32 %v3929, %v4233
        %v4235 = vpop.f32.mrb[0].mxu0
        %4236 = vmatprep.mubr.bf16.mxu0 %v3341
        %4237 = vmatmul.mubr.bf16.gmra.mrb[0].mxu0 %v3340
        %v4238 = vpop.f32.mrb[0].mxu0
        %v4239 = vadd.f32 %v3934, %v4238
        %v4240 = vpop.f32.mrb[0].mxu0
        %v4241 = vpop.f32.mrb[0].mxu0
        %v4242 = vadd.f32 %v3937, %v4241
        %v4243 = vpop.f32.mrb[0].mxu0
        %4244 = vmatprep.mubr.bf16.mxu0 %v3344
        %4245 = vmatmul.mubr.bf16.gmra.mrb[0].mxu0 %v3343
        %v4246 = vpop.f32.mrb[0].mxu0
        %v4247 = vadd.f32 %v3942, %v4246
        %v4248 = vpop.f32.mrb[0].mxu0
        %v4249 = vpop.f32.mrb[0].mxu0
        %v4250 = vadd.f32 %v3945, %v4249
        %v4251 = vpop.f32.mrb[0].mxu0
        %4252 = vmatprep.mubr.bf16.mxu0 %v3347
        %4253 = vmatmul.mubr.bf16.gmra.mrb[0].mxu0 %v3346
        %v4254 = vpop.f32.mrb[0].mxu0
        %v4255 = vadd.f32 %v3950, %v4254
        %v4256 = vpop.f32.mrb[0].mxu0
        %v4257 = vpop.f32.mrb[0].mxu0
        %v4258 = vadd.f32 %v3953, %v4257
        %v4259 = vpop.f32.mrb[0].mxu0
        %4260 = vmatprep.mubr.bf16.mxu0 %v3350
        %4261 = vmatmul.mubr.bf16.gmra.mrb[0].mxu0 %v3349
        %v4262 = vpop.f32.mrb[0].mxu0
        %v4263 = vadd.f32 %v3958, %v4262
        %v4264 = vpop.f32.mrb[0].mxu0
        %v4265 = vpop.f32.mrb[0].mxu0
        %v4266 = vadd.f32 %v3961, %v4265
        %v4267 = vpop.f32.mrb[0].mxu0
        %4268 = vdwg.mxu0
        %4269 = vmatprep.subr.bf16.mxu0 0
        %4270 = vmatpush1.bf16.msra.mxu0 %v4076
        %4271 = vmatprep.subr.bf16.mxu0 0
        %4272 = vmatpush1.bf16.msra.mxu0 %v4077
        %4273 = vmatprep.subr.bf16.mxu0 0
        %4274 = vmatpush1.bf16.msra.mxu0 %v4078
        %4275 = vmatprep.subr.bf16.mxu0 0
        %4276 = vmatpush1.bf16.msra.mxu0 %v4079
        %4277 = vmatprep.subr.bf16.mxu0 0
        %4278 = vmatpush1.bf16.msra.mxu0 %v4080
        %4279 = vmatprep.subr.bf16.mxu0 0
        %4280 = vmatpush1.bf16.msra.mxu0 %v4081
        %4281 = vmatprep.subr.bf16.mxu0 0
        %4282 = vmatpush1.bf16.msra.mxu0 %v4082
        %4283 = vmatprep.subr.bf16.mxu0 0
        %4284 = vmatpush1.bf16.msra.mxu0 %v4083
        %4285 = vmatprep.subr.bf16.mxu0 0
        %4286 = vmatpush1.bf16.msra.mxu0 0
        %4287 = vmatprep.subr.bf16.mxu0 0
        %4288 = vmatpush1.bf16.msra.mxu0 0
        %4289 = vmatprep.subr.bf16.mxu0 0
        %4290 = vmatpush1.bf16.msra.mxu0 0
        %4291 = vmatprep.subr.bf16.mxu0 0
        %4292 = vmatpush1.bf16.msra.mxu0 0
        %4293 = vmatprep.subr.bf16.mxu0 0
        %4294 = vmatpush1.bf16.msra.mxu0 0
        %4295 = vmatprep.subr.bf16.mxu0 0
        %4296 = vmatpush1.bf16.msra.mxu0 0
        %4297 = vmatprep.subr.bf16.mxu0 0
        %4298 = vmatpush1.bf16.msra.mxu0 0
        %4299 = vmatprep.subr.bf16.mxu0 0
        %4300 = vmatpush1.bf16.msra.mxu0 0
        %4301 = vmatprep.mubr.bf16.mxu0 0
        %4302 = vmatmul.mubr.bf16.gmra.mrb[0].mxu0 %v3306
        %v4303 = vpop.f32.mrb[0].mxu0
        %v4304 = vadd.f32 %v4143, %v4303
        %v4305 = vpop.f32.mrb[0].mxu0
        %v4306 = vpop.f32.mrb[0].mxu0
        %v4307 = vadd.f32 %v4146, %v4306
        %v4308 = vpop.f32.mrb[0].mxu0
        %4309 = vmatprep.mubr.bf16.mxu0 0
        %4310 = vmatmul.mubr.bf16.gmra.mrb[0].mxu0 %v3309
        %v4311 = vpop.f32.mrb[0].mxu0
        %v4312 = vadd.f32 %v4151, %v4311
        %v4313 = vpop.f32.mrb[0].mxu0
        %v4314 = vpop.f32.mrb[0].mxu0
        %v4315 = vadd.f32 %v4154, %v4314
        %v4316 = vpop.f32.mrb[0].mxu0
        %4317 = vmatprep.mubr.bf16.mxu0 0
        %4318 = vmatmul.mubr.bf16.gmra.mrb[0].mxu0 %v3312
        %v4319 = vpop.f32.mrb[0].mxu0
        %v4320 = vadd.f32 %v4159, %v4319
        %v4321 = vpop.f32.mrb[0].mxu0
        %v4322 = vpop.f32.mrb[0].mxu0
        %v4323 = vadd.f32 %v4162, %v4322
        %v4324 = vpop.f32.mrb[0].mxu0
        %4325 = vmatprep.mubr.bf16.mxu0 0
        %4326 = vmatmul.mubr.bf16.gmra.mrb[0].mxu0 %v3315
        %v4327 = vpop.f32.mrb[0].mxu0
        %v4328 = vadd.f32 %v4167, %v4327
        %v4329 = vpop.f32.mrb[0].mxu0
        %v4330 = vpop.f32.mrb[0].mxu0
        %v4331 = vadd.f32 %v4170, %v4330
        %v4332 = vpop.f32.mrb[0].mxu0
        %4333 = vmatprep.mubr.bf16.mxu0 0
        %4334 = vmatmul.mubr.bf16.gmra.mrb[0].mxu0 %v3318
        %v4335 = vpop.f32.mrb[0].mxu0
        %v4336 = vadd.f32 %v4175, %v4335
        %v4337 = vpop.f32.mrb[0].mxu0
        %v4338 = vpop.f32.mrb[0].mxu0
        %v4339 = vadd.f32 %v4178, %v4338
        %v4340 = vpop.f32.mrb[0].mxu0
        %4341 = vmatprep.mubr.bf16.mxu0 0
        %4342 = vmatmul.mubr.bf16.gmra.mrb[0].mxu0 %v3321
        %v4343 = vpop.f32.mrb[0].mxu0
        %v4344 = vadd.f32 %v4183, %v4343
        %v4345 = vpop.f32.mrb[0].mxu0
        %v4346 = vpop.f32.mrb[0].mxu0
        %v4347 = vadd.f32 %v4186, %v4346
        %v4348 = vpop.f32.mrb[0].mxu0
        %4349 = vmatprep.mubr.bf16.mxu0 0
        %4350 = vmatmul.mubr.bf16.gmra.mrb[0].mxu0 %v3324
        %v4351 = vpop.f32.mrb[0].mxu0
        %v4352 = vadd.f32 %v4191, %v4351
        %v4353 = vpop.f32.mrb[0].mxu0
        %v4354 = vpop.f32.mrb[0].mxu0
        %v4355 = vadd.f32 %v4194, %v4354
        %v4356 = vpop.f32.mrb[0].mxu0
        %4357 = vmatprep.mubr.bf16.mxu0 0
        %4358 = vmatmul.mubr.bf16.gmra.mrb[0].mxu0 %v3327
        %v4359 = vpop.f32.mrb[0].mxu0
        %v4360 = vadd.f32 %v4199, %v4359
        %v4361 = vpop.f32.mrb[0].mxu0
        %v4362 = vpop.f32.mrb[0].mxu0
        %v4363 = vadd.f32 %v4202, %v4362
        %v4364 = vpop.f32.mrb[0].mxu0
        %4365 = vmatprep.mubr.bf16.mxu0 0
        %4366 = vmatmul.mubr.bf16.gmra.mrb[0].mxu0 %v3330
        %v4367 = vpop.f32.mrb[0].mxu0
        %v4368 = vadd.f32 %v4207, %v4367
        %v4369 = vpop.f32.mrb[0].mxu0
        %v4370 = vpop.f32.mrb[0].mxu0
        %v4371 = vadd.f32 %v4210, %v4370
        %v4372 = vpop.f32.mrb[0].mxu0
        %4373 = vmatprep.mubr.bf16.mxu0 0
        %4374 = vmatmul.mubr.bf16.gmra.mrb[0].mxu0 %v3333
        %v4375 = vpop.f32.mrb[0].mxu0
        %v4376 = vadd.f32 %v4215, %v4375
        %v4377 = vpop.f32.mrb[0].mxu0
        %v4378 = vpop.f32.mrb[0].mxu0
        %v4379 = vadd.f32 %v4218, %v4378
        %v4380 = vpop.f32.mrb[0].mxu0
        %4381 = vmatprep.mubr.bf16.mxu0 0
        %4382 = vmatmul.mubr.bf16.gmra.mrb[0].mxu0 %v3336
        %v4383 = vpop.f32.mrb[0].mxu0
        %v4384 = vadd.f32 %v4223, %v4383
        %v4385 = vpop.f32.mrb[0].mxu0
        %v4386 = vpop.f32.mrb[0].mxu0
        %v4387 = vadd.f32 %v4226, %v4386
        %v4388 = vpop.f32.mrb[0].mxu0
        %4389 = vmatprep.mubr.bf16.mxu0 0
        %4390 = vmatmul.mubr.bf16.gmra.mrb[0].mxu0 %v3339
        %v4391 = vpop.f32.mrb[0].mxu0
        %v4392 = vadd.f32 %v4231, %v4391
        %v4393 = vpop.f32.mrb[0].mxu0
        %v4394 = vpop.f32.mrb[0].mxu0
        %v4395 = vadd.f32 %v4234, %v4394
        %v4396 = vpop.f32.mrb[0].mxu0
        %4397 = vmatprep.mubr.bf16.mxu0 0
        %4398 = vmatmul.mubr.bf16.gmra.mrb[0].mxu0 %v3342
        %v4399 = vpop.f32.mrb[0].mxu0
        %v4400 = vadd.f32 %v4239, %v4399
        %v4401 = vpop.f32.mrb[0].mxu0
        %v4402 = vpop.f32.mrb[0].mxu0
        %v4403 = vadd.f32 %v4242, %v4402
        %v4404 = vpop.f32.mrb[0].mxu0
        %4405 = vmatprep.mubr.bf16.mxu0 0
        %4406 = vmatmul.mubr.bf16.gmra.mrb[0].mxu0 %v3345
        %v4407 = vpop.f32.mrb[0].mxu0
        %v4408 = vadd.f32 %v4247, %v4407
        %v4409 = vpop.f32.mrb[0].mxu0
        %v4410 = vpop.f32.mrb[0].mxu0
        %v4411 = vadd.f32 %v4250, %v4410
        %v4412 = vpop.f32.mrb[0].mxu0
        %4413 = vmatprep.mubr.bf16.mxu0 0
        %4414 = vmatmul.mubr.bf16.gmra.mrb[0].mxu0 %v3348
        %v4415 = vpop.f32.mrb[0].mxu0
        %v4416 = vadd.f32 %v4255, %v4415
        %v4417 = vpop.f32.mrb[0].mxu0
        %v4418 = vpop.f32.mrb[0].mxu0
        %v4419 = vadd.f32 %v4258, %v4418
        %v4420 = vpop.f32.mrb[0].mxu0
        %4421 = vmatprep.mubr.bf16.mxu0 0
        %4422 = vmatmul.mubr.bf16.gmra.mrb[0].mxu0 %v3351
        %v4423 = vpop.f32.mrb[0].mxu0
        %v4424 = vadd.f32 %v4263, %v4423
        %v4425 = vpop.f32.mrb[0].mxu0
        %v4426 = vpop.f32.mrb[0].mxu0
        %v4427 = vadd.f32 %v4266, %v4426
        %v4428 = vpop.f32.mrb[0].mxu0
        %4429 = vdwg.mxu0
        %s4430 = scalar_lea.vmem [#allocation3], 48
        %v4431 = vld [vmem:[%s4430] sm:$0xff]
        %v4432 = vld [vmem:[%s4430 + $0x8] sm:$0xff]
        %v4433 = vld [vmem:[%s4430 + $0x10] sm:$0xff]
        %v4434 = vld [vmem:[%s4430 + $0x18] sm:$0xff]
        %v4435 = vld [vmem:[%s4430 + $0x20] sm:$0xff]
        %v4436 = vld [vmem:[%s4430 + $0x28] sm:$0xff]
        %v4437 = vld [vmem:[%s4430 + $0x30] sm:$0xff]
        %v4438 = vld [vmem:[%s4430 + $0x38] sm:$0xff]
        %v4439 = vld [vmem:[%s4430 + $0x40] sm:$0xff]
        %v4440 = vld [vmem:[%s4430 + $0x48] sm:$0xff]
        %v4441 = vld [vmem:[%s4430 + $0x50] sm:$0xff]
        %v4442 = vld [vmem:[%s4430 + $0x58] sm:$0xff]
        %v4443 = vld [vmem:[%s4430 + $0x60] sm:$0xff]
        %v4444 = vld [vmem:[%s4430 + $0x68] sm:$0xff]
        %v4445 = vld [vmem:[%s4430 + $0x70] sm:$0xff]
        %v4446 = vld [vmem:[%s4430 + $0x78] sm:$0xff]
        %v4447 = vld [vmem:[%s4430 + $0x80] sm:$0xff]
        %v4448 = vld [vmem:[%s4430 + $0x88] sm:$0xff]
        %v4449 = vld [vmem:[%s4430 + $0x90] sm:$0xff]
        %v4450 = vld [vmem:[%s4430 + $0x98] sm:$0xff]
        %v4451 = vld [vmem:[%s4430 + $0xa0] sm:$0xff]
        %v4452 = vld [vmem:[%s4430 + $0xa8] sm:$0xff]
        %v4453 = vld [vmem:[%s4430 + $0xb0] sm:$0xff]
        %v4454 = vld [vmem:[%s4430 + $0xb8] sm:$0xff]
        %v4455 = vld [vmem:[%s4430 + $0xc0] sm:$0xff]
        %v4456 = vld [vmem:[%s4430 + $0xc8] sm:$0xff]
        %v4457 = vld [vmem:[%s4430 + $0xd0] sm:$0xff]
        %v4458 = vld [vmem:[%s4430 + $0xd8] sm:$0xff]
        %v4459 = vld [vmem:[%s4430 + $0xe0] sm:$0xff]
        %v4460 = vld [vmem:[%s4430 + $0xe8] sm:$0xff]
        %v4461 = vld [vmem:[%s4430 + $0xf0] sm:$0xff]
        %v4462 = vld [vmem:[%s4430 + $0xf8] sm:$0xff]
        %v4463 = vld [vmem:[%s4430 + $0x100] sm:$0xff]
        %v4464 = vld [vmem:[%s4430 + $0x108] sm:$0xff]
        %v4465 = vld [vmem:[%s4430 + $0x110] sm:$0xff]
        %v4466 = vld [vmem:[%s4430 + $0x118] sm:$0xff]
        %v4467 = vld [vmem:[%s4430 + $0x120] sm:$0xff]
        %v4468 = vld [vmem:[%s4430 + $0x128] sm:$0xff]
        %v4469 = vld [vmem:[%s4430 + $0x130] sm:$0xff]
        %v4470 = vld [vmem:[%s4430 + $0x138] sm:$0xff]
        %v4471 = vld [vmem:[%s4430 + $0x140] sm:$0xff]
        %v4472 = vld [vmem:[%s4430 + $0x148] sm:$0xff]
        %v4473 = vld [vmem:[%s4430 + $0x150] sm:$0xff]
        %v4474 = vld [vmem:[%s4430 + $0x158] sm:$0xff]
        %v4475 = vld [vmem:[%s4430 + $0x160] sm:$0xff]
        %v4476 = vld [vmem:[%s4430 + $0x168] sm:$0xff]
        %v4477 = vld [vmem:[%s4430 + $0x170] sm:$0xff]
        %v4478 = vld [vmem:[%s4430 + $0x178] sm:$0xff]
        %s4479 = scalar_lea.vmem %s8, 384
        %v4480 = vld [vmem:[%s4479] sm:$0xf]
        %v4481 = vld [vmem:[%s4479 + $0x4] sm:$0xf]
        %v4482 = vld [vmem:[%s4479 + $0x8] sm:$0xf]
        %v4483 = vld [vmem:[%s4479 + $0xc] sm:$0xf]
        %v4484 = vld [vmem:[%s4479 + $0x10] sm:$0xf]
        %v4485 = vld [vmem:[%s4479 + $0x14] sm:$0xf]
        %v4486 = vld [vmem:[%s4479 + $0x18] sm:$0xf]
        %v4487 = vld [vmem:[%s4479 + $0x1c] sm:$0xf]
        %v4488 = vld [vmem:[%s4479 + $0x20] sm:$0xf]
        %v4489 = vld [vmem:[%s4479 + $0x24] sm:$0xf]
        %v4490 = vld [vmem:[%s4479 + $0x28] sm:$0xf]
        %v4491 = vld [vmem:[%s4479 + $0x2c] sm:$0xf]
        %v4492 = vld [vmem:[%s4479 + $0x30] sm:$0xf]
        %v4493 = vld [vmem:[%s4479 + $0x34] sm:$0xf]
        %v4494 = vld [vmem:[%s4479 + $0x38] sm:$0xf]
        %v4495 = vld [vmem:[%s4479 + $0x3c] sm:$0xf]
        %v4496 = vld [vmem:[%s4479 + $0x40] sm:$0xf]
        %v4497 = vld [vmem:[%s4479 + $0x44] sm:$0xf]
        %v4498 = vld [vmem:[%s4479 + $0x48] sm:$0xf]
        %v4499 = vld [vmem:[%s4479 + $0x4c] sm:$0xf]
        %v4500 = vld [vmem:[%s4479 + $0x50] sm:$0xf]
        %v4501 = vld [vmem:[%s4479 + $0x54] sm:$0xf]
        %v4502 = vld [vmem:[%s4479 + $0x58] sm:$0xf]
        %v4503 = vld [vmem:[%s4479 + $0x5c] sm:$0xf]
        %v4504 = vld [vmem:[%s4479 + $0x60] sm:$0xf]
        %v4505 = vld [vmem:[%s4479 + $0x64] sm:$0xf]
        %v4506 = vld [vmem:[%s4479 + $0x68] sm:$0xf]
        %v4507 = vld [vmem:[%s4479 + $0x6c] sm:$0xf]
        %v4508 = vld [vmem:[%s4479 + $0x70] sm:$0xf]
        %v4509 = vld [vmem:[%s4479 + $0x74] sm:$0xf]
        %v4510 = vld [vmem:[%s4479 + $0x78] sm:$0xf]
        %v4511 = vld [vmem:[%s4479 + $0x7c] sm:$0xf]
        %v4512 = vld [vmem:[%s4479 + $0x80] sm:$0xf]
        %v4513 = vld [vmem:[%s4479 + $0x84] sm:$0xf]
        %v4514 = vld [vmem:[%s4479 + $0x88] sm:$0xf]
        %v4515 = vld [vmem:[%s4479 + $0x8c] sm:$0xf]
        %v4516 = vld [vmem:[%s4479 + $0x90] sm:$0xf]
        %v4517 = vld [vmem:[%s4479 + $0x94] sm:$0xf]
        %v4518 = vld [vmem:[%s4479 + $0x98] sm:$0xf]
        %v4519 = vld [vmem:[%s4479 + $0x9c] sm:$0xf]
        %v4520 = vld [vmem:[%s4479 + $0xa0] sm:$0xf]
        %v4521 = vld [vmem:[%s4479 + $0xa4] sm:$0xf]
        %v4522 = vld [vmem:[%s4479 + $0xa8] sm:$0xf]
        %v4523 = vld [vmem:[%s4479 + $0xac] sm:$0xf]
        %v4524 = vld [vmem:[%s4479 + $0xb0] sm:$0xf]
        %v4525 = vld [vmem:[%s4479 + $0xb4] sm:$0xf]
        %v4526 = vld [vmem:[%s4479 + $0xb8] sm:$0xf]
        %v4527 = vld [vmem:[%s4479 + $0xbc] sm:$0xf]
        %v4576 = vunpack.c.l.b16 %v4480
        %v4577 = vunpack.c.l.b16 %v4481
        %v4578 = vunpack.c.l.b16 %v4482
        %v4579 = vunpack.c.l.b16 %v4483
        %v4580 = vunpack.c.l.b16 %v4484
        %v4581 = vunpack.c.l.b16 %v4485
        %v4582 = vunpack.c.l.b16 %v4486
        %v4583 = vunpack.c.l.b16 %v4487
        %v4584 = vunpack.c.l.b16 %v4488
        %v4585 = vunpack.c.l.b16 %v4489
        %v4586 = vunpack.c.l.b16 %v4490
        %v4587 = vunpack.c.l.b16 %v4491
        %v4588 = vunpack.c.l.b16 %v4492
        %v4589 = vunpack.c.l.b16 %v4493
        %v4590 = vunpack.c.l.b16 %v4494
        %v4591 = vunpack.c.l.b16 %v4495
        %v4592 = vunpack.c.l.b16 %v4496
        %v4593 = vunpack.c.l.b16 %v4497
        %v4594 = vunpack.c.l.b16 %v4498
        %v4595 = vunpack.c.l.b16 %v4499
        %v4596 = vunpack.c.l.b16 %v4500
        %v4597 = vunpack.c.l.b16 %v4501
        %v4598 = vunpack.c.l.b16 %v4502
        %v4599 = vunpack.c.l.b16 %v4503
        %v4600 = vunpack.c.l.b16 %v4504
        %v4601 = vunpack.c.l.b16 %v4505
        %v4602 = vunpack.c.l.b16 %v4506
        %v4603 = vunpack.c.l.b16 %v4507
        %v4604 = vunpack.c.l.b16 %v4508
        %v4605 = vunpack.c.l.b16 %v4509
        %v4606 = vunpack.c.l.b16 %v4510
        %v4607 = vunpack.c.l.b16 %v4511
        %v4608 = vunpack.c.l.b16 %v4512
        %v4609 = vunpack.c.l.b16 %v4513
        %v4610 = vunpack.c.l.b16 %v4514
        %v4611 = vunpack.c.l.b16 %v4515
        %v4612 = vunpack.c.l.b16 %v4516
        %v4613 = vunpack.c.l.b16 %v4517
        %v4614 = vunpack.c.l.b16 %v4518
        %v4615 = vunpack.c.l.b16 %v4519
        %v4616 = vunpack.c.l.b16 %v4520
        %v4617 = vunpack.c.l.b16 %v4521
        %v4618 = vunpack.c.l.b16 %v4522
        %v4619 = vunpack.c.l.b16 %v4523
        %v4620 = vunpack.c.l.b16 %v4524
        %v4621 = vunpack.c.l.b16 %v4525
        %v4622 = vunpack.c.l.b16 %v4526
        %v4623 = vunpack.c.l.b16 %v4527
        %v4624 = vpack.c.b16 %v4577, %v4576
        %v4625 = vpack.c.b16 %v4579, %v4578
        %v4626 = vpack.c.b16 %v4581, %v4580
        %v4627 = vpack.c.b16 %v4583, %v4582
        %v4628 = vpack.c.b16 %v4585, %v4584
        %v4629 = vpack.c.b16 %v4587, %v4586
        %v4630 = vpack.c.b16 %v4589, %v4588
        %v4631 = vpack.c.b16 %v4591, %v4590
        %v4632 = vpack.c.b16 %v4593, %v4592
        %v4633 = vpack.c.b16 %v4595, %v4594
        %v4634 = vpack.c.b16 %v4597, %v4596
        %v4635 = vpack.c.b16 %v4599, %v4598
        %v4636 = vpack.c.b16 %v4601, %v4600
        %v4637 = vpack.c.b16 %v4603, %v4602
        %v4638 = vpack.c.b16 %v4605, %v4604
        %v4639 = vpack.c.b16 %v4607, %v4606
        %v4640 = vpack.c.b16 %v4609, %v4608
        %v4641 = vpack.c.b16 %v4611, %v4610
        %v4642 = vpack.c.b16 %v4613, %v4612
        %v4643 = vpack.c.b16 %v4615, %v4614
        %v4644 = vpack.c.b16 %v4617, %v4616
        %v4645 = vpack.c.b16 %v4619, %v4618
        %v4646 = vpack.c.b16 %v4621, %v4620
        %v4647 = vpack.c.b16 %v4623, %v4622
        %4672 = vmatprep.subr.bf16.mxu0 0
        %4673 = vmatpush1.bf16.msra.mxu0 %v4624
        %4674 = vmatprep.subr.bf16.mxu0 0
        %4675 = vmatpush1.bf16.msra.mxu0 %v4625
        %4676 = vmatprep.subr.bf16.mxu0 0
        %4677 = vmatpush1.bf16.msra.mxu0 %v4626
        %4678 = vmatprep.subr.bf16.mxu0 0
        %4679 = vmatpush1.bf16.msra.mxu0 %v4627
        %4680 = vmatprep.subr.bf16.mxu0 0
        %4681 = vmatpush1.bf16.msra.mxu0 %v4628
        %4682 = vmatprep.subr.bf16.mxu0 0
        %4683 = vmatpush1.bf16.msra.mxu0 %v4629
        %4684 = vmatprep.subr.bf16.mxu0 0
        %4685 = vmatpush1.bf16.msra.mxu0 %v4630
        %4686 = vmatprep.subr.bf16.mxu0 0
        %4687 = vmatpush1.bf16.msra.mxu0 %v4631
        %4688 = vmatprep.subr.bf16.mxu0 0
        %4689 = vmatpush1.bf16.msra.mxu0 %v4632
        %4690 = vmatprep.subr.bf16.mxu0 0
        %4691 = vmatpush1.bf16.msra.mxu0 %v4633
        %4692 = vmatprep.subr.bf16.mxu0 0
        %4693 = vmatpush1.bf16.msra.mxu0 %v4634
        %4694 = vmatprep.subr.bf16.mxu0 0
        %4695 = vmatpush1.bf16.msra.mxu0 %v4635
        %4696 = vmatprep.subr.bf16.mxu0 0
        %4697 = vmatpush1.bf16.msra.mxu0 %v4636
        %4698 = vmatprep.subr.bf16.mxu0 0
        %4699 = vmatpush1.bf16.msra.mxu0 %v4637
        %4700 = vmatprep.subr.bf16.mxu0 0
        %4701 = vmatpush1.bf16.msra.mxu0 %v4638
        %4702 = vmatprep.subr.bf16.mxu0 0
        %4703 = vmatpush1.bf16.msra.mxu0 %v4639
        %4704 = vmatprep.mubr.bf16.mxu0 %v4432
        %4705 = vmatmul.mubr.bf16.gmra.mrb[0].mxu0 %v4431
        %v4706 = vpop.f32.mrb[0].mxu0
        %v4707 = vadd.f32 0.0, %v4706
        %v4708 = vpop.f32.mrb[0].mxu0
        %v4709 = vpop.f32.mrb[0].mxu0
        %v4710 = vadd.f32 0.0, %v4709
        %v4711 = vpop.f32.mrb[0].mxu0
        %4712 = vmatprep.mubr.bf16.mxu0 %v4435
        %4713 = vmatmul.mubr.bf16.gmra.mrb[0].mxu0 %v4434
        %v4714 = vpop.f32.mrb[0].mxu0
        %v4715 = vadd.f32 0.0, %v4714
        %v4716 = vpop.f32.mrb[0].mxu0
        %v4717 = vpop.f32.mrb[0].mxu0
        %v4718 = vadd.f32 0.0, %v4717
        %v4719 = vpop.f32.mrb[0].mxu0
        %4720 = vmatprep.mubr.bf16.mxu0 %v4438
        %4721 = vmatmul.mubr.bf16.gmra.mrb[0].mxu0 %v4437
        %v4722 = vpop.f32.mrb[0].mxu0
        %v4723 = vadd.f32 0.0, %v4722
        %v4724 = vpop.f32.mrb[0].mxu0
        %v4725 = vpop.f32.mrb[0].mxu0
        %v4726 = vadd.f32 0.0, %v4725
        %v4727 = vpop.f32.mrb[0].mxu0
        %4728 = vmatprep.mubr.bf16.mxu0 %v4441
        %4729 = vmatmul.mubr.bf16.gmra.mrb[0].mxu0 %v4440
        %v4730 = vpop.f32.mrb[0].mxu0
        %v4731 = vadd.f32 0.0, %v4730
        %v4732 = vpop.f32.mrb[0].mxu0
        %v4733 = vpop.f32.mrb[0].mxu0
        %v4734 = vadd.f32 0.0, %v4733
        %v4735 = vpop.f32.mrb[0].mxu0
        %4736 = vmatprep.mubr.bf16.mxu0 %v4444
        %4737 = vmatmul.mubr.bf16.gmra.mrb[0].mxu0 %v4443
        %v4738 = vpop.f32.mrb[0].mxu0
        %v4739 = vadd.f32 0.0, %v4738
        %v4740 = vpop.f32.mrb[0].mxu0
        %v4741 = vpop.f32.mrb[0].mxu0
        %v4742 = vadd.f32 0.0, %v4741
        %v4743 = vpop.f32.mrb[0].mxu0
        %4744 = vmatprep.mubr.bf16.mxu0 %v4447
        %4745 = vmatmul.mubr.bf16.gmra.mrb[0].mxu0 %v4446
        %v4746 = vpop.f32.mrb[0].mxu0
        %v4747 = vadd.f32 0.0, %v4746
        %v4748 = vpop.f32.mrb[0].mxu0
        %v4749 = vpop.f32.mrb[0].mxu0
        %v4750 = vadd.f32 0.0, %v4749
        %v4751 = vpop.f32.mrb[0].mxu0
        %4752 = vmatprep.mubr.bf16.mxu0 %v4450
        %4753 = vmatmul.mubr.bf16.gmra.mrb[0].mxu0 %v4449
        %v4754 = vpop.f32.mrb[0].mxu0
        %v4755 = vadd.f32 0.0, %v4754
        %v4756 = vpop.f32.mrb[0].mxu0
        %v4757 = vpop.f32.mrb[0].mxu0
        %v4758 = vadd.f32 0.0, %v4757
        %v4759 = vpop.f32.mrb[0].mxu0
        %4760 = vmatprep.mubr.bf16.mxu0 %v4453
        %4761 = vmatmul.mubr.bf16.gmra.mrb[0].mxu0 %v4452
        %v4762 = vpop.f32.mrb[0].mxu0
        %v4763 = vadd.f32 0.0, %v4762
        %v4764 = vpop.f32.mrb[0].mxu0
        %v4765 = vpop.f32.mrb[0].mxu0
        %v4766 = vadd.f32 0.0, %v4765
        %v4767 = vpop.f32.mrb[0].mxu0
        %4768 = vmatprep.mubr.bf16.mxu0 %v4456
        %4769 = vmatmul.mubr.bf16.gmra.mrb[0].mxu0 %v4455
        %v4770 = vpop.f32.mrb[0].mxu0
        %v4771 = vadd.f32 0.0, %v4770
        %v4772 = vpop.f32.mrb[0].mxu0
        %v4773 = vpop.f32.mrb[0].mxu0
        %v4774 = vadd.f32 0.0, %v4773
        %v4775 = vpop.f32.mrb[0].mxu0
        %4776 = vmatprep.mubr.bf16.mxu0 %v4459
        %4777 = vmatmul.mubr.bf16.gmra.mrb[0].mxu0 %v4458
        %v4778 = vpop.f32.mrb[0].mxu0
        %v4779 = vadd.f32 0.0, %v4778
        %v4780 = vpop.f32.mrb[0].mxu0
        %v4781 = vpop.f32.mrb[0].mxu0
        %v4782 = vadd.f32 0.0, %v4781
        %v4783 = vpop.f32.mrb[0].mxu0
        %4784 = vmatprep.mubr.bf16.mxu0 %v4462
        %4785 = vmatmul.mubr.bf16.gmra.mrb[0].mxu0 %v4461
        %v4786 = vpop.f32.mrb[0].mxu0
        %v4787 = vadd.f32 0.0, %v4786
        %v4788 = vpop.f32.mrb[0].mxu0
        %v4789 = vpop.f32.mrb[0].mxu0
        %v4790 = vadd.f32 0.0, %v4789
        %v4791 = vpop.f32.mrb[0].mxu0
        %4792 = vmatprep.mubr.bf16.mxu0 %v4465
        %4793 = vmatmul.mubr.bf16.gmra.mrb[0].mxu0 %v4464
        %v4794 = vpop.f32.mrb[0].mxu0
        %v4795 = vadd.f32 0.0, %v4794
        %v4796 = vpop.f32.mrb[0].mxu0
        %v4797 = vpop.f32.mrb[0].mxu0
        %v4798 = vadd.f32 0.0, %v4797
        %v4799 = vpop.f32.mrb[0].mxu0
        %4800 = vmatprep.mubr.bf16.mxu0 %v4468
        %4801 = vmatmul.mubr.bf16.gmra.mrb[0].mxu0 %v4467
        %v4802 = vpop.f32.mrb[0].mxu0
        %v4803 = vadd.f32 0.0, %v4802
        %v4804 = vpop.f32.mrb[0].mxu0
        %v4805 = vpop.f32.mrb[0].mxu0
        %v4806 = vadd.f32 0.0, %v4805
        %v4807 = vpop.f32.mrb[0].mxu0
        %4808 = vmatprep.mubr.bf16.mxu0 %v4471
        %4809 = vmatmul.mubr.bf16.gmra.mrb[0].mxu0 %v4470
        %v4810 = vpop.f32.mrb[0].mxu0
        %v4811 = vadd.f32 0.0, %v4810
        %v4812 = vpop.f32.mrb[0].mxu0
        %v4813 = vpop.f32.mrb[0].mxu0
        %v4814 = vadd.f32 0.0, %v4813
        %v4815 = vpop.f32.mrb[0].mxu0
        %4816 = vmatprep.mubr.bf16.mxu0 %v4474
        %4817 = vmatmul.mubr.bf16.gmra.mrb[0].mxu0 %v4473
        %v4818 = vpop.f32.mrb[0].mxu0
        %v4819 = vadd.f32 0.0, %v4818
        %v4820 = vpop.f32.mrb[0].mxu0
        %v4821 = vpop.f32.mrb[0].mxu0
        %v4822 = vadd.f32 0.0, %v4821
        %v4823 = vpop.f32.mrb[0].mxu0
        %4824 = vmatprep.mubr.bf16.mxu0 %v4477
        %4825 = vmatmul.mubr.bf16.gmra.mrb[0].mxu0 %v4476
        %v4826 = vpop.f32.mrb[0].mxu0
        %v4827 = vadd.f32 0.0, %v4826
        %v4828 = vpop.f32.mrb[0].mxu0
        %v4829 = vpop.f32.mrb[0].mxu0
        %v4830 = vadd.f32 0.0, %v4829
        %v4831 = vpop.f32.mrb[0].mxu0
        %4832 = vdwg.mxu0
        %4833 = vmatprep.subr.bf16.mxu0 0
        %4834 = vmatpush1.bf16.msra.mxu0 %v4640
        %4835 = vmatprep.subr.bf16.mxu0 0
        %4836 = vmatpush1.bf16.msra.mxu0 %v4641
        %4837 = vmatprep.subr.bf16.mxu0 0
        %4838 = vmatpush1.bf16.msra.mxu0 %v4642
        %4839 = vmatprep.subr.bf16.mxu0 0
        %4840 = vmatpush1.bf16.msra.mxu0 %v4643
        %4841 = vmatprep.subr.bf16.mxu0 0
        %4842 = vmatpush1.bf16.msra.mxu0 %v4644
        %4843 = vmatprep.subr.bf16.mxu0 0
        %4844 = vmatpush1.bf16.msra.mxu0 %v4645
        %4845 = vmatprep.subr.bf16.mxu0 0
        %4846 = vmatpush1.bf16.msra.mxu0 %v4646
        %4847 = vmatprep.subr.bf16.mxu0 0
        %4848 = vmatpush1.bf16.msra.mxu0 %v4647
        %4849 = vmatprep.subr.bf16.mxu0 0
        %4850 = vmatpush1.bf16.msra.mxu0 0
        %4851 = vmatprep.subr.bf16.mxu0 0
        %4852 = vmatpush1.bf16.msra.mxu0 0
        %4853 = vmatprep.subr.bf16.mxu0 0
        %4854 = vmatpush1.bf16.msra.mxu0 0
        %4855 = vmatprep.subr.bf16.mxu0 0
        %4856 = vmatpush1.bf16.msra.mxu0 0
        %4857 = vmatprep.subr.bf16.mxu0 0
        %4858 = vmatpush1.bf16.msra.mxu0 0
        %4859 = vmatprep.subr.bf16.mxu0 0
        %4860 = vmatpush1.bf16.msra.mxu0 0
        %4861 = vmatprep.subr.bf16.mxu0 0
        %4862 = vmatpush1.bf16.msra.mxu0 0
        %4863 = vmatprep.subr.bf16.mxu0 0
        %4864 = vmatpush1.bf16.msra.mxu0 0
        %4865 = vmatprep.mubr.bf16.mxu0 0
        %4866 = vmatmul.mubr.bf16.gmra.mrb[0].mxu0 %v4433
        %v4867 = vpop.f32.mrb[0].mxu0
        %v4868 = vadd.f32 %v4707, %v4867
        %v4869 = vpop.f32.mrb[0].mxu0
        %v4870 = vpop.f32.mrb[0].mxu0
        %v4871 = vadd.f32 %v4710, %v4870
        %v4872 = vpop.f32.mrb[0].mxu0
        %4873 = vmatprep.mubr.bf16.mxu0 0
        %4874 = vmatmul.mubr.bf16.gmra.mrb[0].mxu0 %v4436
        %v4875 = vpop.f32.mrb[0].mxu0
        %v4876 = vadd.f32 %v4715, %v4875
        %v4877 = vpop.f32.mrb[0].mxu0
        %v4878 = vpop.f32.mrb[0].mxu0
        %v4879 = vadd.f32 %v4718, %v4878
        %v4880 = vpop.f32.mrb[0].mxu0
        %4881 = vmatprep.mubr.bf16.mxu0 0
        %4882 = vmatmul.mubr.bf16.gmra.mrb[0].mxu0 %v4439
        %v4883 = vpop.f32.mrb[0].mxu0
        %v4884 = vadd.f32 %v4723, %v4883
        %v4885 = vpop.f32.mrb[0].mxu0
        %v4886 = vpop.f32.mrb[0].mxu0
        %v4887 = vadd.f32 %v4726, %v4886
        %v4888 = vpop.f32.mrb[0].mxu0
        %4889 = vmatprep.mubr.bf16.mxu0 0
        %4890 = vmatmul.mubr.bf16.gmra.mrb[0].mxu0 %v4442
        %v4891 = vpop.f32.mrb[0].mxu0
        %v4892 = vadd.f32 %v4731, %v4891
        %v4893 = vpop.f32.mrb[0].mxu0
        %v4894 = vpop.f32.mrb[0].mxu0
        %v4895 = vadd.f32 %v4734, %v4894
        %v4896 = vpop.f32.mrb[0].mxu0
        %4897 = vmatprep.mubr.bf16.mxu0 0
        %4898 = vmatmul.mubr.bf16.gmra.mrb[0].mxu0 %v4445
        %v4899 = vpop.f32.mrb[0].mxu0
        %v4900 = vadd.f32 %v4739, %v4899
        %v4901 = vpop.f32.mrb[0].mxu0
        %v4902 = vpop.f32.mrb[0].mxu0
        %v4903 = vadd.f32 %v4742, %v4902
        %v4904 = vpop.f32.mrb[0].mxu0
        %4905 = vmatprep.mubr.bf16.mxu0 0
        %4906 = vmatmul.mubr.bf16.gmra.mrb[0].mxu0 %v4448
        %v4907 = vpop.f32.mrb[0].mxu0
        %v4908 = vadd.f32 %v4747, %v4907
        %v4909 = vpop.f32.mrb[0].mxu0
        %v4910 = vpop.f32.mrb[0].mxu0
        %v4911 = vadd.f32 %v4750, %v4910
        %v4912 = vpop.f32.mrb[0].mxu0
        %4913 = vmatprep.mubr.bf16.mxu0 0
        %4914 = vmatmul.mubr.bf16.gmra.mrb[0].mxu0 %v4451
        %v4915 = vpop.f32.mrb[0].mxu0
        %v4916 = vadd.f32 %v4755, %v4915
        %v4917 = vpop.f32.mrb[0].mxu0
        %v4918 = vpop.f32.mrb[0].mxu0
        %v4919 = vadd.f32 %v4758, %v4918
        %v4920 = vpop.f32.mrb[0].mxu0
        %4921 = vmatprep.mubr.bf16.mxu0 0
        %4922 = vmatmul.mubr.bf16.gmra.mrb[0].mxu0 %v4454
        %v4923 = vpop.f32.mrb[0].mxu0
        %v4924 = vadd.f32 %v4763, %v4923
        %v4925 = vpop.f32.mrb[0].mxu0
        %v4926 = vpop.f32.mrb[0].mxu0
        %v4927 = vadd.f32 %v4766, %v4926
        %v4928 = vpop.f32.mrb[0].mxu0
        %4929 = vmatprep.mubr.bf16.mxu0 0
        %4930 = vmatmul.mubr.bf16.gmra.mrb[0].mxu0 %v4457
        %v4931 = vpop.f32.mrb[0].mxu0
        %v4932 = vadd.f32 %v4771, %v4931
        %v4933 = vpop.f32.mrb[0].mxu0
        %v4934 = vpop.f32.mrb[0].mxu0
        %v4935 = vadd.f32 %v4774, %v4934
        %v4936 = vpop.f32.mrb[0].mxu0
        %4937 = vmatprep.mubr.bf16.mxu0 0
        %4938 = vmatmul.mubr.bf16.gmra.mrb[0].mxu0 %v4460
        %v4939 = vpop.f32.mrb[0].mxu0
        %v4940 = vadd.f32 %v4779, %v4939
        %v4941 = vpop.f32.mrb[0].mxu0
        %v4942 = vpop.f32.mrb[0].mxu0
        %v4943 = vadd.f32 %v4782, %v4942
        %v4944 = vpop.f32.mrb[0].mxu0
        %4945 = vmatprep.mubr.bf16.mxu0 0
        %4946 = vmatmul.mubr.bf16.gmra.mrb[0].mxu0 %v4463
        %v4947 = vpop.f32.mrb[0].mxu0
        %v4948 = vadd.f32 %v4787, %v4947
        %v4949 = vpop.f32.mrb[0].mxu0
        %v4950 = vpop.f32.mrb[0].mxu0
        %v4951 = vadd.f32 %v4790, %v4950
        %v4952 = vpop.f32.mrb[0].mxu0
        %4953 = vmatprep.mubr.bf16.mxu0 0
        %4954 = vmatmul.mubr.bf16.gmra.mrb[0].mxu0 %v4466
        %v4955 = vpop.f32.mrb[0].mxu0
        %v4956 = vadd.f32 %v4795, %v4955
        %v4957 = vpop.f32.mrb[0].mxu0
        %v4958 = vpop.f32.mrb[0].mxu0
        %v4959 = vadd.f32 %v4798, %v4958
        %v4960 = vpop.f32.mrb[0].mxu0
        %4961 = vmatprep.mubr.bf16.mxu0 0
        %4962 = vmatmul.mubr.bf16.gmra.mrb[0].mxu0 %v4469
        %v4963 = vpop.f32.mrb[0].mxu0
        %v4964 = vadd.f32 %v4803, %v4963
        %v4965 = vpop.f32.mrb[0].mxu0
        %v4966 = vpop.f32.mrb[0].mxu0
        %v4967 = vadd.f32 %v4806, %v4966
        %v4968 = vpop.f32.mrb[0].mxu0
        %4969 = vmatprep.mubr.bf16.mxu0 0
        %4970 = vmatmul.mubr.bf16.gmra.mrb[0].mxu0 %v4472
        %v4971 = vpop.f32.mrb[0].mxu0
        %v4972 = vadd.f32 %v4811, %v4971
        %v4973 = vpop.f32.mrb[0].mxu0
        %v4974 = vpop.f32.mrb[0].mxu0
        %v4975 = vadd.f32 %v4814, %v4974
        %v4976 = vpop.f32.mrb[0].mxu0
        %4977 = vmatprep.mubr.bf16.mxu0 0
        %4978 = vmatmul.mubr.bf16.gmra.mrb[0].mxu0 %v4475
        %v4979 = vpop.f32.mrb[0].mxu0
        %v4980 = vadd.f32 %v4819, %v4979
        %v4981 = vpop.f32.mrb[0].mxu0
        %v4982 = vpop.f32.mrb[0].mxu0
        %v4983 = vadd.f32 %v4822, %v4982
        %v4984 = vpop.f32.mrb[0].mxu0
        %4985 = vmatprep.mubr.bf16.mxu0 0
        %4986 = vmatmul.mubr.bf16.gmra.mrb[0].mxu0 %v4478
        %v4987 = vpop.f32.mrb[0].mxu0
        %v4988 = vadd.f32 %v4827, %v4987
        %v4989 = vpop.f32.mrb[0].mxu0
        %v4990 = vpop.f32.mrb[0].mxu0
        %v4991 = vadd.f32 %v4830, %v4990
        %v4992 = vpop.f32.mrb[0].mxu0
        %4993 = vdwg.mxu0
        %v4994 = vadd.f32 %v4304, %v4868
        %v4995 = vadd.f32 %v4307, %v4871
        %v4996 = vadd.f32 %v4312, %v4876
        %v4997 = vadd.f32 %v4315, %v4879
        %v4998 = vadd.f32 %v4320, %v4884
        %v4999 = vadd.f32 %v4323, %v4887
        %v5000 = vadd.f32 %v4328, %v4892
        %v5001 = vadd.f32 %v4331, %v4895
        %v5002 = vadd.f32 %v4336, %v4900
        %v5003 = vadd.f32 %v4339, %v4903
        %v5004 = vadd.f32 %v4344, %v4908
        %v5005 = vadd.f32 %v4347, %v4911
        %v5006 = vadd.f32 %v4352, %v4916
        %v5007 = vadd.f32 %v4355, %v4919
        %v5008 = vadd.f32 %v4360, %v4924
        %v5009 = vadd.f32 %v4363, %v4927
        %v5010 = vadd.f32 %v4368, %v4932
        %v5011 = vadd.f32 %v4371, %v4935
        %v5012 = vadd.f32 %v4376, %v4940
        %v5013 = vadd.f32 %v4379, %v4943
        %v5014 = vadd.f32 %v4384, %v4948
        %v5015 = vadd.f32 %v4387, %v4951
        %v5016 = vadd.f32 %v4392, %v4956
        %v5017 = vadd.f32 %v4395, %v4959
        %v5018 = vadd.f32 %v4400, %v4964
        %v5019 = vadd.f32 %v4403, %v4967
        %v5020 = vadd.f32 %v4408, %v4972
        %v5021 = vadd.f32 %v4411, %v4975
        %v5022 = vadd.f32 %v4416, %v4980
        %v5023 = vadd.f32 %v4419, %v4983
        %v5024 = vadd.f32 %v4424, %v4988
        %v5025 = vadd.f32 %v4427, %v4991
        %v5026 = vld [vmem:[%s9] sm:$0x1]
        %v5028 = vlaneseq
        %v5029 = vshrl.u32 %v5028, 7
        %v5030 = vsub.s32 0, %v5029
        %v5031 = vrot.slane %v5026, %v5030
        %v5033 = vadd.f32 %v4994, %v5031
        %v5034 = vadd.f32 %v4995, %v5031
        %v5035 = vadd.f32 %v4996, %v5031
        %v5036 = vadd.f32 %v4997, %v5031
        %v5037 = vadd.f32 %v4998, %v5031
        %v5038 = vadd.f32 %v4999, %v5031
        %v5039 = vadd.f32 %v5000, %v5031
        %v5040 = vadd.f32 %v5001, %v5031
        %v5041 = vadd.f32 %v5002, %v5031
        %v5042 = vadd.f32 %v5003, %v5031
        %v5043 = vadd.f32 %v5004, %v5031
        %v5044 = vadd.f32 %v5005, %v5031
        %v5045 = vadd.f32 %v5006, %v5031
        %v5046 = vadd.f32 %v5007, %v5031
        %v5047 = vadd.f32 %v5008, %v5031
        %v5048 = vadd.f32 %v5009, %v5031
        %v5049 = vadd.f32 %v5010, %v5031
        %v5050 = vadd.f32 %v5011, %v5031
        %v5051 = vadd.f32 %v5012, %v5031
        %v5052 = vadd.f32 %v5013, %v5031
        %v5053 = vadd.f32 %v5014, %v5031
        %v5054 = vadd.f32 %v5015, %v5031
        %v5055 = vadd.f32 %v5016, %v5031
        %v5056 = vadd.f32 %v5017, %v5031
        %v5057 = vadd.f32 %v5018, %v5031
        %v5058 = vadd.f32 %v5019, %v5031
        %v5059 = vadd.f32 %v5020, %v5031
        %v5060 = vadd.f32 %v5021, %v5031
        %v5061 = vadd.f32 %v5022, %v5031
        %v5062 = vadd.f32 %v5023, %v5031
        %v5063 = vadd.f32 %v5024, %v5031
        %v5064 = vadd.f32 %v5025, %v5031
        %v5065 = vmax.f32 %v5033, 0.0
        %v5066 = vmax.f32 %v5034, 0.0
        %v5067 = vmax.f32 %v5035, 0.0
        %v5068 = vmax.f32 %v5036, 0.0
        %v5069 = vmax.f32 %v5037, 0.0
        %v5070 = vmax.f32 %v5038, 0.0
        %v5071 = vmax.f32 %v5039, 0.0
        %v5072 = vmax.f32 %v5040, 0.0
        %v5073 = vmax.f32 %v5041, 0.0
        %v5074 = vmax.f32 %v5042, 0.0
        %v5075 = vmax.f32 %v5043, 0.0
        %v5076 = vmax.f32 %v5044, 0.0
        %v5077 = vmax.f32 %v5045, 0.0
        %v5078 = vmax.f32 %v5046, 0.0
        %v5079 = vmax.f32 %v5047, 0.0
        %v5080 = vmax.f32 %v5048, 0.0
        %v5081 = vmax.f32 %v5049, 0.0
        %v5082 = vmax.f32 %v5050, 0.0
        %v5083 = vmax.f32 %v5051, 0.0
        %v5084 = vmax.f32 %v5052, 0.0
        %v5085 = vmax.f32 %v5053, 0.0
        %v5086 = vmax.f32 %v5054, 0.0
        %v5087 = vmax.f32 %v5055, 0.0
        %v5088 = vmax.f32 %v5056, 0.0
        %v5089 = vmax.f32 %v5057, 0.0
        %v5090 = vmax.f32 %v5058, 0.0
        %v5091 = vmax.f32 %v5059, 0.0
        %v5092 = vmax.f32 %v5060, 0.0
        %v5093 = vmax.f32 %v5061, 0.0
        %v5094 = vmax.f32 %v5062, 0.0
        %v5095 = vmax.f32 %v5063, 0.0
        %v5096 = vmax.f32 %v5064, 0.0
        %v5097 = vpack.c.bf16 %v5066, %v5065
        %v5098 = vpack.c.bf16 %v5068, %v5067
        %v5099 = vpack.c.bf16 %v5070, %v5069
        %v5100 = vpack.c.bf16 %v5072, %v5071
        %v5101 = vpack.c.bf16 %v5074, %v5073
        %v5102 = vpack.c.bf16 %v5076, %v5075
        %v5103 = vpack.c.bf16 %v5078, %v5077
        %v5104 = vpack.c.bf16 %v5080, %v5079
        %v5105 = vpack.c.bf16 %v5082, %v5081
        %v5106 = vpack.c.bf16 %v5084, %v5083
        %v5107 = vpack.c.bf16 %v5086, %v5085
        %v5108 = vpack.c.bf16 %v5088, %v5087
        %v5109 = vpack.c.bf16 %v5090, %v5089
        %v5110 = vpack.c.bf16 %v5092, %v5091
        %v5111 = vpack.c.bf16 %v5094, %v5093
        %v5112 = vpack.c.bf16 %v5096, %v5095
        %v5129 = vunpack.c.l.b16 %v5097
        %v5130 = vunpack.c.h.b16 %v5097
        %v5131 = vunpack.c.l.b16 %v5098
        %v5132 = vunpack.c.h.b16 %v5098
        %v5133 = vunpack.c.l.b16 %v5099
        %v5134 = vunpack.c.h.b16 %v5099
        %v5135 = vunpack.c.l.b16 %v5100
        %v5136 = vunpack.c.h.b16 %v5100
        %v5137 = vunpack.c.l.b16 %v5101
        %v5138 = vunpack.c.h.b16 %v5101
        %v5139 = vunpack.c.l.b16 %v5102
        %v5140 = vunpack.c.h.b16 %v5102
        %v5141 = vunpack.c.l.b16 %v5103
        %v5142 = vunpack.c.h.b16 %v5103
        %v5143 = vunpack.c.l.b16 %v5104
        %v5144 = vunpack.c.h.b16 %v5104
        %v5145 = vunpack.c.l.b16 %v5105
        %v5146 = vunpack.c.h.b16 %v5105
        %v5147 = vunpack.c.l.b16 %v5106
        %v5148 = vunpack.c.h.b16 %v5106
        %v5149 = vunpack.c.l.b16 %v5107
        %v5150 = vunpack.c.h.b16 %v5107
        %v5151 = vunpack.c.l.b16 %v5108
        %v5152 = vunpack.c.h.b16 %v5108
        %v5153 = vunpack.c.l.b16 %v5109
        %v5154 = vunpack.c.h.b16 %v5109
        %v5155 = vunpack.c.l.b16 %v5110
        %v5156 = vunpack.c.h.b16 %v5110
        %v5157 = vunpack.c.l.b16 %v5111
        %v5158 = vunpack.c.h.b16 %v5111
        %v5159 = vunpack.c.l.b16 %v5112
        %v5160 = vunpack.c.h.b16 %v5112
        %v5161 = vpack.c.b16 %v5129, %v5129
        %v5162 = vpack.c.b16 %v5130, %v5130
        %v5163 = vpack.c.b16 %v5131, %v5131
        %v5164 = vpack.c.b16 %v5132, %v5132
        %v5165 = vpack.c.b16 %v5133, %v5133
        %v5166 = vpack.c.b16 %v5134, %v5134
        %v5167 = vpack.c.b16 %v5135, %v5135
        %v5168 = vpack.c.b16 %v5136, %v5136
        %v5169 = vpack.c.b16 %v5137, %v5137
        %v5170 = vpack.c.b16 %v5138, %v5138
        %v5171 = vpack.c.b16 %v5139, %v5139
        %v5172 = vpack.c.b16 %v5140, %v5140
        %v5173 = vpack.c.b16 %v5141, %v5141
        %v5174 = vpack.c.b16 %v5142, %v5142
        %v5175 = vpack.c.b16 %v5143, %v5143
        %v5176 = vpack.c.b16 %v5144, %v5144
        %v5177 = vpack.c.b16 %v5145, %v5145
        %v5178 = vpack.c.b16 %v5146, %v5146
        %v5179 = vpack.c.b16 %v5147, %v5147
        %v5180 = vpack.c.b16 %v5148, %v5148
        %v5181 = vpack.c.b16 %v5149, %v5149
        %v5182 = vpack.c.b16 %v5150, %v5150
        %v5183 = vpack.c.b16 %v5151, %v5151
        %v5184 = vpack.c.b16 %v5152, %v5152
        %v5185 = vpack.c.b16 %v5153, %v5153
        %v5186 = vpack.c.b16 %v5154, %v5154
        %v5187 = vpack.c.b16 %v5155, %v5155
        %v5188 = vpack.c.b16 %v5156, %v5156
        %v5189 = vpack.c.b16 %v5157, %v5157
        %v5190 = vpack.c.b16 %v5158, %v5158
        %v5191 = vpack.c.b16 %v5159, %v5159
        %v5192 = vpack.c.b16 %v5160, %v5160
        %5225 = vst [vmem:[%s525] sm:$0xf] %v5161
        %5226 = vst [vmem:[%s525 + $0x4] sm:$0xf] %v5162
        %5227 = vst [vmem:[%s525 + $0x8] sm:$0xf] %v5163
        %5228 = vst [vmem:[%s525 + $0xc] sm:$0xf] %v5164
        %5229 = vst [vmem:[%s525 + $0x10] sm:$0xf] %v5165
        %5230 = vst [vmem:[%s525 + $0x14] sm:$0xf] %v5166
        %5231 = vst [vmem:[%s525 + $0x18] sm:$0xf] %v5167
        %5232 = vst [vmem:[%s525 + $0x1c] sm:$0xf] %v5168
        %5233 = vst [vmem:[%s525 + $0x20] sm:$0xf] %v5169
        %5234 = vst [vmem:[%s525 + $0x24] sm:$0xf] %v5170
        %5235 = vst [vmem:[%s525 + $0x28] sm:$0xf] %v5171
        %5236 = vst [vmem:[%s525 + $0x2c] sm:$0xf] %v5172
        %5237 = vst [vmem:[%s525 + $0x30] sm:$0xf] %v5173
        %5238 = vst [vmem:[%s525 + $0x34] sm:$0xf] %v5174
        %5239 = vst [vmem:[%s525 + $0x38] sm:$0xf] %v5175
        %5240 = vst [vmem:[%s525 + $0x3c] sm:$0xf] %v5176
        %5241 = vst [vmem:[%s525 + $0x40] sm:$0xf] %v5177
        %5242 = vst [vmem:[%s525 + $0x44] sm:$0xf] %v5178
        %5243 = vst [vmem:[%s525 + $0x48] sm:$0xf] %v5179
        %5244 = vst [vmem:[%s525 + $0x4c] sm:$0xf] %v5180
        %5245 = vst [vmem:[%s525 + $0x50] sm:$0xf] %v5181
        %5246 = vst [vmem:[%s525 + $0x54] sm:$0xf] %v5182
        %5247 = vst [vmem:[%s525 + $0x58] sm:$0xf] %v5183
        %5248 = vst [vmem:[%s525 + $0x5c] sm:$0xf] %v5184
        %5249 = vst [vmem:[%s525 + $0x60] sm:$0xf] %v5185
        %5250 = vst [vmem:[%s525 + $0x64] sm:$0xf] %v5186
        %5251 = vst [vmem:[%s525 + $0x68] sm:$0xf] %v5187
        %5252 = vst [vmem:[%s525 + $0x6c] sm:$0xf] %v5188
        %5253 = vst [vmem:[%s525 + $0x70] sm:$0xf] %v5189
        %5254 = vst [vmem:[%s525 + $0x74] sm:$0xf] %v5190
        %5255 = vst [vmem:[%s525 + $0x78] sm:$0xf] %v5191
        %5256 = vst [vmem:[%s525 + $0x7c] sm:$0xf] %v5192
        %s5257 = sand.u32 %s304, 1
        %s5258 = scalar_lea.sflag [#allocation5], %s5257
        %s5259 = sand.u32 %s304, 1
        %s5260 = smul.addr %s5259, 128
        %s5261 = scalar_lea.vmem [#allocation4], %s5260
        // Predicated region
        $region61: #{tpu_custom_call.1} parent=59 // pred_check
          %p5262 = pneg %p314
        $region62: #{tpu_custom_call.1} parent=59 // pred_check_branch
          %5264 = sbr.rel (%p5262) target = $region64
        $region63: #{tpu_custom_call.1} parent=59 // pred_region
          %s5265 = smul.u32 16, %s24
          %s5267 = ssub.s32 2048, 2048
          %5268 = vsyncadd %s5258, %s5267
          %s5269 = smul.addr %s5265, 2
          %s5270 = smul.addr %s5269, 64
          %s5271 = scalar_lea.hbm %s10, %s5270
          %s5272 = sshll.u32 %s5261, 4
          %s5273 = int_to_ptr.vmem [resolvable:$true] %s5272
          %5278 = dma.vmem_to_hbm [thread:$0]  %s5273, 2048, %s5271, %s5258, 64, 64, 4
        $region64: #{tpu_custom_call.1} parent=59 // pred_fallthru
          _
      $region60: #{tpu_custom_call.1} parent=5 // pred_fallthru
        _
      %p5279 = scmp.le.s32.totalorder 2, %s19
      // Predicated region
      $region65: #{tpu_custom_call.1} parent=5 // pred_check
        %p5280 = pneg %p5279
      $region66: #{tpu_custom_call.1} parent=5 // pred_check_branch
        %5282 = sbr.rel (%p5280) target = $region68
      $region67: #{tpu_custom_call.1} parent=5 // pred_region
        %s5283 = ssub.s32 %s19, 2
        // Predicated region
        $region69: #{tpu_custom_call.1} parent=67 // pred_check
          %p5284 = pneg %p320
        $region70: #{tpu_custom_call.1} parent=67 // pred_check_branch
          %5286 = sbr.rel (%p5284) target = $region72
        $region71: #{tpu_custom_call.1} parent=67 // pred_region
          %s5287 = sand.u32 %s305, 1
          %s5288 = scalar_lea.sflag [#allocation5], %s5287
          %s5289 = sand.u32 %s305, 1
          %s5290 = smul.addr %s5289, 128
          %s5291 = scalar_lea.vmem [#allocation4], %s5290
          %5292 = dma.done %s5288, 2048
        $region72: #{tpu_custom_call.1} parent=67 // pred_fallthru
          _
      $region68: #{tpu_custom_call.1} parent=5 // pred_fallthru
        _
    $region6: #{tpu_custom_call.1} parent=1 // loop_footer
      %s23 = sadd.s32 1, %s19
    $region7: #{tpu_custom_call.1} parent=1 // loop_footer_branch
      %18 = sbr.rel target = $region3
    $region8: #{tpu_custom_call.1} parent=1 // loop_exit
      _
    %5293 = vsyncpa [#allocation5], 1
    %s5294 = scalar_lea.sflag [#allocation5], 1
    %5295 = vsyncpa %s5294, 1

</llo_original>
